<compile_context>
chip_gen: v5e
topology: v5e:2x2
jax: 0.10.0
libtpu: 0.0.40
codegen_flags: <defaults>
</compile_context>

<pallas_src>
import functools
import math

import jax
import jax.numpy as jnp
from jax.experimental import pallas as pl
from jax.experimental.pallas import tpu as pltpu

# ---------------- static configuration (config object of the module) --------
D_MOTION = 6
D_TRAJ = 4
D_MODEL = 32
N_LAYERS = 2
N_HEADS = 2
D_HEAD = D_MODEL // N_HEADS
D_FF = 64
PRE_LAYERNORM = True
CONTEXT_FRAMES = 4
LN_EPS = 1e-5

VMEM = pl.BlockSpec(memory_space=pltpu.MemorySpace.VMEM)


# ---------------- small helpers (usable inside and outside the kernel) ------
def _ln(x, gamma, beta):
    mu = jnp.mean(x, axis=-1, keepdims=True)
    xc = x - mu
    var = jnp.mean(xc * xc, axis=-1, keepdims=True)
    return xc * jax.lax.rsqrt(var + LN_EPS) * gamma + beta


def _prelu(x, a):
    return jnp.where(x >= 0.0, x, a * x)


def _small_matmul(x, w):
    # tiny contraction dim (K <= 6): explicit rank-1 updates instead of a
    # degenerate MXU matmul.
    y = x[:, 0:1] * w[0:1, :]
    for kk in range(1, x.shape[-1]):
        y = y + x[:, kk:kk + 1] * w[kk:kk + 1, :]
    return y


def _mm(x, w):
    return jnp.dot(x, w, preferred_element_type=jnp.float32)


# ---------------- the single fused forward kernel ----------------------------
def _fused_kernel(*refs, B, T, n_layers, n_heads, d_head, pre_ln):
    in_refs = refs[:-2]
    motion_out_ref = refs[-2]
    score_out_ref = refs[-1]
    it = iter(in_refs)
    nxt = lambda: next(it)[...]

    motion = nxt()      # (B*T, Dm)
    traj = nxt()        # (B*T, Dt)
    kpe = nxt()         # (B*T, D)   keyframe positional encoding (already batch-tiled)
    rel_exp = nxt()     # (T, T, d_head): rel_exp[i, j] = E_{j-i}

    BT, Dm = motion.shape

    # keep mask: 1 on the context frames and the last (target) frame, per batch row
    row = jax.lax.broadcasted_iota(jnp.int32, (BT, 1), 0)
    keep_b = (row < CONTEXT_FRAMES) | (row == T - 1)
    for b in range(1, B):
        base = b * T
        keep_b = (keep_b
                  | ((row >= base) & (row < base + CONTEXT_FRAMES))
                  | (row == base + T - 1))
    keep = jnp.where(keep_b, 1.0, 0.0).astype(jnp.float32)      # (B*T, 1)

    # ---- motion encoder (input concat folded into split weights) ----
    w1m, w1t, w1k, b1, a1, w2, b2, a2 = (nxt() for _ in range(8))
    h = _small_matmul(motion * keep, w1m) + _small_matmul(traj, w1t) + keep * w1k + b1
    h = _prelu(h, a1)
    h = _prelu(_mm(h, w2) + b2, a2)
    x = h + kpe                                                  # (B*T, D)

    scale = 1.0 / math.sqrt(d_head)
    for _ in range(n_layers):
        # ---- multi-head self-attention with relative position bias ----
        wq, bq, wk, bk, wv, bv, wo, bo, ga, ba = (nxt() for _ in range(10))
        xn = _ln(x, ga, ba) if pre_ln else x
        q = _mm(xn, wq) + bq
        k = _mm(xn, wk) + bk
        v = _mm(xn, wv) + bv
        ctx_blocks = []
        for b in range(B):                      # static unroll (B small)
            rows = slice(b * T, (b + 1) * T)
            qb, kb, vb = q[rows], k[rows], v[rows]
            heads = []
            for hh in range(n_heads):           # static unroll (n_heads small)
                cols = slice(hh * d_head, (hh + 1) * d_head)
                qh, kh, vh = qb[:, cols], kb[:, cols], vb[:, cols]
                scores = _mm(qh, kh.T)                                  # (T, T)
                # TODO(synk): for large T use the Music-Transformer skew (qh @ lt.T
                # + skew) instead of the materialized rel_exp broadcast-reduce.
                rel = jnp.sum(qh[:, None, :] * rel_exp, axis=-1)        # (T, T)
                s = (scores + rel) * scale
                s = s - jnp.max(s, axis=-1, keepdims=True)
                p = jnp.exp(s)
                p = p * pl.reciprocal(jnp.sum(p, axis=-1, keepdims=True), approx=True)
                heads.append(_mm(p, vh))
            ctx_blocks.append(jnp.concatenate(heads, axis=-1))          # (T, HD)
        ctx = jnp.concatenate(ctx_blocks, axis=0)                       # (B*T, HD)
        x = x + _mm(ctx, wo) + bo
        if not pre_ln:
            x = _ln(x, ga, ba)

        # ---- position-wise feed-forward ----
        fw1, fb1, fw2, fb2, gf, bf = (nxt() for _ in range(6))
        xn = _ln(x, gf, bf) if pre_ln else x
        hmid = jnp.maximum(_mm(xn, fw1) + fb1, 0.0)
        x = x + _mm(hmid, fw2) + fb2
        if not pre_ln:
            x = _ln(x, gf, bf)

    # ---- final layernorm (pre-LN variant) ----
    g_fin, b_fin = nxt(), nxt()
    if pre_ln:
        x = _ln(x, g_fin, b_fin)

    # ---- decoder ----
    dw1, db1, da1, dw2, db2 = (nxt() for _ in range(5))
    y = _prelu(_mm(x, dw1) + db1, da1)
    y = _mm(y, dw2) + db2                                               # (B*T, Dm+1)

    # ---- overwrite context/target frames with original motion, sigmoid score ----
    motion_out_ref[...] = keep * motion + (1.0 - keep) * y[:, :Dm]
    score_out_ref[...] = 1.0 / (1.0 + jnp.exp(-y[:, Dm:]))


# ---------------- full forward pass -------------------------------------------
def keyframenet_forward(params, motion, traj):
    B, T, Dm = motion.shape
    Dt = traj.shape[-1]
    motion2d = motion.reshape(B * T, Dm)
    traj2d = traj.reshape(B * T, Dt)

    # tiny positional / relative-position encoders: plain JAX/XLA (microseconds of
    # work; not worth a pallas_call launch each).
    kp, rp = params["kp"], params["rp"]
    pos = jnp.arange(T, dtype=jnp.float32)
    p_kf = jnp.stack([pos - (CONTEXT_FRAMES - 1), pos - (T - 1)], axis=-1)       # (T, 2)
    kpe = _prelu(p_kf @ kp["w1"] + kp["b1"], kp["a1"]) @ kp["w2"] + kp["b2"]     # (T, D)
    kpe2d = jnp.tile(kpe, (B, 1))                                                # (B*T, D)

    lt_in = jnp.arange(-T + 1, T, dtype=jnp.float32)[:, None]                    # (2T-1, 1)
    lt = _prelu(lt_in @ rp["w1"] + rp["b1"], rp["a1"]) @ rp["w2"] + rp["b2"]     # (2T-1, dh)
    rel_idx = jnp.arange(T)[None, :] - jnp.arange(T)[:, None] + (T - 1)          # (T, T)
    rel_exp = lt[rel_idx]                                                        # (T, T, dh)

    me, dec, fln = params["me"], params["dec"], params["final_ln"]
    inputs = [
        motion2d, traj2d, kpe2d, rel_exp,
        # motion encoder first linear split into motion / traj / mask column blocks
        me["w1"][:Dm], me["w1"][Dm:Dm + Dt], me["w1"][Dm + Dt:],
        me["b1"], me["a1"], me["w2"], me["b2"], me["a2"],
    ]
    for i in range(N_LAYERS):
        a, f = params["attn"][i], params["ffn"][i]
        inputs += [a["wq"], a["bq"], a["wk"], a["bk"], a["wv"], a["bv"],
                   a["wo"], a["bo"], a["gamma"], a["beta"]]
        inputs += [f["w1"], f["b1"], f["w2"], f["b2"], f["gamma"], f["beta"]]
    inputs += [fln["gamma"], fln["beta"]]
    inputs += [dec["w1"], dec["b1"], dec["a1"], dec["w2"], dec["b2"]]

    out_motion2d, score2d = pl.pallas_call(
        functools.partial(_fused_kernel, B=B, T=T, n_layers=N_LAYERS,
                          n_heads=N_HEADS, d_head=D_HEAD, pre_ln=PRE_LAYERNORM),
        out_shape=(jax.ShapeDtypeStruct((B * T, Dm), jnp.float32),
                   jax.ShapeDtypeStruct((B * T, 1), jnp.float32)),
        in_specs=[VMEM] * len(inputs),
        out_specs=(VMEM, VMEM),
    )(*inputs)

    return out_motion2d.reshape(B, T, Dm), score2d.reshape(B, T, 1)


# ---------------- deterministic parameter init --------------------------------
def _init_linear(key, din, dout, scale=0.1):
    kw, kb = jax.random.split(key)
    return (scale * jax.random.normal(kw, (din, dout), jnp.float32),
            scale * jax.random.normal(kb, (1, dout), jnp.float32))


def init_params(key):
    keys = jax.random.split(key, 32)
    ki = iter(keys)
    prelu = lambda: jnp.full((1, 1), 0.25, jnp.float32)   # nn.PReLU default
    p = {}

    w1, b1 = _init_linear(next(ki), D_MOTION + D_TRAJ + 1, D_MODEL)
    w2, b2 = _init_linear(next(ki), D_MODEL, D_MODEL)
    p["me"] = dict(w1=w1, b1=b1, a1=prelu(), w2=w2, b2=b2, a2=prelu())

    w1, b1 = _init_linear(next(ki), 2, D_MODEL)
    w2, b2 = _init_linear(next(ki), D_MODEL, D_MODEL)
    p["kp"] = dict(w1=w1, b1=b1, a1=prelu(), w2=w2, b2=b2)

    w1, b1 = _init_linear(next(ki), 1, D_MODEL)
    w2, b2 = _init_linear(next(ki), D_MODEL, D_HEAD)
    p["rp"] = dict(w1=w1, b1=b1, a1=prelu(), w2=w2, b2=b2)

    p["attn"], p["ffn"] = [], []
    for _ in range(N_LAYERS):
        wq, bq = _init_linear(next(ki), D_MODEL, N_HEADS * D_HEAD)
        wk, bk = _init_linear(next(ki), D_MODEL, N_HEADS * D_HEAD)
        wv, bv = _init_linear(next(ki), D_MODEL, N_HEADS * D_HEAD)
        wo, bo = _init_linear(next(ki), N_HEADS * D_HEAD, D_MODEL)
        p["attn"].append(dict(wq=wq, bq=bq, wk=wk, bk=bk, wv=wv, bv=bv,
                              wo=wo, bo=bo,
                              gamma=jnp.ones((1, D_MODEL), jnp.float32),
                              beta=jnp.zeros((1, D_MODEL), jnp.float32)))
        w1, b1 = _init_linear(next(ki), D_MODEL, D_FF)
        w2, b2 = _init_linear(next(ki), D_FF, D_MODEL)
        p["ffn"].append(dict(w1=w1, b1=b1, w2=w2, b2=b2,
                             gamma=jnp.ones((1, D_MODEL), jnp.float32),
                             beta=jnp.zeros((1, D_MODEL), jnp.float32)))

    p["final_ln"] = dict(gamma=jnp.ones((1, D_MODEL), jnp.float32),
                         beta=jnp.zeros((1, D_MODEL), jnp.float32))

    w1, b1 = _init_linear(next(ki), D_MODEL, D_MODEL)
    w2, b2 = _init_linear(next(ki), D_MODEL, D_MOTION + 1)
    p["dec"] = dict(w1=w1, b1=b1, a1=prelu(), w2=w2, b2=b2)
    return p


if __name__ == "__main__":
    key = jax.random.PRNGKey(0)
    k_motion, k_traj, k_params = jax.random.split(key, 3)
    B, T = 2, 16
    motion = jax.random.normal(k_motion, (B, T, D_MOTION), jnp.float32)
    traj = jax.random.normal(k_traj, (B, T, D_TRAJ), jnp.float32)
    params = init_params(k_params)

    fwd = jax.jit(keyframenet_forward)
    out_motion, kf_score = fwd(params, motion, traj)
    jax.block_until_ready((out_motion, kf_score))

    assert out_motion.shape == (B, T, D_MOTION)
    assert kf_score.shape == (B, T, 1)
    assert bool(jnp.all(jnp.isfinite(out_motion)))
    assert bool(jnp.all((kf_score >= 0.0) & (kf_score <= 1.0)))
    print("KERNEL_OK")
</pallas_src>

<mosaic_0001>
module attributes {stable_mosaic.version = 11 : i64} {
  func.func @_fused_kernel(%arg0: memref<32x6xf32, #tpu.memory_space<vmem>>, %arg1: memref<32x4xf32, #tpu.memory_space<vmem>>, %arg2: memref<32x32xf32, #tpu.memory_space<vmem>>, %arg3: memref<16x16x16xf32, #tpu.memory_space<vmem>>, %arg4: memref<6x32xf32, #tpu.memory_space<vmem>>, %arg5: memref<4x32xf32, #tpu.memory_space<vmem>>, %arg6: memref<1x32xf32, #tpu.memory_space<vmem>>, %arg7: memref<1x32xf32, #tpu.memory_space<vmem>>, %arg8: memref<1x1xf32, #tpu.memory_space<vmem>>, %arg9: memref<32x32xf32, #tpu.memory_space<vmem>>, %arg10: memref<1x32xf32, #tpu.memory_space<vmem>>, %arg11: memref<1x1xf32, #tpu.memory_space<vmem>>, %arg12: memref<32x32xf32, #tpu.memory_space<vmem>>, %arg13: memref<1x32xf32, #tpu.memory_space<vmem>>, %arg14: memref<32x32xf32, #tpu.memory_space<vmem>>, %arg15: memref<1x32xf32, #tpu.memory_space<vmem>>, %arg16: memref<32x32xf32, #tpu.memory_space<vmem>>, %arg17: memref<1x32xf32, #tpu.memory_space<vmem>>, %arg18: memref<32x32xf32, #tpu.memory_space<vmem>>, %arg19: memref<1x32xf32, #tpu.memory_space<vmem>>, %arg20: memref<1x32xf32, #tpu.memory_space<vmem>>, %arg21: memref<1x32xf32, #tpu.memory_space<vmem>>, %arg22: memref<32x64xf32, #tpu.memory_space<vmem>>, %arg23: memref<1x64xf32, #tpu.memory_space<vmem>>, %arg24: memref<64x32xf32, #tpu.memory_space<vmem>>, %arg25: memref<1x32xf32, #tpu.memory_space<vmem>>, %arg26: memref<1x32xf32, #tpu.memory_space<vmem>>, %arg27: memref<1x32xf32, #tpu.memory_space<vmem>>, %arg28: memref<32x32xf32, #tpu.memory_space<vmem>>, %arg29: memref<1x32xf32, #tpu.memory_space<vmem>>, %arg30: memref<32x32xf32, #tpu.memory_space<vmem>>, %arg31: memref<1x32xf32, #tpu.memory_space<vmem>>, %arg32: memref<32x32xf32, #tpu.memory_space<vmem>>, %arg33: memref<1x32xf32, #tpu.memory_space<vmem>>, %arg34: memref<32x32xf32, #tpu.memory_space<vmem>>, %arg35: memref<1x32xf32, #tpu.memory_space<vmem>>, %arg36: memref<1x32xf32, #tpu.memory_space<vmem>>, %arg37: memref<1x32xf32, #tpu.memory_space<vmem>>, %arg38: memref<32x64xf32, #tpu.memory_space<vmem>>, %arg39: memref<1x64xf32, #tpu.memory_space<vmem>>, %arg40: memref<64x32xf32, #tpu.memory_space<vmem>>, %arg41: memref<1x32xf32, #tpu.memory_space<vmem>>, %arg42: memref<1x32xf32, #tpu.memory_space<vmem>>, %arg43: memref<1x32xf32, #tpu.memory_space<vmem>>, %arg44: memref<1x32xf32, #tpu.memory_space<vmem>>, %arg45: memref<1x32xf32, #tpu.memory_space<vmem>>, %arg46: memref<32x32xf32, #tpu.memory_space<vmem>>, %arg47: memref<1x32xf32, #tpu.memory_space<vmem>>, %arg48: memref<1x1xf32, #tpu.memory_space<vmem>>, %arg49: memref<32x7xf32, #tpu.memory_space<vmem>>, %arg50: memref<1x7xf32, #tpu.memory_space<vmem>>, %arg51: memref<32x6xf32, #tpu.memory_space<vmem>>, %arg52: memref<32x1xf32, #tpu.memory_space<vmem>>) attributes {dimension_semantics = [], scalar_prefetch = 0 : i64, scratch_operands = 0 : i64, tpu.core_type = #tpu.core_type<tc>} {
    %c0 = arith.constant 0 : index
    %c0_0 = arith.constant 0 : index
    %0 = vector.load %arg0[%c0, %c0_0] : memref<32x6xf32, #tpu.memory_space<vmem>>, vector<32x6xf32>
    %c0_1 = arith.constant 0 : index
    %c0_2 = arith.constant 0 : index
    %1 = vector.load %arg1[%c0_1, %c0_2] : memref<32x4xf32, #tpu.memory_space<vmem>>, vector<32x4xf32>
    %c0_3 = arith.constant 0 : index
    %c0_4 = arith.constant 0 : index
    %2 = vector.load %arg2[%c0_3, %c0_4] : memref<32x32xf32, #tpu.memory_space<vmem>>, vector<32x32xf32>
    %c0_5 = arith.constant 0 : index
    %c0_6 = arith.constant 0 : index
    %c0_7 = arith.constant 0 : index
    %3 = vector.load %arg3[%c0_5, %c0_6, %c0_7] : memref<16x16x16xf32, #tpu.memory_space<vmem>>, vector<16x16x16xf32>
    %4 = tpu.iota {dimensions = array<i32: 0>} : vector<32x1xi32>
    %c4_i32 = arith.constant 4 : i32
    %5 = vector.broadcast %c4_i32 : i32 to vector<32x1xi32>
    %6 = arith.cmpi slt, %4, %5 : vector<32x1xi32>
    %c15_i32 = arith.constant 15 : i32
    %7 = vector.broadcast %c15_i32 : i32 to vector<32x1xi32>
    %8 = arith.cmpi eq, %4, %7 : vector<32x1xi32>
    %9 = arith.ori %6, %8 : vector<32x1xi1>
    %c16_i32 = arith.constant 16 : i32
    %10 = vector.broadcast %c16_i32 : i32 to vector<32x1xi32>
    %11 = arith.cmpi sge, %4, %10 : vector<32x1xi32>
    %c20_i32 = arith.constant 20 : i32
    %12 = vector.broadcast %c20_i32 : i32 to vector<32x1xi32>
    %13 = arith.cmpi slt, %4, %12 : vector<32x1xi32>
    %14 = arith.andi %11, %13 : vector<32x1xi1>
    %15 = arith.ori %9, %14 : vector<32x1xi1>
    %c31_i32 = arith.constant 31 : i32
    %16 = vector.broadcast %c31_i32 : i32 to vector<32x1xi32>
    %17 = arith.cmpi eq, %4, %16 : vector<32x1xi32>
    %18 = arith.ori %15, %17 : vector<32x1xi1>
    %cst = arith.constant 1.000000e+00 : f32
    %cst_8 = arith.constant 0.000000e+00 : f32
    %19 = vector.broadcast %cst : f32 to vector<32x1xf32>
    %20 = vector.broadcast %cst_8 : f32 to vector<32x1xf32>
    %21 = arith.select %18, %19, %20 : vector<32x1xi1>, vector<32x1xf32>
    %c0_9 = arith.constant 0 : index
    %c0_10 = arith.constant 0 : index
    %22 = vector.load %arg4[%c0_9, %c0_10] : memref<6x32xf32, #tpu.memory_space<vmem>>, vector<6x32xf32>
    %c0_11 = arith.constant 0 : index
    %c0_12 = arith.constant 0 : index
    %23 = vector.load %arg5[%c0_11, %c0_12] : memref<4x32xf32, #tpu.memory_space<vmem>>, vector<4x32xf32>
    %c0_13 = arith.constant 0 : index
    %c0_14 = arith.constant 0 : index
    %24 = vector.load %arg6[%c0_13, %c0_14] : memref<1x32xf32, #tpu.memory_space<vmem>>, vector<1x32xf32>
    %c0_15 = arith.constant 0 : index
    %c0_16 = arith.constant 0 : index
    %25 = vector.load %arg7[%c0_15, %c0_16] : memref<1x32xf32, #tpu.memory_space<vmem>>, vector<1x32xf32>
    %c0_17 = arith.constant 0 : index
    %c0_18 = arith.constant 0 : index
    %26 = vector.load %arg8[%c0_17, %c0_18] : memref<1x1xf32, #tpu.memory_space<vmem>>, vector<1x1xf32>
    %c0_19 = arith.constant 0 : index
    %c0_20 = arith.constant 0 : index
    %27 = vector.load %arg9[%c0_19, %c0_20] : memref<32x32xf32, #tpu.memory_space<vmem>>, vector<32x32xf32>
    %c0_21 = arith.constant 0 : index
    %c0_22 = arith.constant 0 : index
    %28 = vector.load %arg10[%c0_21, %c0_22] : memref<1x32xf32, #tpu.memory_space<vmem>>, vector<1x32xf32>
    %c0_23 = arith.constant 0 : index
    %c0_24 = arith.constant 0 : index
    %29 = vector.load %arg11[%c0_23, %c0_24] : memref<1x1xf32, #tpu.memory_space<vmem>>, vector<1x1xf32>
    %30 = vector.broadcast %21 : vector<32x1xf32> to vector<32x6xf32>
    %31 = arith.mulf %0, %30 : vector<32x6xf32>
    %32 = vector.extract_strided_slice %31 {offsets = [0, 0], sizes = [32, 1], strides = [1, 1]} : vector<32x6xf32> to vector<32x1xf32>
    %33 = vector.extract_strided_slice %22 {offsets = [0, 0], sizes = [1, 32], strides = [1, 1]} : vector<6x32xf32> to vector<1x32xf32>
    %34 = vector.broadcast %32 : vector<32x1xf32> to vector<32x32xf32>
    %35 = vector.broadcast %33 : vector<1x32xf32> to vector<32x32xf32>
    %36 = arith.mulf %34, %35 : vector<32x32xf32>
    %37 = vector.extract_strided_slice %31 {offsets = [0, 1], sizes = [32, 1], strides = [1, 1]} : vector<32x6xf32> to vector<32x1xf32>
    %38 = vector.extract_strided_slice %22 {offsets = [1, 0], sizes = [1, 32], strides = [1, 1]} : vector<6x32xf32> to vector<1x32xf32>
    %39 = vector.broadcast %37 : vector<32x1xf32> to vector<32x32xf32>
    %40 = vector.broadcast %38 : vector<1x32xf32> to vector<32x32xf32>
    %41 = arith.mulf %39, %40 : vector<32x32xf32>
    %42 = arith.addf %36, %41 : vector<32x32xf32>
    %43 = vector.extract_strided_slice %31 {offsets = [0, 2], sizes = [32, 1], strides = [1, 1]} : vector<32x6xf32> to vector<32x1xf32>
    %44 = vector.extract_strided_slice %22 {offsets = [2, 0], sizes = [1, 32], strides = [1, 1]} : vector<6x32xf32> to vector<1x32xf32>
    %45 = vector.broadcast %43 : vector<32x1xf32> to vector<32x32xf32>
    %46 = vector.broadcast %44 : vector<1x32xf32> to vector<32x32xf32>
    %47 = arith.mulf %45, %46 : vector<32x32xf32>
    %48 = arith.addf %42, %47 : vector<32x32xf32>
    %49 = vector.extract_strided_slice %31 {offsets = [0, 3], sizes = [32, 1], strides = [1, 1]} : vector<32x6xf32> to vector<32x1xf32>
    %50 = vector.extract_strided_slice %22 {offsets = [3, 0], sizes = [1, 32], strides = [1, 1]} : vector<6x32xf32> to vector<1x32xf32>
    %51 = vector.broadcast %49 : vector<32x1xf32> to vector<32x32xf32>
    %52 = vector.broadcast %50 : vector<1x32xf32> to vector<32x32xf32>
    %53 = arith.mulf %51, %52 : vector<32x32xf32>
    %54 = arith.addf %48, %53 : vector<32x32xf32>
    %55 = vector.extract_strided_slice %31 {offsets = [0, 4], sizes = [32, 1], strides = [1, 1]} : vector<32x6xf32> to vector<32x1xf32>
    %56 = vector.extract_strided_slice %22 {offsets = [4, 0], sizes = [1, 32], strides = [1, 1]} : vector<6x32xf32> to vector<1x32xf32>
    %57 = vector.broadcast %55 : vector<32x1xf32> to vector<32x32xf32>
    %58 = vector.broadcast %56 : vector<1x32xf32> to vector<32x32xf32>
    %59 = arith.mulf %57, %58 : vector<32x32xf32>
    %60 = arith.addf %54, %59 : vector<32x32xf32>
    %61 = vector.extract_strided_slice %31 {offsets = [0, 5], sizes = [32, 1], strides = [1, 1]} : vector<32x6xf32> to vector<32x1xf32>
    %62 = vector.extract_strided_slice %22 {offsets = [5, 0], sizes = [1, 32], strides = [1, 1]} : vector<6x32xf32> to vector<1x32xf32>
    %63 = vector.broadcast %61 : vector<32x1xf32> to vector<32x32xf32>
    %64 = vector.broadcast %62 : vector<1x32xf32> to vector<32x32xf32>
    %65 = arith.mulf %63, %64 : vector<32x32xf32>
    %66 = arith.addf %60, %65 : vector<32x32xf32>
    %67 = vector.extract_strided_slice %1 {offsets = [0, 0], sizes = [32, 1], strides = [1, 1]} : vector<32x4xf32> to vector<32x1xf32>
    %68 = vector.extract_strided_slice %23 {offsets = [0, 0], sizes = [1, 32], strides = [1, 1]} : vector<4x32xf32> to vector<1x32xf32>
    %69 = vector.broadcast %67 : vector<32x1xf32> to vector<32x32xf32>
    %70 = vector.broadcast %68 : vector<1x32xf32> to vector<32x32xf32>
    %71 = arith.mulf %69, %70 : vector<32x32xf32>
    %72 = vector.extract_strided_slice %1 {offsets = [0, 1], sizes = [32, 1], strides = [1, 1]} : vector<32x4xf32> to vector<32x1xf32>
    %73 = vector.extract_strided_slice %23 {offsets = [1, 0], sizes = [1, 32], strides = [1, 1]} : vector<4x32xf32> to vector<1x32xf32>
    %74 = vector.broadcast %72 : vector<32x1xf32> to vector<32x32xf32>
    %75 = vector.broadcast %73 : vector<1x32xf32> to vector<32x32xf32>
    %76 = arith.mulf %74, %75 : vector<32x32xf32>
    %77 = arith.addf %71, %76 : vector<32x32xf32>
    %78 = vector.extract_strided_slice %1 {offsets = [0, 2], sizes = [32, 1], strides = [1, 1]} : vector<32x4xf32> to vector<32x1xf32>
    %79 = vector.extract_strided_slice %23 {offsets = [2, 0], sizes = [1, 32], strides = [1, 1]} : vector<4x32xf32> to vector<1x32xf32>
    %80 = vector.broadcast %78 : vector<32x1xf32> to vector<32x32xf32>
    %81 = vector.broadcast %79 : vector<1x32xf32> to vector<32x32xf32>
    %82 = arith.mulf %80, %81 : vector<32x32xf32>
    %83 = arith.addf %77, %82 : vector<32x32xf32>
    %84 = vector.extract_strided_slice %1 {offsets = [0, 3], sizes = [32, 1], strides = [1, 1]} : vector<32x4xf32> to vector<32x1xf32>
    %85 = vector.extract_strided_slice %23 {offsets = [3, 0], sizes = [1, 32], strides = [1, 1]} : vector<4x32xf32> to vector<1x32xf32>
    %86 = vector.broadcast %84 : vector<32x1xf32> to vector<32x32xf32>
    %87 = vector.broadcast %85 : vector<1x32xf32> to vector<32x32xf32>
    %88 = arith.mulf %86, %87 : vector<32x32xf32>
    %89 = arith.addf %83, %88 : vector<32x32xf32>
    %90 = arith.addf %66, %89 : vector<32x32xf32>
    %91 = vector.broadcast %21 : vector<32x1xf32> to vector<32x32xf32>
    %92 = vector.broadcast %24 : vector<1x32xf32> to vector<32x32xf32>
    %93 = arith.mulf %91, %92 : vector<32x32xf32>
    %94 = arith.addf %90, %93 : vector<32x32xf32>
    %95 = vector.broadcast %25 : vector<1x32xf32> to vector<32x32xf32>
    %96 = arith.addf %94, %95 : vector<32x32xf32>
    %cst_25 = arith.constant 0.000000e+00 : f32
    %97 = vector.broadcast %cst_25 : f32 to vector<32x32xf32>
    %98 = arith.cmpf oge, %96, %97 : vector<32x32xf32>
    %99 = vector.broadcast %26 : vector<1x1xf32> to vector<32x32xf32>
    %100 = arith.mulf %99, %96 : vector<32x32xf32>
    %101 = arith.select %98, %96, %100 : vector<32x32xi1>, vector<32x32xf32>
    %cst_26 = arith.constant dense<0.000000e+00> : vector<32x32xf32>
    %102 = tpu.matmul %101, %27, %cst_26 {dimension_numbers = #tpu.dot_dimension_numbers<[1], [0], [0], [1], [0, 0, 1, 1], [], []>} : vector<32x32xf32>, vector<32x32xf32>, vector<32x32xf32> -> vector<32x32xf32>
    %103 = vector.broadcast %28 : vector<1x32xf32> to vector<32x32xf32>
    %104 = arith.addf %102, %103 : vector<32x32xf32>
    %cst_27 = arith.constant 0.000000e+00 : f32
    %105 = vector.broadcast %cst_27 : f32 to vector<32x32xf32>
    %106 = arith.cmpf oge, %104, %105 : vector<32x32xf32>
    %107 = vector.broadcast %29 : vector<1x1xf32> to vector<32x32xf32>
    %108 = arith.mulf %107, %104 : vector<32x32xf32>
    %109 = arith.select %106, %104, %108 : vector<32x32xi1>, vector<32x32xf32>
    %110 = arith.addf %109, %2 : vector<32x32xf32>
    %c0_28 = arith.constant 0 : index
    %c0_29 = arith.constant 0 : index
    %111 = vector.load %arg12[%c0_28, %c0_29] : memref<32x32xf32, #tpu.memory_space<vmem>>, vector<32x32xf32>
    %c0_30 = arith.constant 0 : index
    %c0_31 = arith.constant 0 : index
    %112 = vector.load %arg13[%c0_30, %c0_31] : memref<1x32xf32, #tpu.memory_space<vmem>>, vector<1x32xf32>
    %c0_32 = arith.constant 0 : index
    %c0_33 = arith.constant 0 : index
    %113 = vector.load %arg14[%c0_32, %c0_33] : memref<32x32xf32, #tpu.memory_space<vmem>>, vector<32x32xf32>
    %c0_34 = arith.constant 0 : index
    %c0_35 = arith.constant 0 : index
    %114 = vector.load %arg15[%c0_34, %c0_35] : memref<1x32xf32, #tpu.memory_space<vmem>>, vector<1x32xf32>
    %c0_36 = arith.constant 0 : index
    %c0_37 = arith.constant 0 : index
    %115 = vector.load %arg16[%c0_36, %c0_37] : memref<32x32xf32, #tpu.memory_space<vmem>>, vector<32x32xf32>
    %c0_38 = arith.constant 0 : index
    %c0_39 = arith.constant 0 : index
    %116 = vector.load %arg17[%c0_38, %c0_39] : memref<1x32xf32, #tpu.memory_space<vmem>>, vector<1x32xf32>
    %c0_40 = arith.constant 0 : index
    %c0_41 = arith.constant 0 : index
    %117 = vector.load %arg18[%c0_40, %c0_41] : memref<32x32xf32, #tpu.memory_space<vmem>>, vector<32x32xf32>
    %c0_42 = arith.constant 0 : index
    %c0_43 = arith.constant 0 : index
    %118 = vector.load %arg19[%c0_42, %c0_43] : memref<1x32xf32, #tpu.memory_space<vmem>>, vector<1x32xf32>
    %c0_44 = arith.constant 0 : index
    %c0_45 = arith.constant 0 : index
    %119 = vector.load %arg20[%c0_44, %c0_45] : memref<1x32xf32, #tpu.memory_space<vmem>>, vector<1x32xf32>
    %c0_46 = arith.constant 0 : index
    %c0_47 = arith.constant 0 : index
    %120 = vector.load %arg21[%c0_46, %c0_47] : memref<1x32xf32, #tpu.memory_space<vmem>>, vector<1x32xf32>
    %cst_48 = arith.constant dense<0.000000e+00> : vector<32xf32>
    %121 = vector.multi_reduction <add>, %110, %cst_48 [1] : vector<32x32xf32> to vector<32xf32>
    %122 = vector.shape_cast %121 : vector<32xf32> to vector<32x1xf32>
    %cst_49 = arith.constant 3.200000e+01 : f32
    %123 = vector.broadcast %cst_49 : f32 to vector<32x1xf32>
    %124 = arith.divf %122, %123 : vector<32x1xf32>
    %125 = vector.broadcast %124 : vector<32x1xf32> to vector<32x32xf32>
    %126 = arith.subf %110, %125 : vector<32x32xf32>
    %127 = arith.mulf %126, %126 : vector<32x32xf32>
    %cst_50 = arith.constant dense<0.000000e+00> : vector<32xf32>
    %128 = vector.multi_reduction <add>, %127, %cst_50 [1] : vector<32x32xf32> to vector<32xf32>
    %129 = vector.shape_cast %128 : vector<32xf32> to vector<32x1xf32>
    %cst_51 = arith.constant 3.200000e+01 : f32
    %130 = vector.broadcast %cst_51 : f32 to vector<32x1xf32>
    %131 = arith.divf %129, %130 : vector<32x1xf32>
    %cst_52 = arith.constant 9.99999974E-6 : f32
    %132 = vector.broadcast %cst_52 : f32 to vector<32x1xf32>
    %133 = arith.addf %131, %132 : vector<32x1xf32>
    %134 = math.rsqrt %133 : vector<32x1xf32>
    %135 = vector.broadcast %134 : vector<32x1xf32> to vector<32x32xf32>
    %136 = arith.mulf %126, %135 : vector<32x32xf32>
    %137 = vector.broadcast %119 : vector<1x32xf32> to vector<32x32xf32>
    %138 = arith.mulf %136, %137 : vector<32x32xf32>
    %139 = vector.broadcast %120 : vector<1x32xf32> to vector<32x32xf32>
    %140 = arith.addf %138, %139 : vector<32x32xf32>
    %cst_53 = arith.constant dense<0.000000e+00> : vector<32x32xf32>
    %141 = tpu.matmul %140, %111, %cst_53 {dimension_numbers = #tpu.dot_dimension_numbers<[1], [0], [0], [1], [0, 0, 1, 1], [], []>} : vector<32x32xf32>, vector<32x32xf32>, vector<32x32xf32> -> vector<32x32xf32>
    %142 = vector.broadcast %112 : vector<1x32xf32> to vector<32x32xf32>
    %143 = arith.addf %141, %142 : vector<32x32xf32>
    %cst_54 = arith.constant dense<0.000000e+00> : vector<32x32xf32>
    %144 = tpu.matmul %140, %113, %cst_54 {dimension_numbers = #tpu.dot_dimension_numbers<[1], [0], [0], [1], [0, 0, 1, 1], [], []>} : vector<32x32xf32>, vector<32x32xf32>, vector<32x32xf32> -> vector<32x32xf32>
    %145 = vector.broadcast %114 : vector<1x32xf32> to vector<32x32xf32>
    %146 = arith.addf %144, %145 : vector<32x32xf32>
    %cst_55 = arith.constant dense<0.000000e+00> : vector<32x32xf32>
    %147 = tpu.matmul %140, %115, %cst_55 {dimension_numbers = #tpu.dot_dimension_numbers<[1], [0], [0], [1], [0, 0, 1, 1], [], []>} : vector<32x32xf32>, vector<32x32xf32>, vector<32x32xf32> -> vector<32x32xf32>
    %148 = vector.broadcast %116 : vector<1x32xf32> to vector<32x32xf32>
    %149 = arith.addf %147, %148 : vector<32x32xf32>
    %150 = vector.extract_strided_slice %143 {offsets = [0, 0], sizes = [16, 32], strides = [1, 1]} : vector<32x32xf32> to vector<16x32xf32>
    %151 = vector.extract_strided_slice %146 {offsets = [0, 0], sizes = [16, 32], strides = [1, 1]} : vector<32x32xf32> to vector<16x32xf32>
    %152 = vector.extract_strided_slice %149 {offsets = [0, 0], sizes = [16, 32], strides = [1, 1]} : vector<32x32xf32> to vector<16x32xf32>
    %153 = vector.extract_strided_slice %150 {offsets = [0, 0], sizes = [16, 16], strides = [1, 1]} : vector<16x32xf32> to vector<16x16xf32>
    %154 = vector.extract_strided_slice %151 {offsets = [0, 0], sizes = [16, 16], strides = [1, 1]} : vector<16x32xf32> to vector<16x16xf32>
    %155 = vector.extract_strided_slice %152 {offsets = [0, 0], sizes = [16, 16], strides = [1, 1]} : vector<16x32xf32> to vector<16x16xf32>
    %156 = tpu.transpose %154, [1, 0] : vector<16x16xf32> -> vector<16x16xf32>
    %cst_56 = arith.constant dense<0.000000e+00> : vector<16x16xf32>
    %157 = tpu.matmul %153, %156, %cst_56 {dimension_numbers = #tpu.dot_dimension_numbers<[1], [0], [0], [1], [0, 0, 1, 1], [], []>} : vector<16x16xf32>, vector<16x16xf32>, vector<16x16xf32> -> vector<16x16xf32>
    %158 = vector.shape_cast %153 : vector<16x16xf32> to vector<16x1x16xf32>
    %159 = vector.broadcast %158 : vector<16x1x16xf32> to vector<16x16x16xf32>
    %160 = arith.mulf %159, %3 : vector<16x16x16xf32>
    %cst_57 = arith.constant dense<0.000000e+00> : vector<16x16xf32>
    %161 = vector.multi_reduction <add>, %160, %cst_57 [2] : vector<16x16x16xf32> to vector<16x16xf32>
    %162 = arith.addf %157, %161 : vector<16x16xf32>
    %cst_58 = arith.constant 2.500000e-01 : f32
    %163 = vector.broadcast %cst_58 : f32 to vector<16x16xf32>
    %164 = arith.mulf %162, %163 : vector<16x16xf32>
    %cst_59 = arith.constant dense<0xFF800000> : vector<16xf32>
    %165 = vector.multi_reduction <maximumf>, %164, %cst_59 [1] : vector<16x16xf32> to vector<16xf32>
    %166 = vector.shape_cast %165 : vector<16xf32> to vector<16x1xf32>
    %167 = vector.broadcast %166 : vector<16x1xf32> to vector<16x16xf32>
    %168 = arith.subf %164, %167 : vector<16x16xf32>
    %169 = math.exp %168 : vector<16x16xf32>
    %cst_60 = arith.constant dense<0.000000e+00> : vector<16xf32>
    %170 = vector.multi_reduction <add>, %169, %cst_60 [1] : vector<16x16xf32> to vector<16xf32>
    %171 = vector.shape_cast %170 : vector<16xf32> to vector<16x1xf32>
    %172 = tpu.reciprocal %171 {approx = true} : vector<16x1xf32> -> vector<16x1xf32>
    %173 = vector.broadcast %172 : vector<16x1xf32> to vector<16x16xf32>
    %174 = arith.mulf %169, %173 : vector<16x16xf32>
    %cst_61 = arith.constant dense<0.000000e+00> : vector<16x16xf32>
    %175 = tpu.matmul %174, %155, %cst_61 {dimension_numbers = #tpu.dot_dimension_numbers<[1], [0], [0], [1], [0, 0, 1, 1], [], []>} : vector<16x16xf32>, vector<16x16xf32>, vector<16x16xf32> -> vector<16x16xf32>
    %176 = vector.extract_strided_slice %150 {offsets = [0, 16], sizes = [16, 16], strides = [1, 1]} : vector<16x32xf32> to vector<16x16xf32>
    %177 = vector.extract_strided_slice %151 {offsets = [0, 16], sizes = [16, 16], strides = [1, 1]} : vector<16x32xf32> to vector<16x16xf32>
    %178 = vector.extract_strided_slice %152 {offsets = [0, 16], sizes = [16, 16], strides = [1, 1]} : vector<16x32xf32> to vector<16x16xf32>
    %179 = tpu.transpose %177, [1, 0] : vector<16x16xf32> -> vector<16x16xf32>
    %cst_62 = arith.constant dense<0.000000e+00> : vector<16x16xf32>
    %180 = tpu.matmul %176, %179, %cst_62 {dimension_numbers = #tpu.dot_dimension_numbers<[1], [0], [0], [1], [0, 0, 1, 1], [], []>} : vector<16x16xf32>, vector<16x16xf32>, vector<16x16xf32> -> vector<16x16xf32>
    %181 = vector.shape_cast %176 : vector<16x16xf32> to vector<16x1x16xf32>
    %182 = vector.broadcast %181 : vector<16x1x16xf32> to vector<16x16x16xf32>
    %183 = arith.mulf %182, %3 : vector<16x16x16xf32>
    %cst_63 = arith.constant dense<0.000000e+00> : vector<16x16xf32>
    %184 = vector.multi_reduction <add>, %183, %cst_63 [2] : vector<16x16x16xf32> to vector<16x16xf32>
    %185 = arith.addf %180, %184 : vector<16x16xf32>
    %cst_64 = arith.constant 2.500000e-01 : f32
    %186 = vector.broadcast %cst_64 : f32 to vector<16x16xf32>
    %187 = arith.mulf %185, %186 : vector<16x16xf32>
    %cst_65 = arith.constant dense<0xFF800000> : vector<16xf32>
    %188 = vector.multi_reduction <maximumf>, %187, %cst_65 [1] : vector<16x16xf32> to vector<16xf32>
    %189 = vector.shape_cast %188 : vector<16xf32> to vector<16x1xf32>
    %190 = vector.broadcast %189 : vector<16x1xf32> to vector<16x16xf32>
    %191 = arith.subf %187, %190 : vector<16x16xf32>
    %192 = math.exp %191 : vector<16x16xf32>
    %cst_66 = arith.constant dense<0.000000e+00> : vector<16xf32>
    %193 = vector.multi_reduction <add>, %192, %cst_66 [1] : vector<16x16xf32> to vector<16xf32>
    %194 = vector.shape_cast %193 : vector<16xf32> to vector<16x1xf32>
    %195 = tpu.reciprocal %194 {approx = true} : vector<16x1xf32> -> vector<16x1xf32>
    %196 = vector.broadcast %195 : vector<16x1xf32> to vector<16x16xf32>
    %197 = arith.mulf %192, %196 : vector<16x16xf32>
    %cst_67 = arith.constant dense<0.000000e+00> : vector<16x16xf32>
    %198 = tpu.matmul %197, %178, %cst_67 {dimension_numbers = #tpu.dot_dimension_numbers<[1], [0], [0], [1], [0, 0, 1, 1], [], []>} : vector<16x16xf32>, vector<16x16xf32>, vector<16x16xf32> -> vector<16x16xf32>
    %199 = tpu.concatenate %175, %198 in 1 : vector<16x16xf32>, vector<16x16xf32> -> vector<16x32xf32>
    %200 = vector.extract_strided_slice %143 {offsets = [16, 0], sizes = [16, 32], strides = [1, 1]} : vector<32x32xf32> to vector<16x32xf32>
    %201 = vector.extract_strided_slice %146 {offsets = [16, 0], sizes = [16, 32], strides = [1, 1]} : vector<32x32xf32> to vector<16x32xf32>
    %202 = vector.extract_strided_slice %149 {offsets = [16, 0], sizes = [16, 32], strides = [1, 1]} : vector<32x32xf32> to vector<16x32xf32>
    %203 = vector.extract_strided_slice %200 {offsets = [0, 0], sizes = [16, 16], strides = [1, 1]} : vector<16x32xf32> to vector<16x16xf32>
    %204 = vector.extract_strided_slice %201 {offsets = [0, 0], sizes = [16, 16], strides = [1, 1]} : vector<16x32xf32> to vector<16x16xf32>
    %205 = vector.extract_strided_slice %202 {offsets = [0, 0], sizes = [16, 16], strides = [1, 1]} : vector<16x32xf32> to vector<16x16xf32>
    %206 = tpu.transpose %204, [1, 0] : vector<16x16xf32> -> vector<16x16xf32>
    %cst_68 = arith.constant dense<0.000000e+00> : vector<16x16xf32>
    %207 = tpu.matmul %203, %206, %cst_68 {dimension_numbers = #tpu.dot_dimension_numbers<[1], [0], [0], [1], [0, 0, 1, 1], [], []>} : vector<16x16xf32>, vector<16x16xf32>, vector<16x16xf32> -> vector<16x16xf32>
    %208 = vector.shape_cast %203 : vector<16x16xf32> to vector<16x1x16xf32>
    %209 = vector.broadcast %208 : vector<16x1x16xf32> to vector<16x16x16xf32>
    %210 = arith.mulf %209, %3 : vector<16x16x16xf32>
    %cst_69 = arith.constant dense<0.000000e+00> : vector<16x16xf32>
    %211 = vector.multi_reduction <add>, %210, %cst_69 [2] : vector<16x16x16xf32> to vector<16x16xf32>
    %212 = arith.addf %207, %211 : vector<16x16xf32>
    %cst_70 = arith.constant 2.500000e-01 : f32
    %213 = vector.broadcast %cst_70 : f32 to vector<16x16xf32>
    %214 = arith.mulf %212, %213 : vector<16x16xf32>
    %cst_71 = arith.constant dense<0xFF800000> : vector<16xf32>
    %215 = vector.multi_reduction <maximumf>, %214, %cst_71 [1] : vector<16x16xf32> to vector<16xf32>
    %216 = vector.shape_cast %215 : vector<16xf32> to vector<16x1xf32>
    %217 = vector.broadcast %216 : vector<16x1xf32> to vector<16x16xf32>
    %218 = arith.subf %214, %217 : vector<16x16xf32>
    %219 = math.exp %218 : vector<16x16xf32>
    %cst_72 = arith.constant dense<0.000000e+00> : vector<16xf32>
    %220 = vector.multi_reduction <add>, %219, %cst_72 [1] : vector<16x16xf32> to vector<16xf32>
    %221 = vector.shape_cast %220 : vector<16xf32> to vector<16x1xf32>
    %222 = tpu.reciprocal %221 {approx = true} : vector<16x1xf32> -> vector<16x1xf32>
    %223 = vector.broadcast %222 : vector<16x1xf32> to vector<16x16xf32>
    %224 = arith.mulf %219, %223 : vector<16x16xf32>
    %cst_73 = arith.constant dense<0.000000e+00> : vector<16x16xf32>
    %225 = tpu.matmul %224, %205, %cst_73 {dimension_numbers = #tpu.dot_dimension_numbers<[1], [0], [0], [1], [0, 0, 1, 1], [], []>} : vector<16x16xf32>, vector<16x16xf32>, vector<16x16xf32> -> vector<16x16xf32>
    %226 = vector.extract_strided_slice %200 {offsets = [0, 16], sizes = [16, 16], strides = [1, 1]} : vector<16x32xf32> to vector<16x16xf32>
    %227 = vector.extract_strided_slice %201 {offsets = [0, 16], sizes = [16, 16], strides = [1, 1]} : vector<16x32xf32> to vector<16x16xf32>
    %228 = vector.extract_strided_slice %202 {offsets = [0, 16], sizes = [16, 16], strides = [1, 1]} : vector<16x32xf32> to vector<16x16xf32>
    %229 = tpu.transpose %227, [1, 0] : vector<16x16xf32> -> vector<16x16xf32>
    %cst_74 = arith.constant dense<0.000000e+00> : vector<16x16xf32>
    %230 = tpu.matmul %226, %229, %cst_74 {dimension_numbers = #tpu.dot_dimension_numbers<[1], [0], [0], [1], [0, 0, 1, 1], [], []>} : vector<16x16xf32>, vector<16x16xf32>, vector<16x16xf32> -> vector<16x16xf32>
    %231 = vector.shape_cast %226 : vector<16x16xf32> to vector<16x1x16xf32>
    %232 = vector.broadcast %231 : vector<16x1x16xf32> to vector<16x16x16xf32>
    %233 = arith.mulf %232, %3 : vector<16x16x16xf32>
    %cst_75 = arith.constant dense<0.000000e+00> : vector<16x16xf32>
    %234 = vector.multi_reduction <add>, %233, %cst_75 [2] : vector<16x16x16xf32> to vector<16x16xf32>
    %235 = arith.addf %230, %234 : vector<16x16xf32>
    %cst_76 = arith.constant 2.500000e-01 : f32
    %236 = vector.broadcast %cst_76 : f32 to vector<16x16xf32>
    %237 = arith.mulf %235, %236 : vector<16x16xf32>
    %cst_77 = arith.constant dense<0xFF800000> : vector<16xf32>
    %238 = vector.multi_reduction <maximumf>, %237, %cst_77 [1] : vector<16x16xf32> to vector<16xf32>
    %239 = vector.shape_cast %238 : vector<16xf32> to vector<16x1xf32>
    %240 = vector.broadcast %239 : vector<16x1xf32> to vector<16x16xf32>
    %241 = arith.subf %237, %240 : vector<16x16xf32>
    %242 = math.exp %241 : vector<16x16xf32>
    %cst_78 = arith.constant dense<0.000000e+00> : vector<16xf32>
    %243 = vector.multi_reduction <add>, %242, %cst_78 [1] : vector<16x16xf32> to vector<16xf32>
    %244 = vector.shape_cast %243 : vector<16xf32> to vector<16x1xf32>
    %245 = tpu.reciprocal %244 {approx = true} : vector<16x1xf32> -> vector<16x1xf32>
    %246 = vector.broadcast %245 : vector<16x1xf32> to vector<16x16xf32>
    %247 = arith.mulf %242, %246 : vector<16x16xf32>
    %cst_79 = arith.constant dense<0.000000e+00> : vector<16x16xf32>
    %248 = tpu.matmul %247, %228, %cst_79 {dimension_numbers = #tpu.dot_dimension_numbers<[1], [0], [0], [1], [0, 0, 1, 1], [], []>} : vector<16x16xf32>, vector<16x16xf32>, vector<16x16xf32> -> vector<16x16xf32>
    %249 = tpu.concatenate %225, %248 in 1 : vector<16x16xf32>, vector<16x16xf32> -> vector<16x32xf32>
    %250 = tpu.concatenate %199, %249 in 0 : vector<16x32xf32>, vector<16x32xf32> -> vector<32x32xf32>
    %cst_80 = arith.constant dense<0.000000e+00> : vector<32x32xf32>
    %251 = tpu.matmul %250, %117, %cst_80 {dimension_numbers = #tpu.dot_dimension_numbers<[1], [0], [0], [1], [0, 0, 1, 1], [], []>} : vector<32x32xf32>, vector<32x32xf32>, vector<32x32xf32> -> vector<32x32xf32>
    %252 = arith.addf %110, %251 : vector<32x32xf32>
    %253 = vector.broadcast %118 : vector<1x32xf32> to vector<32x32xf32>
    %254 = arith.addf %252, %253 : vector<32x32xf32>
    %c0_81 = arith.constant 0 : index
    %c0_82 = arith.constant 0 : index
    %255 = vector.load %arg22[%c0_81, %c0_82] : memref<32x64xf32, #tpu.memory_space<vmem>>, vector<32x64xf32>
    %c0_83 = arith.constant 0 : index
    %c0_84 = arith.constant 0 : index
    %256 = vector.load %arg23[%c0_83, %c0_84] : memref<1x64xf32, #tpu.memory_space<vmem>>, vector<1x64xf32>
    %c0_85 = arith.constant 0 : index
    %c0_86 = arith.constant 0 : index
    %257 = vector.load %arg24[%c0_85, %c0_86] : memref<64x32xf32, #tpu.memory_space<vmem>>, vector<64x32xf32>
    %c0_87 = arith.constant 0 : index
    %c0_88 = arith.constant 0 : index
    %258 = vector.load %arg25[%c0_87, %c0_88] : memref<1x32xf32, #tpu.memory_space<vmem>>, vector<1x32xf32>
    %c0_89 = arith.constant 0 : index
    %c0_90 = arith.constant 0 : index
    %259 = vector.load %arg26[%c0_89, %c0_90] : memref<1x32xf32, #tpu.memory_space<vmem>>, vector<1x32xf32>
    %c0_91 = arith.constant 0 : index
    %c0_92 = arith.constant 0 : index
    %260 = vector.load %arg27[%c0_91, %c0_92] : memref<1x32xf32, #tpu.memory_space<vmem>>, vector<1x32xf32>
    %cst_93 = arith.constant dense<0.000000e+00> : vector<32xf32>
    %261 = vector.multi_reduction <add>, %254, %cst_93 [1] : vector<32x32xf32> to vector<32xf32>
    %262 = vector.shape_cast %261 : vector<32xf32> to vector<32x1xf32>
    %cst_94 = arith.constant 3.200000e+01 : f32
    %263 = vector.broadcast %cst_94 : f32 to vector<32x1xf32>
    %264 = arith.divf %262, %263 : vector<32x1xf32>
    %265 = vector.broadcast %264 : vector<32x1xf32> to vector<32x32xf32>
    %266 = arith.subf %254, %265 : vector<32x32xf32>
    %267 = arith.mulf %266, %266 : vector<32x32xf32>
    %cst_95 = arith.constant dense<0.000000e+00> : vector<32xf32>
    %268 = vector.multi_reduction <add>, %267, %cst_95 [1] : vector<32x32xf32> to vector<32xf32>
    %269 = vector.shape_cast %268 : vector<32xf32> to vector<32x1xf32>
    %cst_96 = arith.constant 3.200000e+01 : f32
    %270 = vector.broadcast %cst_96 : f32 to vector<32x1xf32>
    %271 = arith.divf %269, %270 : vector<32x1xf32>
    %cst_97 = arith.constant 9.99999974E-6 : f32
    %272 = vector.broadcast %cst_97 : f32 to vector<32x1xf32>
    %273 = arith.addf %271, %272 : vector<32x1xf32>
    %274 = math.rsqrt %273 : vector<32x1xf32>
    %275 = vector.broadcast %274 : vector<32x1xf32> to vector<32x32xf32>
    %276 = arith.mulf %266, %275 : vector<32x32xf32>
    %277 = vector.broadcast %259 : vector<1x32xf32> to vector<32x32xf32>
    %278 = arith.mulf %276, %277 : vector<32x32xf32>
    %279 = vector.broadcast %260 : vector<1x32xf32> to vector<32x32xf32>
    %280 = arith.addf %278, %279 : vector<32x32xf32>
    %cst_98 = arith.constant dense<0.000000e+00> : vector<32x64xf32>
    %281 = tpu.matmul %280, %255, %cst_98 {dimension_numbers = #tpu.dot_dimension_numbers<[1], [0], [0], [1], [0, 0, 1, 1], [], []>} : vector<32x32xf32>, vector<32x64xf32>, vector<32x64xf32> -> vector<32x64xf32>
    %282 = vector.broadcast %256 : vector<1x64xf32> to vector<32x64xf32>
    %283 = arith.addf %281, %282 : vector<32x64xf32>
    %cst_99 = arith.constant 0.000000e+00 : f32
    %284 = vector.broadcast %cst_99 : f32 to vector<32x64xf32>
    %285 = arith.maximumf %283, %284 : vector<32x64xf32>
    %cst_100 = arith.constant dense<0.000000e+00> : vector<32x32xf32>
    %286 = tpu.matmul %285, %257, %cst_100 {dimension_numbers = #tpu.dot_dimension_numbers<[1], [0], [0], [1], [0, 0, 1, 1], [], []>} : vector<32x64xf32>, vector<64x32xf32>, vector<32x32xf32> -> vector<32x32xf32>
    %287 = arith.addf %254, %286 : vector<32x32xf32>
    %288 = vector.broadcast %258 : vector<1x32xf32> to vector<32x32xf32>
    %289 = arith.addf %287, %288 : vector<32x32xf32>
    %c0_101 = arith.constant 0 : index
    %c0_102 = arith.constant 0 : index
    %290 = vector.load %arg28[%c0_101, %c0_102] : memref<32x32xf32, #tpu.memory_space<vmem>>, vector<32x32xf32>
    %c0_103 = arith.constant 0 : index
    %c0_104 = arith.constant 0 : index
    %291 = vector.load %arg29[%c0_103, %c0_104] : memref<1x32xf32, #tpu.memory_space<vmem>>, vector<1x32xf32>
    %c0_105 = arith.constant 0 : index
    %c0_106 = arith.constant 0 : index
    %292 = vector.load %arg30[%c0_105, %c0_106] : memref<32x32xf32, #tpu.memory_space<vmem>>, vector<32x32xf32>
    %c0_107 = arith.constant 0 : index
    %c0_108 = arith.constant 0 : index
    %293 = vector.load %arg31[%c0_107, %c0_108] : memref<1x32xf32, #tpu.memory_space<vmem>>, vector<1x32xf32>
    %c0_109 = arith.constant 0 : index
    %c0_110 = arith.constant 0 : index
    %294 = vector.load %arg32[%c0_109, %c0_110] : memref<32x32xf32, #tpu.memory_space<vmem>>, vector<32x32xf32>
    %c0_111 = arith.constant 0 : index
    %c0_112 = arith.constant 0 : index
    %295 = vector.load %arg33[%c0_111, %c0_112] : memref<1x32xf32, #tpu.memory_space<vmem>>, vector<1x32xf32>
    %c0_113 = arith.constant 0 : index
    %c0_114 = arith.constant 0 : index
    %296 = vector.load %arg34[%c0_113, %c0_114] : memref<32x32xf32, #tpu.memory_space<vmem>>, vector<32x32xf32>
    %c0_115 = arith.constant 0 : index
    %c0_116 = arith.constant 0 : index
    %297 = vector.load %arg35[%c0_115, %c0_116] : memref<1x32xf32, #tpu.memory_space<vmem>>, vector<1x32xf32>
    %c0_117 = arith.constant 0 : index
    %c0_118 = arith.constant 0 : index
    %298 = vector.load %arg36[%c0_117, %c0_118] : memref<1x32xf32, #tpu.memory_space<vmem>>, vector<1x32xf32>
    %c0_119 = arith.constant 0 : index
    %c0_120 = arith.constant 0 : index
    %299 = vector.load %arg37[%c0_119, %c0_120] : memref<1x32xf32, #tpu.memory_space<vmem>>, vector<1x32xf32>
    %cst_121 = arith.constant dense<0.000000e+00> : vector<32xf32>
    %300 = vector.multi_reduction <add>, %289, %cst_121 [1] : vector<32x32xf32> to vector<32xf32>
    %301 = vector.shape_cast %300 : vector<32xf32> to vector<32x1xf32>
    %cst_122 = arith.constant 3.200000e+01 : f32
    %302 = vector.broadcast %cst_122 : f32 to vector<32x1xf32>
    %303 = arith.divf %301, %302 : vector<32x1xf32>
    %304 = vector.broadcast %303 : vector<32x1xf32> to vector<32x32xf32>
    %305 = arith.subf %289, %304 : vector<32x32xf32>
    %306 = arith.mulf %305, %305 : vector<32x32xf32>
    %cst_123 = arith.constant dense<0.000000e+00> : vector<32xf32>
    %307 = vector.multi_reduction <add>, %306, %cst_123 [1] : vector<32x32xf32> to vector<32xf32>
    %308 = vector.shape_cast %307 : vector<32xf32> to vector<32x1xf32>
    %cst_124 = arith.constant 3.200000e+01 : f32
    %309 = vector.broadcast %cst_124 : f32 to vector<32x1xf32>
    %310 = arith.divf %308, %309 : vector<32x1xf32>
    %cst_125 = arith.constant 9.99999974E-6 : f32
    %311 = vector.broadcast %cst_125 : f32 to vector<32x1xf32>
    %312 = arith.addf %310, %311 : vector<32x1xf32>
    %313 = math.rsqrt %312 : vector<32x1xf32>
    %314 = vector.broadcast %313 : vector<32x1xf32> to vector<32x32xf32>
    %315 = arith.mulf %305, %314 : vector<32x32xf32>
    %316 = vector.broadcast %298 : vector<1x32xf32> to vector<32x32xf32>
    %317 = arith.mulf %315, %316 : vector<32x32xf32>
    %318 = vector.broadcast %299 : vector<1x32xf32> to vector<32x32xf32>
    %319 = arith.addf %317, %318 : vector<32x32xf32>
    %cst_126 = arith.constant dense<0.000000e+00> : vector<32x32xf32>
    %320 = tpu.matmul %319, %290, %cst_126 {dimension_numbers = #tpu.dot_dimension_numbers<[1], [0], [0], [1], [0, 0, 1, 1], [], []>} : vector<32x32xf32>, vector<32x32xf32>, vector<32x32xf32> -> vector<32x32xf32>
    %321 = vector.broadcast %291 : vector<1x32xf32> to vector<32x32xf32>
    %322 = arith.addf %320, %321 : vector<32x32xf32>
    %cst_127 = arith.constant dense<0.000000e+00> : vector<32x32xf32>
    %323 = tpu.matmul %319, %292, %cst_127 {dimension_numbers = #tpu.dot_dimension_numbers<[1], [0], [0], [1], [0, 0, 1, 1], [], []>} : vector<32x32xf32>, vector<32x32xf32>, vector<32x32xf32> -> vector<32x32xf32>
    %324 = vector.broadcast %293 : vector<1x32xf32> to vector<32x32xf32>
    %325 = arith.addf %323, %324 : vector<32x32xf32>
    %cst_128 = arith.constant dense<0.000000e+00> : vector<32x32xf32>
    %326 = tpu.matmul %319, %294, %cst_128 {dimension_numbers = #tpu.dot_dimension_numbers<[1], [0], [0], [1], [0, 0, 1, 1], [], []>} : vector<32x32xf32>, vector<32x32xf32>, vector<32x32xf32> -> vector<32x32xf32>
    %327 = vector.broadcast %295 : vector<1x32xf32> to vector<32x32xf32>
    %328 = arith.addf %326, %327 : vector<32x32xf32>
    %329 = vector.extract_strided_slice %322 {offsets = [0, 0], sizes = [16, 32], strides = [1, 1]} : vector<32x32xf32> to vector<16x32xf32>
    %330 = vector.extract_strided_slice %325 {offsets = [0, 0], sizes = [16, 32], strides = [1, 1]} : vector<32x32xf32> to vector<16x32xf32>
    %331 = vector.extract_strided_slice %328 {offsets = [0, 0], sizes = [16, 32], strides = [1, 1]} : vector<32x32xf32> to vector<16x32xf32>
    %332 = vector.extract_strided_slice %329 {offsets = [0, 0], sizes = [16, 16], strides = [1, 1]} : vector<16x32xf32> to vector<16x16xf32>
    %333 = vector.extract_strided_slice %330 {offsets = [0, 0], sizes = [16, 16], strides = [1, 1]} : vector<16x32xf32> to vector<16x16xf32>
    %334 = vector.extract_strided_slice %331 {offsets = [0, 0], sizes = [16, 16], strides = [1, 1]} : vector<16x32xf32> to vector<16x16xf32>
    %335 = tpu.transpose %333, [1, 0] : vector<16x16xf32> -> vector<16x16xf32>
    %cst_129 = arith.constant dense<0.000000e+00> : vector<16x16xf32>
    %336 = tpu.matmul %332, %335, %cst_129 {dimension_numbers = #tpu.dot_dimension_numbers<[1], [0], [0], [1], [0, 0, 1, 1], [], []>} : vector<16x16xf32>, vector<16x16xf32>, vector<16x16xf32> -> vector<16x16xf32>
    %337 = vector.shape_cast %332 : vector<16x16xf32> to vector<16x1x16xf32>
    %338 = vector.broadcast %337 : vector<16x1x16xf32> to vector<16x16x16xf32>
    %339 = arith.mulf %338, %3 : vector<16x16x16xf32>
    %cst_130 = arith.constant dense<0.000000e+00> : vector<16x16xf32>
    %340 = vector.multi_reduction <add>, %339, %cst_130 [2] : vector<16x16x16xf32> to vector<16x16xf32>
    %341 = arith.addf %336, %340 : vector<16x16xf32>
    %cst_131 = arith.constant 2.500000e-01 : f32
    %342 = vector.broadcast %cst_131 : f32 to vector<16x16xf32>
    %343 = arith.mulf %341, %342 : vector<16x16xf32>
    %cst_132 = arith.constant dense<0xFF800000> : vector<16xf32>
    %344 = vector.multi_reduction <maximumf>, %343, %cst_132 [1] : vector<16x16xf32> to vector<16xf32>
    %345 = vector.shape_cast %344 : vector<16xf32> to vector<16x1xf32>
    %346 = vector.broadcast %345 : vector<16x1xf32> to vector<16x16xf32>
    %347 = arith.subf %343, %346 : vector<16x16xf32>
    %348 = math.exp %347 : vector<16x16xf32>
    %cst_133 = arith.constant dense<0.000000e+00> : vector<16xf32>
    %349 = vector.multi_reduction <add>, %348, %cst_133 [1] : vector<16x16xf32> to vector<16xf32>
    %350 = vector.shape_cast %349 : vector<16xf32> to vector<16x1xf32>
    %351 = tpu.reciprocal %350 {approx = true} : vector<16x1xf32> -> vector<16x1xf32>
    %352 = vector.broadcast %351 : vector<16x1xf32> to vector<16x16xf32>
    %353 = arith.mulf %348, %352 : vector<16x16xf32>
    %cst_134 = arith.constant dense<0.000000e+00> : vector<16x16xf32>
    %354 = tpu.matmul %353, %334, %cst_134 {dimension_numbers = #tpu.dot_dimension_numbers<[1], [0], [0], [1], [0, 0, 1, 1], [], []>} : vector<16x16xf32>, vector<16x16xf32>, vector<16x16xf32> -> vector<16x16xf32>
    %355 = vector.extract_strided_slice %329 {offsets = [0, 16], sizes = [16, 16], strides = [1, 1]} : vector<16x32xf32> to vector<16x16xf32>
    %356 = vector.extract_strided_slice %330 {offsets = [0, 16], sizes = [16, 16], strides = [1, 1]} : vector<16x32xf32> to vector<16x16xf32>
    %357 = vector.extract_strided_slice %331 {offsets = [0, 16], sizes = [16, 16], strides = [1, 1]} : vector<16x32xf32> to vector<16x16xf32>
    %358 = tpu.transpose %356, [1, 0] : vector<16x16xf32> -> vector<16x16xf32>
    %cst_135 = arith.constant dense<0.000000e+00> : vector<16x16xf32>
    %359 = tpu.matmul %355, %358, %cst_135 {dimension_numbers = #tpu.dot_dimension_numbers<[1], [0], [0], [1], [0, 0, 1, 1], [], []>} : vector<16x16xf32>, vector<16x16xf32>, vector<16x16xf32> -> vector<16x16xf32>
    %360 = vector.shape_cast %355 : vector<16x16xf32> to vector<16x1x16xf32>
    %361 = vector.broadcast %360 : vector<16x1x16xf32> to vector<16x16x16xf32>
    %362 = arith.mulf %361, %3 : vector<16x16x16xf32>
    %cst_136 = arith.constant dense<0.000000e+00> : vector<16x16xf32>
    %363 = vector.multi_reduction <add>, %362, %cst_136 [2] : vector<16x16x16xf32> to vector<16x16xf32>
    %364 = arith.addf %359, %363 : vector<16x16xf32>
    %cst_137 = arith.constant 2.500000e-01 : f32
    %365 = vector.broadcast %cst_137 : f32 to vector<16x16xf32>
    %366 = arith.mulf %364, %365 : vector<16x16xf32>
    %cst_138 = arith.constant dense<0xFF800000> : vector<16xf32>
    %367 = vector.multi_reduction <maximumf>, %366, %cst_138 [1] : vector<16x16xf32> to vector<16xf32>
    %368 = vector.shape_cast %367 : vector<16xf32> to vector<16x1xf32>
    %369 = vector.broadcast %368 : vector<16x1xf32> to vector<16x16xf32>
    %370 = arith.subf %366, %369 : vector<16x16xf32>
    %371 = math.exp %370 : vector<16x16xf32>
    %cst_139 = arith.constant dense<0.000000e+00> : vector<16xf32>
    %372 = vector.multi_reduction <add>, %371, %cst_139 [1] : vector<16x16xf32> to vector<16xf32>
    %373 = vector.shape_cast %372 : vector<16xf32> to vector<16x1xf32>
    %374 = tpu.reciprocal %373 {approx = true} : vector<16x1xf32> -> vector<16x1xf32>
    %375 = vector.broadcast %374 : vector<16x1xf32> to vector<16x16xf32>
    %376 = arith.mulf %371, %375 : vector<16x16xf32>
    %cst_140 = arith.constant dense<0.000000e+00> : vector<16x16xf32>
    %377 = tpu.matmul %376, %357, %cst_140 {dimension_numbers = #tpu.dot_dimension_numbers<[1], [0], [0], [1], [0, 0, 1, 1], [], []>} : vector<16x16xf32>, vector<16x16xf32>, vector<16x16xf32> -> vector<16x16xf32>
    %378 = tpu.concatenate %354, %377 in 1 : vector<16x16xf32>, vector<16x16xf32> -> vector<16x32xf32>
    %379 = vector.extract_strided_slice %322 {offsets = [16, 0], sizes = [16, 32], strides = [1, 1]} : vector<32x32xf32> to vector<16x32xf32>
    %380 = vector.extract_strided_slice %325 {offsets = [16, 0], sizes = [16, 32], strides = [1, 1]} : vector<32x32xf32> to vector<16x32xf32>
    %381 = vector.extract_strided_slice %328 {offsets = [16, 0], sizes = [16, 32], strides = [1, 1]} : vector<32x32xf32> to vector<16x32xf32>
    %382 = vector.extract_strided_slice %379 {offsets = [0, 0], sizes = [16, 16], strides = [1, 1]} : vector<16x32xf32> to vector<16x16xf32>
    %383 = vector.extract_strided_slice %380 {offsets = [0, 0], sizes = [16, 16], strides = [1, 1]} : vector<16x32xf32> to vector<16x16xf32>
    %384 = vector.extract_strided_slice %381 {offsets = [0, 0], sizes = [16, 16], strides = [1, 1]} : vector<16x32xf32> to vector<16x16xf32>
    %385 = tpu.transpose %383, [1, 0] : vector<16x16xf32> -> vector<16x16xf32>
    %cst_141 = arith.constant dense<0.000000e+00> : vector<16x16xf32>
    %386 = tpu.matmul %382, %385, %cst_141 {dimension_numbers = #tpu.dot_dimension_numbers<[1], [0], [0], [1], [0, 0, 1, 1], [], []>} : vector<16x16xf32>, vector<16x16xf32>, vector<16x16xf32> -> vector<16x16xf32>
    %387 = vector.shape_cast %382 : vector<16x16xf32> to vector<16x1x16xf32>
    %388 = vector.broadcast %387 : vector<16x1x16xf32> to vector<16x16x16xf32>
    %389 = arith.mulf %388, %3 : vector<16x16x16xf32>
    %cst_142 = arith.constant dense<0.000000e+00> : vector<16x16xf32>
    %390 = vector.multi_reduction <add>, %389, %cst_142 [2] : vector<16x16x16xf32> to vector<16x16xf32>
    %391 = arith.addf %386, %390 : vector<16x16xf32>
    %cst_143 = arith.constant 2.500000e-01 : f32
    %392 = vector.broadcast %cst_143 : f32 to vector<16x16xf32>
    %393 = arith.mulf %391, %392 : vector<16x16xf32>
    %cst_144 = arith.constant dense<0xFF800000> : vector<16xf32>
    %394 = vector.multi_reduction <maximumf>, %393, %cst_144 [1] : vector<16x16xf32> to vector<16xf32>
    %395 = vector.shape_cast %394 : vector<16xf32> to vector<16x1xf32>
    %396 = vector.broadcast %395 : vector<16x1xf32> to vector<16x16xf32>
    %397 = arith.subf %393, %396 : vector<16x16xf32>
    %398 = math.exp %397 : vector<16x16xf32>
    %cst_145 = arith.constant dense<0.000000e+00> : vector<16xf32>
    %399 = vector.multi_reduction <add>, %398, %cst_145 [1] : vector<16x16xf32> to vector<16xf32>
    %400 = vector.shape_cast %399 : vector<16xf32> to vector<16x1xf32>
    %401 = tpu.reciprocal %400 {approx = true} : vector<16x1xf32> -> vector<16x1xf32>
    %402 = vector.broadcast %401 : vector<16x1xf32> to vector<16x16xf32>
    %403 = arith.mulf %398, %402 : vector<16x16xf32>
    %cst_146 = arith.constant dense<0.000000e+00> : vector<16x16xf32>
    %404 = tpu.matmul %403, %384, %cst_146 {dimension_numbers = #tpu.dot_dimension_numbers<[1], [0], [0], [1], [0, 0, 1, 1], [], []>} : vector<16x16xf32>, vector<16x16xf32>, vector<16x16xf32> -> vector<16x16xf32>
    %405 = vector.extract_strided_slice %379 {offsets = [0, 16], sizes = [16, 16], strides = [1, 1]} : vector<16x32xf32> to vector<16x16xf32>
    %406 = vector.extract_strided_slice %380 {offsets = [0, 16], sizes = [16, 16], strides = [1, 1]} : vector<16x32xf32> to vector<16x16xf32>
    %407 = vector.extract_strided_slice %381 {offsets = [0, 16], sizes = [16, 16], strides = [1, 1]} : vector<16x32xf32> to vector<16x16xf32>
    %408 = tpu.transpose %406, [1, 0] : vector<16x16xf32> -> vector<16x16xf32>
    %cst_147 = arith.constant dense<0.000000e+00> : vector<16x16xf32>
    %409 = tpu.matmul %405, %408, %cst_147 {dimension_numbers = #tpu.dot_dimension_numbers<[1], [0], [0], [1], [0, 0, 1, 1], [], []>} : vector<16x16xf32>, vector<16x16xf32>, vector<16x16xf32> -> vector<16x16xf32>
    %410 = vector.shape_cast %405 : vector<16x16xf32> to vector<16x1x16xf32>
    %411 = vector.broadcast %410 : vector<16x1x16xf32> to vector<16x16x16xf32>
    %412 = arith.mulf %411, %3 : vector<16x16x16xf32>
    %cst_148 = arith.constant dense<0.000000e+00> : vector<16x16xf32>
    %413 = vector.multi_reduction <add>, %412, %cst_148 [2] : vector<16x16x16xf32> to vector<16x16xf32>
    %414 = arith.addf %409, %413 : vector<16x16xf32>
    %cst_149 = arith.constant 2.500000e-01 : f32
    %415 = vector.broadcast %cst_149 : f32 to vector<16x16xf32>
    %416 = arith.mulf %414, %415 : vector<16x16xf32>
    %cst_150 = arith.constant dense<0xFF800000> : vector<16xf32>
    %417 = vector.multi_reduction <maximumf>, %416, %cst_150 [1] : vector<16x16xf32> to vector<16xf32>
    %418 = vector.shape_cast %417 : vector<16xf32> to vector<16x1xf32>
    %419 = vector.broadcast %418 : vector<16x1xf32> to vector<16x16xf32>
    %420 = arith.subf %416, %419 : vector<16x16xf32>
    %421 = math.exp %420 : vector<16x16xf32>
    %cst_151 = arith.constant dense<0.000000e+00> : vector<16xf32>
    %422 = vector.multi_reduction <add>, %421, %cst_151 [1] : vector<16x16xf32> to vector<16xf32>
    %423 = vector.shape_cast %422 : vector<16xf32> to vector<16x1xf32>
    %424 = tpu.reciprocal %423 {approx = true} : vector<16x1xf32> -> vector<16x1xf32>
    %425 = vector.broadcast %424 : vector<16x1xf32> to vector<16x16xf32>
    %426 = arith.mulf %421, %425 : vector<16x16xf32>
    %cst_152 = arith.constant dense<0.000000e+00> : vector<16x16xf32>
    %427 = tpu.matmul %426, %407, %cst_152 {dimension_numbers = #tpu.dot_dimension_numbers<[1], [0], [0], [1], [0, 0, 1, 1], [], []>} : vector<16x16xf32>, vector<16x16xf32>, vector<16x16xf32> -> vector<16x16xf32>
    %428 = tpu.concatenate %404, %427 in 1 : vector<16x16xf32>, vector<16x16xf32> -> vector<16x32xf32>
    %429 = tpu.concatenate %378, %428 in 0 : vector<16x32xf32>, vector<16x32xf32> -> vector<32x32xf32>
    %cst_153 = arith.constant dense<0.000000e+00> : vector<32x32xf32>
    %430 = tpu.matmul %429, %296, %cst_153 {dimension_numbers = #tpu.dot_dimension_numbers<[1], [0], [0], [1], [0, 0, 1, 1], [], []>} : vector<32x32xf32>, vector<32x32xf32>, vector<32x32xf32> -> vector<32x32xf32>
    %431 = arith.addf %289, %430 : vector<32x32xf32>
    %432 = vector.broadcast %297 : vector<1x32xf32> to vector<32x32xf32>
    %433 = arith.addf %431, %432 : vector<32x32xf32>
    %c0_154 = arith.constant 0 : index
    %c0_155 = arith.constant 0 : index
    %434 = vector.load %arg38[%c0_154, %c0_155] : memref<32x64xf32, #tpu.memory_space<vmem>>, vector<32x64xf32>
    %c0_156 = arith.constant 0 : index
    %c0_157 = arith.constant 0 : index
    %435 = vector.load %arg39[%c0_156, %c0_157] : memref<1x64xf32, #tpu.memory_space<vmem>>, vector<1x64xf32>
    %c0_158 = arith.constant 0 : index
    %c0_159 = arith.constant 0 : index
    %436 = vector.load %arg40[%c0_158, %c0_159] : memref<64x32xf32, #tpu.memory_space<vmem>>, vector<64x32xf32>
    %c0_160 = arith.constant 0 : index
    %c0_161 = arith.constant 0 : index
    %437 = vector.load %arg41[%c0_160, %c0_161] : memref<1x32xf32, #tpu.memory_space<vmem>>, vector<1x32xf32>
    %c0_162 = arith.constant 0 : index
    %c0_163 = arith.constant 0 : index
    %438 = vector.load %arg42[%c0_162, %c0_163] : memref<1x32xf32, #tpu.memory_space<vmem>>, vector<1x32xf32>
    %c0_164 = arith.constant 0 : index
    %c0_165 = arith.constant 0 : index
    %439 = vector.load %arg43[%c0_164, %c0_165] : memref<1x32xf32, #tpu.memory_space<vmem>>, vector<1x32xf32>
    %cst_166 = arith.constant dense<0.000000e+00> : vector<32xf32>
    %440 = vector.multi_reduction <add>, %433, %cst_166 [1] : vector<32x32xf32> to vector<32xf32>
    %441 = vector.shape_cast %440 : vector<32xf32> to vector<32x1xf32>
    %cst_167 = arith.constant 3.200000e+01 : f32
    %442 = vector.broadcast %cst_167 : f32 to vector<32x1xf32>
    %443 = arith.divf %441, %442 : vector<32x1xf32>
    %444 = vector.broadcast %443 : vector<32x1xf32> to vector<32x32xf32>
    %445 = arith.subf %433, %444 : vector<32x32xf32>
    %446 = arith.mulf %445, %445 : vector<32x32xf32>
    %cst_168 = arith.constant dense<0.000000e+00> : vector<32xf32>
    %447 = vector.multi_reduction <add>, %446, %cst_168 [1] : vector<32x32xf32> to vector<32xf32>
    %448 = vector.shape_cast %447 : vector<32xf32> to vector<32x1xf32>
    %cst_169 = arith.constant 3.200000e+01 : f32
    %449 = vector.broadcast %cst_169 : f32 to vector<32x1xf32>
    %450 = arith.divf %448, %449 : vector<32x1xf32>
    %cst_170 = arith.constant 9.99999974E-6 : f32
    %451 = vector.broadcast %cst_170 : f32 to vector<32x1xf32>
    %452 = arith.addf %450, %451 : vector<32x1xf32>
    %453 = math.rsqrt %452 : vector<32x1xf32>
    %454 = vector.broadcast %453 : vector<32x1xf32> to vector<32x32xf32>
    %455 = arith.mulf %445, %454 : vector<32x32xf32>
    %456 = vector.broadcast %438 : vector<1x32xf32> to vector<32x32xf32>
    %457 = arith.mulf %455, %456 : vector<32x32xf32>
    %458 = vector.broadcast %439 : vector<1x32xf32> to vector<32x32xf32>
    %459 = arith.addf %457, %458 : vector<32x32xf32>
    %cst_171 = arith.constant dense<0.000000e+00> : vector<32x64xf32>
    %460 = tpu.matmul %459, %434, %cst_171 {dimension_numbers = #tpu.dot_dimension_numbers<[1], [0], [0], [1], [0, 0, 1, 1], [], []>} : vector<32x32xf32>, vector<32x64xf32>, vector<32x64xf32> -> vector<32x64xf32>
    %461 = vector.broadcast %435 : vector<1x64xf32> to vector<32x64xf32>
    %462 = arith.addf %460, %461 : vector<32x64xf32>
    %cst_172 = arith.constant 0.000000e+00 : f32
    %463 = vector.broadcast %cst_172 : f32 to vector<32x64xf32>
    %464 = arith.maximumf %462, %463 : vector<32x64xf32>
    %cst_173 = arith.constant dense<0.000000e+00> : vector<32x32xf32>
    %465 = tpu.matmul %464, %436, %cst_173 {dimension_numbers = #tpu.dot_dimension_numbers<[1], [0], [0], [1], [0, 0, 1, 1], [], []>} : vector<32x64xf32>, vector<64x32xf32>, vector<32x32xf32> -> vector<32x32xf32>
    %466 = arith.addf %433, %465 : vector<32x32xf32>
    %467 = vector.broadcast %437 : vector<1x32xf32> to vector<32x32xf32>
    %468 = arith.addf %466, %467 : vector<32x32xf32>
    %c0_174 = arith.constant 0 : index
    %c0_175 = arith.constant 0 : index
    %469 = vector.load %arg44[%c0_174, %c0_175] : memref<1x32xf32, #tpu.memory_space<vmem>>, vector<1x32xf32>
    %c0_176 = arith.constant 0 : index
    %c0_177 = arith.constant 0 : index
    %470 = vector.load %arg45[%c0_176, %c0_177] : memref<1x32xf32, #tpu.memory_space<vmem>>, vector<1x32xf32>
    %cst_178 = arith.constant dense<0.000000e+00> : vector<32xf32>
    %471 = vector.multi_reduction <add>, %468, %cst_178 [1] : vector<32x32xf32> to vector<32xf32>
    %472 = vector.shape_cast %471 : vector<32xf32> to vector<32x1xf32>
    %cst_179 = arith.constant 3.200000e+01 : f32
    %473 = vector.broadcast %cst_179 : f32 to vector<32x1xf32>
    %474 = arith.divf %472, %473 : vector<32x1xf32>
    %475 = vector.broadcast %474 : vector<32x1xf32> to vector<32x32xf32>
    %476 = arith.subf %468, %475 : vector<32x32xf32>
    %477 = arith.mulf %476, %476 : vector<32x32xf32>
    %cst_180 = arith.constant dense<0.000000e+00> : vector<32xf32>
    %478 = vector.multi_reduction <add>, %477, %cst_180 [1] : vector<32x32xf32> to vector<32xf32>
    %479 = vector.shape_cast %478 : vector<32xf32> to vector<32x1xf32>
    %cst_181 = arith.constant 3.200000e+01 : f32
    %480 = vector.broadcast %cst_181 : f32 to vector<32x1xf32>
    %481 = arith.divf %479, %480 : vector<32x1xf32>
    %cst_182 = arith.constant 9.99999974E-6 : f32
    %482 = vector.broadcast %cst_182 : f32 to vector<32x1xf32>
    %483 = arith.addf %481, %482 : vector<32x1xf32>
    %484 = math.rsqrt %483 : vector<32x1xf32>
    %485 = vector.broadcast %484 : vector<32x1xf32> to vector<32x32xf32>
    %486 = arith.mulf %476, %485 : vector<32x32xf32>
    %487 = vector.broadcast %469 : vector<1x32xf32> to vector<32x32xf32>
    %488 = arith.mulf %486, %487 : vector<32x32xf32>
    %489 = vector.broadcast %470 : vector<1x32xf32> to vector<32x32xf32>
    %490 = arith.addf %488, %489 : vector<32x32xf32>
    %c0_183 = arith.constant 0 : index
    %c0_184 = arith.constant 0 : index
    %491 = vector.load %arg46[%c0_183, %c0_184] : memref<32x32xf32, #tpu.memory_space<vmem>>, vector<32x32xf32>
    %c0_185 = arith.constant 0 : index
    %c0_186 = arith.constant 0 : index
    %492 = vector.load %arg47[%c0_185, %c0_186] : memref<1x32xf32, #tpu.memory_space<vmem>>, vector<1x32xf32>
    %c0_187 = arith.constant 0 : index
    %c0_188 = arith.constant 0 : index
    %493 = vector.load %arg48[%c0_187, %c0_188] : memref<1x1xf32, #tpu.memory_space<vmem>>, vector<1x1xf32>
    %c0_189 = arith.constant 0 : index
    %c0_190 = arith.constant 0 : index
    %494 = vector.load %arg49[%c0_189, %c0_190] : memref<32x7xf32, #tpu.memory_space<vmem>>, vector<32x7xf32>
    %c0_191 = arith.constant 0 : index
    %c0_192 = arith.constant 0 : index
    %495 = vector.load %arg50[%c0_191, %c0_192] : memref<1x7xf32, #tpu.memory_space<vmem>>, vector<1x7xf32>
    %cst_193 = arith.constant dense<0.000000e+00> : vector<32x32xf32>
    %496 = tpu.matmul %490, %491, %cst_193 {dimension_numbers = #tpu.dot_dimension_numbers<[1], [0], [0], [1], [0, 0, 1, 1], [], []>} : vector<32x32xf32>, vector<32x32xf32>, vector<32x32xf32> -> vector<32x32xf32>
    %497 = vector.broadcast %492 : vector<1x32xf32> to vector<32x32xf32>
    %498 = arith.addf %496, %497 : vector<32x32xf32>
    %cst_194 = arith.constant 0.000000e+00 : f32
    %499 = vector.broadcast %cst_194 : f32 to vector<32x32xf32>
    %500 = arith.cmpf oge, %498, %499 : vector<32x32xf32>
    %501 = vector.broadcast %493 : vector<1x1xf32> to vector<32x32xf32>
    %502 = arith.mulf %501, %498 : vector<32x32xf32>
    %503 = arith.select %500, %498, %502 : vector<32x32xi1>, vector<32x32xf32>
    %cst_195 = arith.constant dense<0.000000e+00> : vector<32x7xf32>
    %504 = tpu.matmul %503, %494, %cst_195 {dimension_numbers = #tpu.dot_dimension_numbers<[1], [0], [0], [1], [0, 0, 1, 1], [], []>} : vector<32x32xf32>, vector<32x7xf32>, vector<32x7xf32> -> vector<32x7xf32>
    %505 = vector.broadcast %495 : vector<1x7xf32> to vector<32x7xf32>
    %506 = arith.addf %504, %505 : vector<32x7xf32>
    %507 = vector.broadcast %21 : vector<32x1xf32> to vector<32x6xf32>
    %508 = arith.mulf %507, %0 : vector<32x6xf32>
    %cst_196 = arith.constant 1.000000e+00 : f32
    %509 = vector.broadcast %cst_196 : f32 to vector<32x1xf32>
    %510 = arith.subf %509, %21 : vector<32x1xf32>
    %511 = vector.extract_strided_slice %506 {offsets = [0, 0], sizes = [32, 6], strides = [1, 1]} : vector<32x7xf32> to vector<32x6xf32>
    %512 = vector.broadcast %510 : vector<32x1xf32> to vector<32x6xf32>
    %513 = arith.mulf %512, %511 : vector<32x6xf32>
    %514 = arith.addf %508, %513 : vector<32x6xf32>
    %c0_197 = arith.constant 0 : index
    %c0_198 = arith.constant 0 : index
    %515 = vector.load %arg51[%c0_197, %c0_198] : memref<32x6xf32, #tpu.memory_space<vmem>>, vector<32x6xf32>
    tpu.vector_store %arg51[%c0_197, %c0_198], %514 {strides = array<i32>} : memref<32x6xf32, #tpu.memory_space<vmem>>, vector<32x6xf32>,
    %516 = vector.extract_strided_slice %506 {offsets = [0, 6], sizes = [32, 1], strides = [1, 1]} : vector<32x7xf32> to vector<32x1xf32>
    %cst_199 = arith.constant 0.000000e+00 : f32
    %517 = vector.broadcast %cst_199 : f32 to vector<32x1xf32>
    %518 = arith.subf %517, %516 : vector<32x1xf32>
    %519 = math.exp %518 : vector<32x1xf32>
    %cst_200 = arith.constant 1.000000e+00 : f32
    %520 = vector.broadcast %cst_200 : f32 to vector<32x1xf32>
    %521 = arith.addf %520, %519 : vector<32x1xf32>
    %cst_201 = arith.constant 1.000000e+00 : f32
    %522 = vector.broadcast %cst_201 : f32 to vector<32x1xf32>
    %523 = arith.divf %522, %521 : vector<32x1xf32>
    %c0_202 = arith.constant 0 : index
    %c0_203 = arith.constant 0 : index
    %524 = vector.load %arg52[%c0_202, %c0_203] : memref<32x1xf32, #tpu.memory_space<vmem>>, vector<32x1xf32>
    tpu.vector_store %arg52[%c0_202, %c0_203], %523 {strides = array<i32>} : memref<32x1xf32, #tpu.memory_space<vmem>>, vector<32x1xf32>,
    return
  }
}

</mosaic_0001>

<llo_original>
// kernel: keyframenet_forward.1
$region0: #{keyframenet_forward.1}
  #allocation0 [shape = 'u32[]', space=smem, size = 0x4, offset = 0x4, fixed_abs, tag = 'smem constant byte address 0x4 - core index']
  #allocation1 [shape = 'u32[72,128]{1,0:T(1,128)}', space=vmem, size = 0x9000, scoped, tag = 'internal scratch']
  #allocation2 [shape = 'f32[1,1]{1,0:T(1,128)S(1)}', space=vmem, size = 0x200, scoped, tag = 'scoped memory for keyframenet_forward.1']
  #allocation3 [shape = 'f32[1,1]{1,0:T(1,128)S(1)}', space=vmem, size = 0x200, scoped, tag = 'scoped memory for keyframenet_forward.1']
  #allocation4 [shape = 'f32[1,1]{1,0:T(1,128)S(1)}', space=vmem, size = 0x200, scoped, tag = 'scoped memory for keyframenet_forward.1']
  %s0 = inlined_call_operand.smem [shape: u32[53], index: -1, kind: input, shape index: {}]
  %s1 = sld [smem:[%s0]]
  %s2 = scalar_lea.smem %s0, 1
  %s3 = sld [smem:[%s2]]
  %s4 = scalar_lea.smem %s0, 2
  %s5 = sld [smem:[%s4]]
  %s6 = scalar_lea.smem %s0, 3
  %s7 = sld [smem:[%s6]]
  %s8 = scalar_lea.smem %s0, 4
  %s9 = sld [smem:[%s8]]
  %s10 = scalar_lea.smem %s0, 5
  %s11 = sld [smem:[%s10]]
  %s12 = scalar_lea.smem %s0, 6
  %s13 = sld [smem:[%s12]]
  %s14 = scalar_lea.smem %s0, 7
  %s15 = sld [smem:[%s14]]
  %s16 = scalar_lea.smem %s0, 8
  %s17 = sld [smem:[%s16]]
  %s18 = scalar_lea.smem %s0, 9
  %s19 = sld [smem:[%s18]]
  %s20 = scalar_lea.smem %s0, 10
  %s21 = sld [smem:[%s20]]
  %s22 = scalar_lea.smem %s0, 11
  %s23 = sld [smem:[%s22]]
  %s24 = scalar_lea.smem %s0, 12
  %s25 = sld [smem:[%s24]]
  %s26 = scalar_lea.smem %s0, 13
  %s27 = sld [smem:[%s26]]
  %s28 = scalar_lea.smem %s0, 14
  %s29 = sld [smem:[%s28]]
  %s30 = scalar_lea.smem %s0, 15
  %s31 = sld [smem:[%s30]]
  %s32 = scalar_lea.smem %s0, 16
  %s33 = sld [smem:[%s32]]
  %s34 = scalar_lea.smem %s0, 17
  %s35 = sld [smem:[%s34]]
  %s36 = scalar_lea.smem %s0, 18
  %s37 = sld [smem:[%s36]]
  %s38 = scalar_lea.smem %s0, 19
  %s39 = sld [smem:[%s38]]
  %s40 = scalar_lea.smem %s0, 20
  %s41 = sld [smem:[%s40]]
  %s42 = scalar_lea.smem %s0, 21
  %s43 = sld [smem:[%s42]]
  %s44 = scalar_lea.smem %s0, 22
  %s45 = sld [smem:[%s44]]
  %s46 = scalar_lea.smem %s0, 23
  %s47 = sld [smem:[%s46]]
  %s48 = scalar_lea.smem %s0, 24
  %s49 = sld [smem:[%s48]]
  %s50 = scalar_lea.smem %s0, 25
  %s51 = sld [smem:[%s50]]
  %s52 = scalar_lea.smem %s0, 26
  %s53 = sld [smem:[%s52]]
  %s54 = scalar_lea.smem %s0, 27
  %s55 = sld [smem:[%s54]]
  %s56 = scalar_lea.smem %s0, 28
  %s57 = sld [smem:[%s56]]
  %s58 = scalar_lea.smem %s0, 29
  %s59 = sld [smem:[%s58]]
  %s60 = scalar_lea.smem %s0, 30
  %s61 = sld [smem:[%s60]]
  %s62 = scalar_lea.smem %s0, 31
  %s63 = sld [smem:[%s62]]
  %s64 = scalar_lea.smem %s0, 32
  %s65 = sld [smem:[%s64]]
  %s66 = scalar_lea.smem %s0, 33
  %s67 = sld [smem:[%s66]]
  %s68 = scalar_lea.smem %s0, 34
  %s69 = sld [smem:[%s68]]
  %s70 = scalar_lea.smem %s0, 35
  %s71 = sld [smem:[%s70]]
  %s72 = scalar_lea.smem %s0, 36
  %s73 = sld [smem:[%s72]]
  %s74 = scalar_lea.smem %s0, 37
  %s75 = sld [smem:[%s74]]
  %s76 = scalar_lea.smem %s0, 38
  %s77 = sld [smem:[%s76]]
  %s78 = scalar_lea.smem %s0, 39
  %s79 = sld [smem:[%s78]]
  %s80 = scalar_lea.smem %s0, 40
  %s81 = sld [smem:[%s80]]
  %s82 = scalar_lea.smem %s0, 41
  %s83 = sld [smem:[%s82]]
  %s84 = scalar_lea.smem %s0, 42
  %s85 = sld [smem:[%s84]]
  %s86 = scalar_lea.smem %s0, 43
  %s87 = sld [smem:[%s86]]
  %s88 = scalar_lea.smem %s0, 44
  %s89 = sld [smem:[%s88]]
  %s90 = scalar_lea.smem %s0, 45
  %s91 = sld [smem:[%s90]]
  %s92 = scalar_lea.smem %s0, 46
  %s93 = sld [smem:[%s92]]
  %s94 = scalar_lea.smem %s0, 47
  %s95 = sld [smem:[%s94]]
  %s96 = scalar_lea.smem %s0, 48
  %s97 = sld [smem:[%s96]]
  %s98 = scalar_lea.smem %s0, 49
  %s99 = sld [smem:[%s98]]
  %s100 = scalar_lea.smem %s0, 50
  %s101 = sld [smem:[%s100]]
  %s102 = scalar_lea.smem %s0, 51
  %s103 = sld [smem:[%s102]]
  %s104 = scalar_lea.smem %s0, 52
  %s105 = sld [smem:[%s104]]
  %106 = xla_tuple %s103, %s105
  %s107 = sld [smem:[#allocation0]]
  $region222: #{keyframenet_forward.1} parent=0
    _
  %s109 = ssub.s32 1, %s107
  %s110 = scalar_select 0, %s109, %s107
  %v111 = vstv %s17
  %112 = vst [vmem:[#allocation2] sm:$0x1] %v111
  %v113 = vstv %s23
  %114 = vst [vmem:[#allocation3] sm:$0x1] %v113
  %v115 = vstv %s97
  %116 = vst [vmem:[#allocation4] sm:$0x1] %v115
  // Predicated region
  $region2: #{keyframenet_forward.1} parent=0 // pred_check
    _
  $region3: #{keyframenet_forward.1} parent=0 // pred_check_branch
    %118 = sbr.rel (0) target = $region5
  $region4: #{keyframenet_forward.1} parent=0 // pred_region
    _
  $region5: #{keyframenet_forward.1} parent=0 // pred_fallthru
    _
  // Predicated region
  $region6: #{keyframenet_forward.1} parent=0 // pred_check
    _
  $region7: #{keyframenet_forward.1} parent=0 // pred_check_branch
    %120 = sbr.rel (0) target = $region9
  $region8: #{keyframenet_forward.1} parent=0 // pred_region
    _
  $region9: #{keyframenet_forward.1} parent=0 // pred_fallthru
    _
  // Predicated region
  $region10: #{keyframenet_forward.1} parent=0 // pred_check
    _
  $region11: #{keyframenet_forward.1} parent=0 // pred_check_branch
    %122 = sbr.rel (0) target = $region13
  $region12: #{keyframenet_forward.1} parent=0 // pred_region
    _
  $region13: #{keyframenet_forward.1} parent=0 // pred_fallthru
    _
  // Predicated region
  $region14: #{keyframenet_forward.1} parent=0 // pred_check
    _
  $region15: #{keyframenet_forward.1} parent=0 // pred_check_branch
    %124 = sbr.rel (0) target = $region17
  $region16: #{keyframenet_forward.1} parent=0 // pred_region
    _
  $region17: #{keyframenet_forward.1} parent=0 // pred_fallthru
    _
  // Predicated region
  $region18: #{keyframenet_forward.1} parent=0 // pred_check
    _
  $region19: #{keyframenet_forward.1} parent=0 // pred_check_branch
    %126 = sbr.rel (0) target = $region21
  $region20: #{keyframenet_forward.1} parent=0 // pred_region
    _
  $region21: #{keyframenet_forward.1} parent=0 // pred_fallthru
    _
  // Predicated region
  $region22: #{keyframenet_forward.1} parent=0 // pred_check
    _
  $region23: #{keyframenet_forward.1} parent=0 // pred_check_branch
    %128 = sbr.rel (0) target = $region25
  $region24: #{keyframenet_forward.1} parent=0 // pred_region
    _
  $region25: #{keyframenet_forward.1} parent=0 // pred_fallthru
    _
  // Predicated region
  $region26: #{keyframenet_forward.1} parent=0 // pred_check
    _
  $region27: #{keyframenet_forward.1} parent=0 // pred_check_branch
    %130 = sbr.rel (0) target = $region29
  $region28: #{keyframenet_forward.1} parent=0 // pred_region
    _
  $region29: #{keyframenet_forward.1} parent=0 // pred_fallthru
    _
  // Predicated region
  $region30: #{keyframenet_forward.1} parent=0 // pred_check
    _
  $region31: #{keyframenet_forward.1} parent=0 // pred_check_branch
    %132 = sbr.rel (0) target = $region33
  $region32: #{keyframenet_forward.1} parent=0 // pred_region
    _
  $region33: #{keyframenet_forward.1} parent=0 // pred_fallthru
    _
  // Predicated region
  $region34: #{keyframenet_forward.1} parent=0 // pred_check
    _
  $region35: #{keyframenet_forward.1} parent=0 // pred_check_branch
    %134 = sbr.rel (0) target = $region37
  $region36: #{keyframenet_forward.1} parent=0 // pred_region
    _
  $region37: #{keyframenet_forward.1} parent=0 // pred_fallthru
    _
  // Predicated region
  $region38: #{keyframenet_forward.1} parent=0 // pred_check
    _
  $region39: #{keyframenet_forward.1} parent=0 // pred_check_branch
    %136 = sbr.rel (0) target = $region41
  $region40: #{keyframenet_forward.1} parent=0 // pred_region
    _
  $region41: #{keyframenet_forward.1} parent=0 // pred_fallthru
    _
  // Predicated region
  $region42: #{keyframenet_forward.1} parent=0 // pred_check
    _
  $region43: #{keyframenet_forward.1} parent=0 // pred_check_branch
    %138 = sbr.rel (0) target = $region45
  $region44: #{keyframenet_forward.1} parent=0 // pred_region
    _
  $region45: #{keyframenet_forward.1} parent=0 // pred_fallthru
    _
  // Predicated region
  $region46: #{keyframenet_forward.1} parent=0 // pred_check
    _
  $region47: #{keyframenet_forward.1} parent=0 // pred_check_branch
    %140 = sbr.rel (0) target = $region49
  $region48: #{keyframenet_forward.1} parent=0 // pred_region
    _
  $region49: #{keyframenet_forward.1} parent=0 // pred_fallthru
    _
  // Predicated region
  $region50: #{keyframenet_forward.1} parent=0 // pred_check
    _
  $region51: #{keyframenet_forward.1} parent=0 // pred_check_branch
    %142 = sbr.rel (0) target = $region53
  $region52: #{keyframenet_forward.1} parent=0 // pred_region
    _
  $region53: #{keyframenet_forward.1} parent=0 // pred_fallthru
    _
  // Predicated region
  $region54: #{keyframenet_forward.1} parent=0 // pred_check
    _
  $region55: #{keyframenet_forward.1} parent=0 // pred_check_branch
    %144 = sbr.rel (0) target = $region57
  $region56: #{keyframenet_forward.1} parent=0 // pred_region
    _
  $region57: #{keyframenet_forward.1} parent=0 // pred_fallthru
    _
  // Predicated region
  $region58: #{keyframenet_forward.1} parent=0 // pred_check
    _
  $region59: #{keyframenet_forward.1} parent=0 // pred_check_branch
    %146 = sbr.rel (0) target = $region61
  $region60: #{keyframenet_forward.1} parent=0 // pred_region
    _
  $region61: #{keyframenet_forward.1} parent=0 // pred_fallthru
    _
  // Predicated region
  $region62: #{keyframenet_forward.1} parent=0 // pred_check
    _
  $region63: #{keyframenet_forward.1} parent=0 // pred_check_branch
    %148 = sbr.rel (0) target = $region65
  $region64: #{keyframenet_forward.1} parent=0 // pred_region
    _
  $region65: #{keyframenet_forward.1} parent=0 // pred_fallthru
    _
  // Predicated region
  $region66: #{keyframenet_forward.1} parent=0 // pred_check
    _
  $region67: #{keyframenet_forward.1} parent=0 // pred_check_branch
    %150 = sbr.rel (0) target = $region69
  $region68: #{keyframenet_forward.1} parent=0 // pred_region
    _
  $region69: #{keyframenet_forward.1} parent=0 // pred_fallthru
    _
  // Predicated region
  $region70: #{keyframenet_forward.1} parent=0 // pred_check
    _
  $region71: #{keyframenet_forward.1} parent=0 // pred_check_branch
    %152 = sbr.rel (0) target = $region73
  $region72: #{keyframenet_forward.1} parent=0 // pred_region
    _
  $region73: #{keyframenet_forward.1} parent=0 // pred_fallthru
    _
  // Predicated region
  $region74: #{keyframenet_forward.1} parent=0 // pred_check
    _
  $region75: #{keyframenet_forward.1} parent=0 // pred_check_branch
    %154 = sbr.rel (0) target = $region77
  $region76: #{keyframenet_forward.1} parent=0 // pred_region
    _
  $region77: #{keyframenet_forward.1} parent=0 // pred_fallthru
    _
  // Predicated region
  $region78: #{keyframenet_forward.1} parent=0 // pred_check
    _
  $region79: #{keyframenet_forward.1} parent=0 // pred_check_branch
    %156 = sbr.rel (0) target = $region81
  $region80: #{keyframenet_forward.1} parent=0 // pred_region
    _
  $region81: #{keyframenet_forward.1} parent=0 // pred_fallthru
    _
  // Predicated region
  $region82: #{keyframenet_forward.1} parent=0 // pred_check
    _
  $region83: #{keyframenet_forward.1} parent=0 // pred_check_branch
    %158 = sbr.rel (0) target = $region85
  $region84: #{keyframenet_forward.1} parent=0 // pred_region
    _
  $region85: #{keyframenet_forward.1} parent=0 // pred_fallthru
    _
  // Predicated region
  $region86: #{keyframenet_forward.1} parent=0 // pred_check
    _
  $region87: #{keyframenet_forward.1} parent=0 // pred_check_branch
    %160 = sbr.rel (0) target = $region89
  $region88: #{keyframenet_forward.1} parent=0 // pred_region
    _
  $region89: #{keyframenet_forward.1} parent=0 // pred_fallthru
    _
  // Predicated region
  $region90: #{keyframenet_forward.1} parent=0 // pred_check
    _
  $region91: #{keyframenet_forward.1} parent=0 // pred_check_branch
    %162 = sbr.rel (0) target = $region93
  $region92: #{keyframenet_forward.1} parent=0 // pred_region
    _
  $region93: #{keyframenet_forward.1} parent=0 // pred_fallthru
    _
  // Predicated region
  $region94: #{keyframenet_forward.1} parent=0 // pred_check
    _
  $region95: #{keyframenet_forward.1} parent=0 // pred_check_branch
    %164 = sbr.rel (0) target = $region97
  $region96: #{keyframenet_forward.1} parent=0 // pred_region
    _
  $region97: #{keyframenet_forward.1} parent=0 // pred_fallthru
    _
  // Predicated region
  $region98: #{keyframenet_forward.1} parent=0 // pred_check
    _
  $region99: #{keyframenet_forward.1} parent=0 // pred_check_branch
    %166 = sbr.rel (0) target = $region101
  $region100: #{keyframenet_forward.1} parent=0 // pred_region
    _
  $region101: #{keyframenet_forward.1} parent=0 // pred_fallthru
    _
  // Predicated region
  $region102: #{keyframenet_forward.1} parent=0 // pred_check
    _
  $region103: #{keyframenet_forward.1} parent=0 // pred_check_branch
    %168 = sbr.rel (0) target = $region105
  $region104: #{keyframenet_forward.1} parent=0 // pred_region
    _
  $region105: #{keyframenet_forward.1} parent=0 // pred_fallthru
    _
  // Predicated region
  $region106: #{keyframenet_forward.1} parent=0 // pred_check
    _
  $region107: #{keyframenet_forward.1} parent=0 // pred_check_branch
    %170 = sbr.rel (0) target = $region109
  $region108: #{keyframenet_forward.1} parent=0 // pred_region
    _
  $region109: #{keyframenet_forward.1} parent=0 // pred_fallthru
    _
  // Predicated region
  $region110: #{keyframenet_forward.1} parent=0 // pred_check
    _
  $region111: #{keyframenet_forward.1} parent=0 // pred_check_branch
    %172 = sbr.rel (0) target = $region113
  $region112: #{keyframenet_forward.1} parent=0 // pred_region
    _
  $region113: #{keyframenet_forward.1} parent=0 // pred_fallthru
    _
  // Predicated region
  $region114: #{keyframenet_forward.1} parent=0 // pred_check
    _
  $region115: #{keyframenet_forward.1} parent=0 // pred_check_branch
    %174 = sbr.rel (0) target = $region117
  $region116: #{keyframenet_forward.1} parent=0 // pred_region
    _
  $region117: #{keyframenet_forward.1} parent=0 // pred_fallthru
    _
  // Predicated region
  $region118: #{keyframenet_forward.1} parent=0 // pred_check
    _
  $region119: #{keyframenet_forward.1} parent=0 // pred_check_branch
    %176 = sbr.rel (0) target = $region121
  $region120: #{keyframenet_forward.1} parent=0 // pred_region
    _
  $region121: #{keyframenet_forward.1} parent=0 // pred_fallthru
    _
  // Predicated region
  $region122: #{keyframenet_forward.1} parent=0 // pred_check
    _
  $region123: #{keyframenet_forward.1} parent=0 // pred_check_branch
    %178 = sbr.rel (0) target = $region125
  $region124: #{keyframenet_forward.1} parent=0 // pred_region
    _
  $region125: #{keyframenet_forward.1} parent=0 // pred_fallthru
    _
  // Predicated region
  $region126: #{keyframenet_forward.1} parent=0 // pred_check
    _
  $region127: #{keyframenet_forward.1} parent=0 // pred_check_branch
    %180 = sbr.rel (0) target = $region129
  $region128: #{keyframenet_forward.1} parent=0 // pred_region
    _
  $region129: #{keyframenet_forward.1} parent=0 // pred_fallthru
    _
  // Predicated region
  $region130: #{keyframenet_forward.1} parent=0 // pred_check
    _
  $region131: #{keyframenet_forward.1} parent=0 // pred_check_branch
    %182 = sbr.rel (0) target = $region133
  $region132: #{keyframenet_forward.1} parent=0 // pred_region
    _
  $region133: #{keyframenet_forward.1} parent=0 // pred_fallthru
    _
  // Predicated region
  $region134: #{keyframenet_forward.1} parent=0 // pred_check
    _
  $region135: #{keyframenet_forward.1} parent=0 // pred_check_branch
    %184 = sbr.rel (0) target = $region137
  $region136: #{keyframenet_forward.1} parent=0 // pred_region
    _
  $region137: #{keyframenet_forward.1} parent=0 // pred_fallthru
    _
  // Predicated region
  $region138: #{keyframenet_forward.1} parent=0 // pred_check
    _
  $region139: #{keyframenet_forward.1} parent=0 // pred_check_branch
    %186 = sbr.rel (0) target = $region141
  $region140: #{keyframenet_forward.1} parent=0 // pred_region
    _
  $region141: #{keyframenet_forward.1} parent=0 // pred_fallthru
    _
  // Predicated region
  $region142: #{keyframenet_forward.1} parent=0 // pred_check
    _
  $region143: #{keyframenet_forward.1} parent=0 // pred_check_branch
    %188 = sbr.rel (0) target = $region145
  $region144: #{keyframenet_forward.1} parent=0 // pred_region
    _
  $region145: #{keyframenet_forward.1} parent=0 // pred_fallthru
    _
  // Predicated region
  $region146: #{keyframenet_forward.1} parent=0 // pred_check
    _
  $region147: #{keyframenet_forward.1} parent=0 // pred_check_branch
    %190 = sbr.rel (0) target = $region149
  $region148: #{keyframenet_forward.1} parent=0 // pred_region
    _
  $region149: #{keyframenet_forward.1} parent=0 // pred_fallthru
    _
  // Predicated region
  $region150: #{keyframenet_forward.1} parent=0 // pred_check
    _
  $region151: #{keyframenet_forward.1} parent=0 // pred_check_branch
    %192 = sbr.rel (0) target = $region153
  $region152: #{keyframenet_forward.1} parent=0 // pred_region
    _
  $region153: #{keyframenet_forward.1} parent=0 // pred_fallthru
    _
  // Predicated region
  $region154: #{keyframenet_forward.1} parent=0 // pred_check
    _
  $region155: #{keyframenet_forward.1} parent=0 // pred_check_branch
    %194 = sbr.rel (0) target = $region157
  $region156: #{keyframenet_forward.1} parent=0 // pred_region
    _
  $region157: #{keyframenet_forward.1} parent=0 // pred_fallthru
    _
  // Predicated region
  $region158: #{keyframenet_forward.1} parent=0 // pred_check
    _
  $region159: #{keyframenet_forward.1} parent=0 // pred_check_branch
    %196 = sbr.rel (0) target = $region161
  $region160: #{keyframenet_forward.1} parent=0 // pred_region
    _
  $region161: #{keyframenet_forward.1} parent=0 // pred_fallthru
    _
  // Predicated region
  $region162: #{keyframenet_forward.1} parent=0 // pred_check
    _
  $region163: #{keyframenet_forward.1} parent=0 // pred_check_branch
    %198 = sbr.rel (0) target = $region165
  $region164: #{keyframenet_forward.1} parent=0 // pred_region
    _
  $region165: #{keyframenet_forward.1} parent=0 // pred_fallthru
    _
  // Predicated region
  $region166: #{keyframenet_forward.1} parent=0 // pred_check
    _
  $region167: #{keyframenet_forward.1} parent=0 // pred_check_branch
    %200 = sbr.rel (0) target = $region169
  $region168: #{keyframenet_forward.1} parent=0 // pred_region
    _
  $region169: #{keyframenet_forward.1} parent=0 // pred_fallthru
    _
  // Predicated region
  $region170: #{keyframenet_forward.1} parent=0 // pred_check
    _
  $region171: #{keyframenet_forward.1} parent=0 // pred_check_branch
    %202 = sbr.rel (0) target = $region173
  $region172: #{keyframenet_forward.1} parent=0 // pred_region
    _
  $region173: #{keyframenet_forward.1} parent=0 // pred_fallthru
    _
  // Predicated region
  $region174: #{keyframenet_forward.1} parent=0 // pred_check
    _
  $region175: #{keyframenet_forward.1} parent=0 // pred_check_branch
    %204 = sbr.rel (0) target = $region177
  $region176: #{keyframenet_forward.1} parent=0 // pred_region
    _
  $region177: #{keyframenet_forward.1} parent=0 // pred_fallthru
    _
  // Predicated region
  $region178: #{keyframenet_forward.1} parent=0 // pred_check
    _
  $region179: #{keyframenet_forward.1} parent=0 // pred_check_branch
    %206 = sbr.rel (0) target = $region181
  $region180: #{keyframenet_forward.1} parent=0 // pred_region
    _
  $region181: #{keyframenet_forward.1} parent=0 // pred_fallthru
    _
  // Predicated region
  $region182: #{keyframenet_forward.1} parent=0 // pred_check
    _
  $region183: #{keyframenet_forward.1} parent=0 // pred_check_branch
    %208 = sbr.rel (0) target = $region185
  $region184: #{keyframenet_forward.1} parent=0 // pred_region
    _
  $region185: #{keyframenet_forward.1} parent=0 // pred_fallthru
    _
  // Predicated region
  $region186: #{keyframenet_forward.1} parent=0 // pred_check
    _
  $region187: #{keyframenet_forward.1} parent=0 // pred_check_branch
    %210 = sbr.rel (0) target = $region189
  $region188: #{keyframenet_forward.1} parent=0 // pred_region
    _
  $region189: #{keyframenet_forward.1} parent=0 // pred_fallthru
    _
  // Predicated region
  $region190: #{keyframenet_forward.1} parent=0 // pred_check
    _
  $region191: #{keyframenet_forward.1} parent=0 // pred_check_branch
    %212 = sbr.rel (0) target = $region193
  $region192: #{keyframenet_forward.1} parent=0 // pred_region
    _
  $region193: #{keyframenet_forward.1} parent=0 // pred_fallthru
    _
  // Predicated region
  $region194: #{keyframenet_forward.1} parent=0 // pred_check
    _
  $region195: #{keyframenet_forward.1} parent=0 // pred_check_branch
    %214 = sbr.rel (0) target = $region197
  $region196: #{keyframenet_forward.1} parent=0 // pred_region
    _
  $region197: #{keyframenet_forward.1} parent=0 // pred_fallthru
    _
  // Predicated region
  $region198: #{keyframenet_forward.1} parent=0 // pred_check
    _
  $region199: #{keyframenet_forward.1} parent=0 // pred_check_branch
    %216 = sbr.rel (0) target = $region201
  $region200: #{keyframenet_forward.1} parent=0 // pred_region
    _
  $region201: #{keyframenet_forward.1} parent=0 // pred_fallthru
    _
  // Predicated region
  $region202: #{keyframenet_forward.1} parent=0 // pred_check
    _
  $region203: #{keyframenet_forward.1} parent=0 // pred_check_branch
    %218 = sbr.rel (0) target = $region205
  $region204: #{keyframenet_forward.1} parent=0 // pred_region
    _
  $region205: #{keyframenet_forward.1} parent=0 // pred_fallthru
    _
  %v219 = vld [vmem:[%s1] sm:$0xff]
  %v220 = vld [vmem:[%s1 + $0x8] sm:$0xff]
  %v221 = vld [vmem:[%s1 + $0x10] sm:$0xff]
  %v222 = vld [vmem:[%s1 + $0x18] sm:$0xff]
  %v223 = vld [vmem:[%s3] sm:$0xff]
  %v224 = vld [vmem:[%s3 + $0x8] sm:$0xff]
  %v225 = vld [vmem:[%s3 + $0x10] sm:$0xff]
  %v226 = vld [vmem:[%s3 + $0x18] sm:$0xff]
  %v227 = vld [vmem:[%s5] sm:$0xff]
  %v228 = vld [vmem:[%s5 + $0x8] sm:$0xff]
  %v229 = vld [vmem:[%s5 + $0x10] sm:$0xff]
  %v230 = vld [vmem:[%s5 + $0x18] sm:$0xff]
  %v231 = vld [vmem:[%s7] sm:$0xff]
  %v232 = vld [vmem:[%s7 + $0x8] sm:$0xff]
  %v233 = vld [vmem:[%s7 + $0x10] sm:$0xff]
  %v234 = vld [vmem:[%s7 + $0x18] sm:$0xff]
  %v235 = vld [vmem:[%s7 + $0x20] sm:$0xff]
  %v236 = vld [vmem:[%s7 + $0x28] sm:$0xff]
  %v237 = vld [vmem:[%s7 + $0x30] sm:$0xff]
  %v238 = vld [vmem:[%s7 + $0x38] sm:$0xff]
  %v239 = vld [vmem:[%s7 + $0x40] sm:$0xff]
  %v240 = vld [vmem:[%s7 + $0x48] sm:$0xff]
  %v241 = vld [vmem:[%s7 + $0x50] sm:$0xff]
  %v242 = vld [vmem:[%s7 + $0x58] sm:$0xff]
  %v243 = vld [vmem:[%s7 + $0x60] sm:$0xff]
  %v244 = vld [vmem:[%s7 + $0x68] sm:$0xff]
  %v245 = vld [vmem:[%s7 + $0x70] sm:$0xff]
  %v246 = vld [vmem:[%s7 + $0x78] sm:$0xff]
  %v247 = vld [vmem:[%s7 + $0x80] sm:$0xff]
  %v248 = vld [vmem:[%s7 + $0x88] sm:$0xff]
  %v249 = vld [vmem:[%s7 + $0x90] sm:$0xff]
  %v250 = vld [vmem:[%s7 + $0x98] sm:$0xff]
  %v251 = vld [vmem:[%s7 + $0xa0] sm:$0xff]
  %v252 = vld [vmem:[%s7 + $0xa8] sm:$0xff]
  %v253 = vld [vmem:[%s7 + $0xb0] sm:$0xff]
  %v254 = vld [vmem:[%s7 + $0xb8] sm:$0xff]
  %v255 = vld [vmem:[%s7 + $0xc0] sm:$0xff]
  %v256 = vld [vmem:[%s7 + $0xc8] sm:$0xff]
  %v257 = vld [vmem:[%s7 + $0xd0] sm:$0xff]
  %v258 = vld [vmem:[%s7 + $0xd8] sm:$0xff]
  %v259 = vld [vmem:[%s7 + $0xe0] sm:$0xff]
  %v260 = vld [vmem:[%s7 + $0xe8] sm:$0xff]
  %v261 = vld [vmem:[%s7 + $0xf0] sm:$0xff]
  %v262 = vld [vmem:[%s7 + $0xf8] sm:$0xff]
  %v263 = vlaneseq
  %v264 = vshrl.u32 %v263, 7
  %v265 = vadd.s32 %v264, 8
  %v266 = vadd.s32 %v264, 16
  %v267 = vadd.s32 %v264, 24
  %vm268 = vcmp.lt.s32.totalorder %v264, 4
  %vm269 = vcmp.lt.s32.totalorder %v265, 4
  %vm270 = vcmp.lt.s32.totalorder %v266, 4
  %vm271 = vcmp.lt.s32.totalorder %v267, 4
  %vm272 = vcmp.eq.s32.totalorder %v264, 15
  %vm273 = vcmp.eq.s32.totalorder %v265, 15
  %vm274 = vcmp.eq.s32.totalorder %v266, 15
  %vm275 = vcmp.eq.s32.totalorder %v267, 15
  %vm276 = vmor %vm268, %vm272
  %vm277 = vmor %vm269, %vm273
  %vm278 = vmor %vm270, %vm274
  %vm279 = vmor %vm271, %vm275
  %vm280 = vcmp.ge.s32.totalorder %v264, 16
  %vm281 = vcmp.ge.s32.totalorder %v265, 16
  %vm282 = vcmp.ge.s32.totalorder %v266, 16
  %vm283 = vcmp.ge.s32.totalorder %v267, 16
  %vm284 = vcmp.lt.s32.totalorder %v264, 20
  %vm285 = vcmp.lt.s32.totalorder %v265, 20
  %vm286 = vcmp.lt.s32.totalorder %v266, 20
  %vm287 = vcmp.lt.s32.totalorder %v267, 20
  %vm288 = vmand %vm280, %vm284
  %vm289 = vmand %vm281, %vm285
  %vm290 = vmand %vm282, %vm286
  %vm291 = vmand %vm283, %vm287
  %vm292 = vmor %vm276, %vm288
  %vm293 = vmor %vm277, %vm289
  %vm294 = vmor %vm278, %vm290
  %vm295 = vmor %vm279, %vm291
  %vm296 = vcmp.eq.s32.totalorder %v264, 31
  %vm297 = vcmp.eq.s32.totalorder %v265, 31
  %vm298 = vcmp.eq.s32.totalorder %v266, 31
  %vm299 = vcmp.eq.s32.totalorder %v267, 31
  %vm300 = vmor %vm292, %vm296
  %vm301 = vmor %vm293, %vm297
  %vm302 = vmor %vm294, %vm298
  %vm303 = vmor %vm295, %vm299
  %v304 = vsel %vm300, 1.0, 0.0
  %v305 = vsel %vm301, 1.0, 0.0
  %v306 = vsel %vm302, 1.0, 0.0
  %v307 = vsel %vm303, 1.0, 0.0
  %v308 = vld [vmem:[%s9] sm:$0x3f]
  %v309 = vld [vmem:[%s11] sm:$0xf]
  %v310 = vld [vmem:[%s13] sm:$0x1]
  %v311 = vld [vmem:[%s15] sm:$0x1]
  %v312 = vld [vmem:[#allocation2] sm:$0x1]
  %v313 = vld [vmem:[%s19] sm:$0xff]
  %v314 = vld [vmem:[%s19 + $0x8] sm:$0xff]
  %v315 = vld [vmem:[%s19 + $0x10] sm:$0xff]
  %v316 = vld [vmem:[%s19 + $0x18] sm:$0xff]
  %v317 = vld [vmem:[%s21] sm:$0x1]
  %v318 = vld [vmem:[#allocation3] sm:$0x1]
  %v319 = vmul.f32 %v219, %v304
  %v320 = vmul.f32 %v220, %v305
  %v321 = vmul.f32 %v221, %v306
  %v322 = vmul.f32 %v222, %v307
  %324 = vset.pattern.permute.xlu0 0
  %325 = vperm.xlu0 %324, %v319
  %v326 = vpop.permute.xlu0 %325
  %329 = vset.pattern.permute.xlu0 0
  %330 = vperm.xlu0 %329, %v320
  %v331 = vpop.permute.xlu0 %330
  %334 = vset.pattern.permute.xlu0 0
  %335 = vperm.xlu0 %334, %v321
  %v336 = vpop.permute.xlu0 %335
  %339 = vset.pattern.permute.xlu0 0
  %340 = vperm.xlu0 %339, %v322
  %v341 = vpop.permute.xlu0 %340
  %v343 = vperm.slane %v308, 0
  %v344 = vmul.f32 %v326, %v343
  %v345 = vmul.f32 %v331, %v343
  %v346 = vmul.f32 %v336, %v343
  %v347 = vmul.f32 %v341, %v343
  %348 = vset.pattern.permute.xlu0 1
  %349 = vperm.xlu0 %348, %v319
  %v350 = vpop.permute.xlu0 %349
  %352 = vset.pattern.permute.xlu0 1
  %353 = vperm.xlu0 %352, %v320
  %v354 = vpop.permute.xlu0 %353
  %356 = vset.pattern.permute.xlu0 1
  %357 = vperm.xlu0 %356, %v321
  %v358 = vpop.permute.xlu0 %357
  %360 = vset.pattern.permute.xlu0 1
  %361 = vperm.xlu0 %360, %v322
  %v362 = vpop.permute.xlu0 %361
  %v364 = vperm.slane %v308, 1
  %v365 = vmul.f32 %v350, %v364
  %v366 = vmul.f32 %v354, %v364
  %v367 = vmul.f32 %v358, %v364
  %v368 = vmul.f32 %v362, %v364
  %v369 = vadd.f32 %v344, %v365
  %v370 = vadd.f32 %v345, %v366
  %v371 = vadd.f32 %v346, %v367
  %v372 = vadd.f32 %v347, %v368
  %373 = vset.pattern.permute.xlu0 2
  %374 = vperm.xlu0 %373, %v319
  %v375 = vpop.permute.xlu0 %374
  %377 = vset.pattern.permute.xlu0 2
  %378 = vperm.xlu0 %377, %v320
  %v379 = vpop.permute.xlu0 %378
  %381 = vset.pattern.permute.xlu0 2
  %382 = vperm.xlu0 %381, %v321
  %v383 = vpop.permute.xlu0 %382
  %385 = vset.pattern.permute.xlu0 2
  %386 = vperm.xlu0 %385, %v322
  %v387 = vpop.permute.xlu0 %386
  %v389 = vperm.slane %v308, 2
  %v390 = vmul.f32 %v375, %v389
  %v391 = vmul.f32 %v379, %v389
  %v392 = vmul.f32 %v383, %v389
  %v393 = vmul.f32 %v387, %v389
  %v394 = vadd.f32 %v369, %v390
  %v395 = vadd.f32 %v370, %v391
  %v396 = vadd.f32 %v371, %v392
  %v397 = vadd.f32 %v372, %v393
  %398 = vset.pattern.permute.xlu0 3
  %399 = vperm.xlu0 %398, %v319
  %v400 = vpop.permute.xlu0 %399
  %402 = vset.pattern.permute.xlu0 3
  %403 = vperm.xlu0 %402, %v320
  %v404 = vpop.permute.xlu0 %403
  %406 = vset.pattern.permute.xlu0 3
  %407 = vperm.xlu0 %406, %v321
  %v408 = vpop.permute.xlu0 %407
  %410 = vset.pattern.permute.xlu0 3
  %411 = vperm.xlu0 %410, %v322
  %v412 = vpop.permute.xlu0 %411
  %v414 = vperm.slane %v308, 3
  %v415 = vmul.f32 %v400, %v414
  %v416 = vmul.f32 %v404, %v414
  %v417 = vmul.f32 %v408, %v414
  %v418 = vmul.f32 %v412, %v414
  %v419 = vadd.f32 %v394, %v415
  %v420 = vadd.f32 %v395, %v416
  %v421 = vadd.f32 %v396, %v417
  %v422 = vadd.f32 %v397, %v418
  %423 = vset.pattern.permute.xlu0 4
  %424 = vperm.xlu0 %423, %v319
  %v425 = vpop.permute.xlu0 %424
  %427 = vset.pattern.permute.xlu0 4
  %428 = vperm.xlu0 %427, %v320
  %v429 = vpop.permute.xlu0 %428
  %431 = vset.pattern.permute.xlu0 4
  %432 = vperm.xlu0 %431, %v321
  %v433 = vpop.permute.xlu0 %432
  %435 = vset.pattern.permute.xlu0 4
  %436 = vperm.xlu0 %435, %v322
  %v437 = vpop.permute.xlu0 %436
  %v439 = vperm.slane %v308, 4
  %v440 = vmul.f32 %v425, %v439
  %v441 = vmul.f32 %v429, %v439
  %v442 = vmul.f32 %v433, %v439
  %v443 = vmul.f32 %v437, %v439
  %v444 = vadd.f32 %v419, %v440
  %v445 = vadd.f32 %v420, %v441
  %v446 = vadd.f32 %v421, %v442
  %v447 = vadd.f32 %v422, %v443
  %448 = vset.pattern.permute.xlu0 5
  %449 = vperm.xlu0 %448, %v319
  %v450 = vpop.permute.xlu0 %449
  %452 = vset.pattern.permute.xlu0 5
  %453 = vperm.xlu0 %452, %v320
  %v454 = vpop.permute.xlu0 %453
  %456 = vset.pattern.permute.xlu0 5
  %457 = vperm.xlu0 %456, %v321
  %v458 = vpop.permute.xlu0 %457
  %460 = vset.pattern.permute.xlu0 5
  %461 = vperm.xlu0 %460, %v322
  %v462 = vpop.permute.xlu0 %461
  %v464 = vperm.slane %v308, 5
  %v465 = vmul.f32 %v450, %v464
  %v466 = vmul.f32 %v454, %v464
  %v467 = vmul.f32 %v458, %v464
  %v468 = vmul.f32 %v462, %v464
  %v469 = vadd.f32 %v444, %v465
  %v470 = vadd.f32 %v445, %v466
  %v471 = vadd.f32 %v446, %v467
  %v472 = vadd.f32 %v447, %v468
  %474 = vset.pattern.permute.xlu0 0
  %475 = vperm.xlu0 %474, %v223
  %v476 = vpop.permute.xlu0 %475
  %479 = vset.pattern.permute.xlu0 0
  %480 = vperm.xlu0 %479, %v224
  %v481 = vpop.permute.xlu0 %480
  %484 = vset.pattern.permute.xlu0 0
  %485 = vperm.xlu0 %484, %v225
  %v486 = vpop.permute.xlu0 %485
  %489 = vset.pattern.permute.xlu0 0
  %490 = vperm.xlu0 %489, %v226
  %v491 = vpop.permute.xlu0 %490
  %v493 = vperm.slane %v309, 0
  %v494 = vmul.f32 %v476, %v493
  %v495 = vmul.f32 %v481, %v493
  %v496 = vmul.f32 %v486, %v493
  %v497 = vmul.f32 %v491, %v493
  %498 = vset.pattern.permute.xlu0 1
  %499 = vperm.xlu0 %498, %v223
  %v500 = vpop.permute.xlu0 %499
  %502 = vset.pattern.permute.xlu0 1
  %503 = vperm.xlu0 %502, %v224
  %v504 = vpop.permute.xlu0 %503
  %506 = vset.pattern.permute.xlu0 1
  %507 = vperm.xlu0 %506, %v225
  %v508 = vpop.permute.xlu0 %507
  %510 = vset.pattern.permute.xlu0 1
  %511 = vperm.xlu0 %510, %v226
  %v512 = vpop.permute.xlu0 %511
  %v514 = vperm.slane %v309, 1
  %v515 = vmul.f32 %v500, %v514
  %v516 = vmul.f32 %v504, %v514
  %v517 = vmul.f32 %v508, %v514
  %v518 = vmul.f32 %v512, %v514
  %v519 = vadd.f32 %v494, %v515
  %v520 = vadd.f32 %v495, %v516
  %v521 = vadd.f32 %v496, %v517
  %v522 = vadd.f32 %v497, %v518
  %523 = vset.pattern.permute.xlu0 2
  %524 = vperm.xlu0 %523, %v223
  %v525 = vpop.permute.xlu0 %524
  %527 = vset.pattern.permute.xlu0 2
  %528 = vperm.xlu0 %527, %v224
  %v529 = vpop.permute.xlu0 %528
  %531 = vset.pattern.permute.xlu0 2
  %532 = vperm.xlu0 %531, %v225
  %v533 = vpop.permute.xlu0 %532
  %535 = vset.pattern.permute.xlu0 2
  %536 = vperm.xlu0 %535, %v226
  %v537 = vpop.permute.xlu0 %536
  %v539 = vperm.slane %v309, 2
  %v540 = vmul.f32 %v525, %v539
  %v541 = vmul.f32 %v529, %v539
  %v542 = vmul.f32 %v533, %v539
  %v543 = vmul.f32 %v537, %v539
  %v544 = vadd.f32 %v519, %v540
  %v545 = vadd.f32 %v520, %v541
  %v546 = vadd.f32 %v521, %v542
  %v547 = vadd.f32 %v522, %v543
  %548 = vset.pattern.permute.xlu0 3
  %549 = vperm.xlu0 %548, %v223
  %v550 = vpop.permute.xlu0 %549
  %552 = vset.pattern.permute.xlu0 3
  %553 = vperm.xlu0 %552, %v224
  %v554 = vpop.permute.xlu0 %553
  %556 = vset.pattern.permute.xlu0 3
  %557 = vperm.xlu0 %556, %v225
  %v558 = vpop.permute.xlu0 %557
  %560 = vset.pattern.permute.xlu0 3
  %561 = vperm.xlu0 %560, %v226
  %v562 = vpop.permute.xlu0 %561
  %v564 = vperm.slane %v309, 3
  %v565 = vmul.f32 %v550, %v564
  %v566 = vmul.f32 %v554, %v564
  %v567 = vmul.f32 %v558, %v564
  %v568 = vmul.f32 %v562, %v564
  %v569 = vadd.f32 %v544, %v565
  %v570 = vadd.f32 %v545, %v566
  %v571 = vadd.f32 %v546, %v567
  %v572 = vadd.f32 %v547, %v568
  %v573 = vadd.f32 %v469, %v569
  %v574 = vadd.f32 %v470, %v570
  %v575 = vadd.f32 %v471, %v571
  %v576 = vadd.f32 %v472, %v572
  %v578 = vperm.slane %v310, 0
  %v580 = vmul.f32 %v304, %v578
  %v581 = vmul.f32 %v305, %v578
  %v582 = vmul.f32 %v306, %v578
  %v583 = vmul.f32 %v307, %v578
  %v584 = vadd.f32 %v573, %v580
  %v585 = vadd.f32 %v574, %v581
  %v586 = vadd.f32 %v575, %v582
  %v587 = vadd.f32 %v576, %v583
  %v589 = vperm.slane %v311, 0
  %v591 = vadd.f32 %v584, %v589
  %v592 = vadd.f32 %v585, %v589
  %v593 = vadd.f32 %v586, %v589
  %v594 = vadd.f32 %v587, %v589
  %vm595 = vcmp.ge.f32.partialorder %v591, 0.0
  %vm596 = vcmp.ge.f32.partialorder %v592, 0.0
  %vm597 = vcmp.ge.f32.partialorder %v593, 0.0
  %vm598 = vcmp.ge.f32.partialorder %v594, 0.0
  %v600 = vperm.slane %v312, 0
  %601 = vset.pattern.permute.xlu0 0
  %602 = vperm.xlu0 %601, %v600
  %v603 = vpop.permute.xlu0 %602
  %v605 = vmul.f32 %v603, %v591
  %v606 = vmul.f32 %v603, %v592
  %v607 = vmul.f32 %v603, %v593
  %v608 = vmul.f32 %v603, %v594
  %v609 = vsel %vm595, %v591, %v605
  %v610 = vsel %vm596, %v592, %v606
  %v611 = vsel %vm597, %v593, %v607
  %v612 = vsel %vm598, %v594, %v608
  %v614 = vperm.slane %v317, 0
  %vm616 = vcmask 261120
  %v618 = vsel %vm616, %v609, 0
  %v621 = vsel %vm616, %v610, 0
  %v624 = vsel %vm616, %v611, 0
  %v627 = vsel %vm616, %v612, 0
  %629 = vmatpush.msra.mxu0 0.0
  %630 = vmatpush.msra.mxu0 0.0
  %631 = vmatpush.msra.mxu0 0.0
  %632 = vmatpush.msra.mxu0 0.0
  %633 = vmatpush.msra.mxu0 0.0
  %634 = vmatpush.msra.mxu0 0.0
  %635 = vmatpush.msra.mxu0 0.0
  %636 = vmatpush.msra.mxu0 0.0
  %637 = vmatpush.msra.mxu0 0.0
  %638 = vmatpush.msra.mxu0 0.0
  %639 = vmatpush.msra.mxu0 0.0
  %640 = vmatpush.msra.mxu0 0.0
  %641 = vmatpush.msra.mxu0 %v316
  %642 = vmatpush.msra.mxu0 %v315
  %643 = vmatpush.msra.mxu0 %v314
  %644 = vmatpush.msra.mxu0 %v313
  %645 = vmatmul.f32.gmra.mxu0 %v618
  %v646 = vpop.f32.mrf.mxu0
  %v647 = vadd.f32 %v614, %v646
  %648 = vmatmul.f32.gmra.mxu0 %v621
  %v649 = vpop.f32.mrf.mxu0
  %v650 = vadd.f32 %v614, %v649
  %651 = vmatmul.f32.gmra.mxu0 %v624
  %v652 = vpop.f32.mrf.mxu0
  %v653 = vadd.f32 %v614, %v652
  %654 = vmatmul.f32.gmra.mxu0 %v627
  %v655 = vpop.f32.mrf.mxu0
  %v656 = vadd.f32 %v614, %v655
  %657 = vdwg.mxu0
  %vm658 = vcmp.ge.f32.partialorder %v647, 0.0
  %vm659 = vcmp.ge.f32.partialorder %v650, 0.0
  %vm660 = vcmp.ge.f32.partialorder %v653, 0.0
  %vm661 = vcmp.ge.f32.partialorder %v656, 0.0
  %v663 = vperm.slane %v318, 0
  %664 = vset.pattern.permute.xlu0 0
  %665 = vperm.xlu0 %664, %v663
  %v666 = vpop.permute.xlu0 %665
  %v668 = vmul.f32 %v666, %v647
  %v669 = vmul.f32 %v666, %v650
  %v670 = vmul.f32 %v666, %v653
  %v671 = vmul.f32 %v666, %v656
  %v672 = vsel %vm658, %v647, %v668
  %v673 = vsel %vm659, %v650, %v669
  %v674 = vsel %vm660, %v653, %v670
  %v675 = vsel %vm661, %v656, %v671
  %v676 = vadd.f32 %v672, %v227
  %v677 = vadd.f32 %v673, %v228
  %v678 = vadd.f32 %v674, %v229
  %v679 = vadd.f32 %v675, %v230
  %v680 = vld [vmem:[%s25] sm:$0xff]
  %v681 = vld [vmem:[%s25 + $0x8] sm:$0xff]
  %v682 = vld [vmem:[%s25 + $0x10] sm:$0xff]
  %v683 = vld [vmem:[%s25 + $0x18] sm:$0xff]
  %v684 = vld [vmem:[%s27] sm:$0x1]
  %v685 = vld [vmem:[%s29] sm:$0xff]
  %v686 = vld [vmem:[%s29 + $0x8] sm:$0xff]
  %v687 = vld [vmem:[%s29 + $0x10] sm:$0xff]
  %v688 = vld [vmem:[%s29 + $0x18] sm:$0xff]
  %v689 = vld [vmem:[%s31] sm:$0x1]
  %v690 = vld [vmem:[%s33] sm:$0xff]
  %v691 = vld [vmem:[%s33 + $0x8] sm:$0xff]
  %v692 = vld [vmem:[%s33 + $0x10] sm:$0xff]
  %v693 = vld [vmem:[%s33 + $0x18] sm:$0xff]
  %v694 = vld [vmem:[%s35] sm:$0x1]
  %v695 = vld [vmem:[%s37] sm:$0xff]
  %v696 = vld [vmem:[%s37 + $0x8] sm:$0xff]
  %v697 = vld [vmem:[%s37 + $0x10] sm:$0xff]
  %v698 = vld [vmem:[%s37 + $0x18] sm:$0xff]
  %v699 = vld [vmem:[%s39] sm:$0x1]
  %v700 = vld [vmem:[%s41] sm:$0x1]
  %v701 = vld [vmem:[%s43] sm:$0x1]
  %v702 = vsel %vm616, %v676, 0.0
  %703 = vadd.xlane.f32.xlu0 %v702
  %v704 = vpop.xlane.xlu0 %703
  %v705 = vsel %vm616, %v677, 0.0
  %706 = vadd.xlane.f32.xlu0 %v705
  %v707 = vpop.xlane.xlu0 %706
  %v708 = vsel %vm616, %v678, 0.0
  %709 = vadd.xlane.f32.xlu0 %v708
  %v710 = vpop.xlane.xlu0 %709
  %v711 = vsel %vm616, %v679, 0.0
  %712 = vadd.xlane.f32.xlu0 %v711
  %v713 = vpop.xlane.xlu0 %712
  %v714 = vrcp.pop 32.0
  %v715 = vmul.f32 32.0, %v714
  %v716 = vsub.f32 1.0, %v715
  %v717 = vmul.f32 %v714, %v716
  %v718 = vadd.f32 %v714, %v717
  %vm719 = vweird.f32 %v714
  %v720 = vsel %vm719, %v714, %v718
  %v721 = vmul.f32 %v704, %v720
  %v722 = vmul.f32 %v707, %v720
  %v723 = vmul.f32 %v710, %v720
  %v724 = vmul.f32 %v713, %v720
  %v725 = vsub.f32 %v676, %v721
  %v726 = vsub.f32 %v677, %v722
  %v727 = vsub.f32 %v678, %v723
  %v728 = vsub.f32 %v679, %v724
  %v729 = vmul.f32 %v725, %v725
  %v730 = vmul.f32 %v726, %v726
  %v731 = vmul.f32 %v727, %v727
  %v732 = vmul.f32 %v728, %v728
  %v733 = vsel %vm616, %v729, 0.0
  %734 = vadd.xlane.f32.xlu0 %v733
  %v735 = vpop.xlane.xlu0 %734
  %v736 = vsel %vm616, %v730, 0.0
  %737 = vadd.xlane.f32.xlu0 %v736
  %v738 = vpop.xlane.xlu0 %737
  %v739 = vsel %vm616, %v731, 0.0
  %740 = vadd.xlane.f32.xlu0 %v739
  %v741 = vpop.xlane.xlu0 %740
  %v742 = vsel %vm616, %v732, 0.0
  %743 = vadd.xlane.f32.xlu0 %v742
  %v744 = vpop.xlane.xlu0 %743
  %v745 = vmul.f32 %v735, %v720
  %v746 = vmul.f32 %v738, %v720
  %v747 = vmul.f32 %v741, %v720
  %v748 = vmul.f32 %v744, %v720
  %v749 = vadd.f32 %v745, 1e-05
  %v750 = vadd.f32 %v746, 1e-05
  %v751 = vadd.f32 %v747, 1e-05
  %v752 = vadd.f32 %v748, 1e-05
  %v753 = vrsqrt.pop %v749
  %v754 = vmul.f32 %v753, %v749
  %v755 = vmul.f32 %v754, %v753
  %v756 = vmul.f32 0.5, %v755
  %v757 = vsub.f32 1.5, %v756
  %v758 = vmul.f32 %v753, %v757
  %vm759 = vweird.f32 %v749
  %vm760 = vweird.f32 %v753
  %vm761 = vmor %vm759, %vm760
  %v762 = vsel %vm761, %v753, %v758
  %v763 = vrsqrt.pop %v750
  %v764 = vmul.f32 %v763, %v750
  %v765 = vmul.f32 %v764, %v763
  %v766 = vmul.f32 0.5, %v765
  %v767 = vsub.f32 1.5, %v766
  %v768 = vmul.f32 %v763, %v767
  %vm769 = vweird.f32 %v750
  %vm770 = vweird.f32 %v763
  %vm771 = vmor %vm769, %vm770
  %v772 = vsel %vm771, %v763, %v768
  %v773 = vrsqrt.pop %v751
  %v774 = vmul.f32 %v773, %v751
  %v775 = vmul.f32 %v774, %v773
  %v776 = vmul.f32 0.5, %v775
  %v777 = vsub.f32 1.5, %v776
  %v778 = vmul.f32 %v773, %v777
  %vm779 = vweird.f32 %v751
  %vm780 = vweird.f32 %v773
  %vm781 = vmor %vm779, %vm780
  %v782 = vsel %vm781, %v773, %v778
  %v783 = vrsqrt.pop %v752
  %v784 = vmul.f32 %v783, %v752
  %v785 = vmul.f32 %v784, %v783
  %v786 = vmul.f32 0.5, %v785
  %v787 = vsub.f32 1.5, %v786
  %v788 = vmul.f32 %v783, %v787
  %vm789 = vweird.f32 %v752
  %vm790 = vweird.f32 %v783
  %vm791 = vmor %vm789, %vm790
  %v792 = vsel %vm791, %v783, %v788
  %v793 = vmul.f32 %v725, %v762
  %v794 = vmul.f32 %v726, %v772
  %v795 = vmul.f32 %v727, %v782
  %v796 = vmul.f32 %v728, %v792
  %v798 = vperm.slane %v700, 0
  %v800 = vmul.f32 %v793, %v798
  %v801 = vmul.f32 %v794, %v798
  %v802 = vmul.f32 %v795, %v798
  %v803 = vmul.f32 %v796, %v798
  %v805 = vperm.slane %v701, 0
  %v807 = vadd.f32 %v800, %v805
  %v808 = vadd.f32 %v801, %v805
  %v809 = vadd.f32 %v802, %v805
  %v810 = vadd.f32 %v803, %v805
  %v812 = vperm.slane %v684, 0
  %v815 = vsel %vm616, %v807, 0
  %v818 = vsel %vm616, %v808, 0
  %v821 = vsel %vm616, %v809, 0
  %v824 = vsel %vm616, %v810, 0
  %826 = vmatpush.msra.mxu0 0.0
  %827 = vmatpush.msra.mxu0 0.0
  %828 = vmatpush.msra.mxu0 0.0
  %829 = vmatpush.msra.mxu0 0.0
  %830 = vmatpush.msra.mxu0 0.0
  %831 = vmatpush.msra.mxu0 0.0
  %832 = vmatpush.msra.mxu0 0.0
  %833 = vmatpush.msra.mxu0 0.0
  %834 = vmatpush.msra.mxu0 0.0
  %835 = vmatpush.msra.mxu0 0.0
  %836 = vmatpush.msra.mxu0 0.0
  %837 = vmatpush.msra.mxu0 0.0
  %838 = vmatpush.msra.mxu0 %v683
  %839 = vmatpush.msra.mxu0 %v682
  %840 = vmatpush.msra.mxu0 %v681
  %841 = vmatpush.msra.mxu0 %v680
  %842 = vmatmul.f32.gmra.mxu0 %v815
  %v843 = vpop.f32.mrf.mxu0
  %v844 = vadd.f32 %v812, %v843
  %845 = vmatmul.f32.gmra.mxu0 %v818
  %v846 = vpop.f32.mrf.mxu0
  %v847 = vadd.f32 %v812, %v846
  %848 = vmatmul.f32.gmra.mxu0 %v821
  %v849 = vpop.f32.mrf.mxu0
  %v850 = vadd.f32 %v812, %v849
  %851 = vmatmul.f32.gmra.mxu0 %v824
  %v852 = vpop.f32.mrf.mxu0
  %v853 = vadd.f32 %v812, %v852
  %854 = vdwg.mxu0
  %v856 = vperm.slane %v689, 0
  %858 = vmatpush.msra.mxu0 0.0
  %859 = vmatpush.msra.mxu0 0.0
  %860 = vmatpush.msra.mxu0 0.0
  %861 = vmatpush.msra.mxu0 0.0
  %862 = vmatpush.msra.mxu0 0.0
  %863 = vmatpush.msra.mxu0 0.0
  %864 = vmatpush.msra.mxu0 0.0
  %865 = vmatpush.msra.mxu0 0.0
  %866 = vmatpush.msra.mxu0 0.0
  %867 = vmatpush.msra.mxu0 0.0
  %868 = vmatpush.msra.mxu0 0.0
  %869 = vmatpush.msra.mxu0 0.0
  %870 = vmatpush.msra.mxu0 %v688
  %871 = vmatpush.msra.mxu0 %v687
  %872 = vmatpush.msra.mxu0 %v686
  %873 = vmatpush.msra.mxu0 %v685
  %874 = vmatmul.f32.gmra.mxu0 %v815
  %v875 = vpop.f32.mrf.mxu0
  %v876 = vadd.f32 %v856, %v875
  %877 = vmatmul.f32.gmra.mxu0 %v818
  %v878 = vpop.f32.mrf.mxu0
  %v879 = vadd.f32 %v856, %v878
  %880 = vmatmul.f32.gmra.mxu0 %v821
  %v881 = vpop.f32.mrf.mxu0
  %v882 = vadd.f32 %v856, %v881
  %883 = vmatmul.f32.gmra.mxu0 %v824
  %v884 = vpop.f32.mrf.mxu0
  %v885 = vadd.f32 %v856, %v884
  %886 = vdwg.mxu0
  %v888 = vperm.slane %v694, 0
  %890 = vmatpush.msra.mxu0 0.0
  %891 = vmatpush.msra.mxu0 0.0
  %892 = vmatpush.msra.mxu0 0.0
  %893 = vmatpush.msra.mxu0 0.0
  %894 = vmatpush.msra.mxu0 0.0
  %895 = vmatpush.msra.mxu0 0.0
  %896 = vmatpush.msra.mxu0 0.0
  %897 = vmatpush.msra.mxu0 0.0
  %898 = vmatpush.msra.mxu0 0.0
  %899 = vmatpush.msra.mxu0 0.0
  %900 = vmatpush.msra.mxu0 0.0
  %901 = vmatpush.msra.mxu0 0.0
  %902 = vmatpush.msra.mxu0 %v693
  %903 = vmatpush.msra.mxu0 %v692
  %904 = vmatpush.msra.mxu0 %v691
  %905 = vmatpush.msra.mxu0 %v690
  %906 = vmatmul.f32.gmra.mxu0 %v815
  %v907 = vpop.f32.mrf.mxu0
  %v908 = vadd.f32 %v888, %v907
  %909 = vmatmul.f32.gmra.mxu0 %v818
  %v910 = vpop.f32.mrf.mxu0
  %v911 = vadd.f32 %v888, %v910
  %912 = vmatmul.f32.gmra.mxu0 %v821
  %v913 = vpop.f32.mrf.mxu0
  %v914 = vadd.f32 %v888, %v913
  %915 = vmatmul.f32.gmra.mxu0 %v824
  %v916 = vpop.f32.mrf.mxu0
  %v917 = vadd.f32 %v888, %v916
  %918 = vdwg.mxu0
  %v921 = vrot.slane %v844, 1
  %v922 = vrot.slane %v844, 2
  %v923 = vrot.slane %v844, 3
  %v924 = vrot.slane %v844, 4
  %v925 = vrot.slane %v844, 5
  %v926 = vrot.slane %v844, 6
  %v927 = vrot.slane %v844, 7
  %v928 = vrot.slane %v847, 1
  %v929 = vrot.slane %v847, 2
  %v930 = vrot.slane %v847, 3
  %v931 = vrot.slane %v847, 4
  %v932 = vrot.slane %v847, 5
  %v933 = vrot.slane %v847, 6
  %v934 = vrot.slane %v847, 7
  %v935 = vperm.slane %v844, 0
  %v936 = vperm.slane %v921, 0
  %v937 = vperm.slane %v922, 0
  %v938 = vperm.slane %v923, 0
  %v939 = vperm.slane %v924, 0
  %v940 = vperm.slane %v925, 0
  %v941 = vperm.slane %v926, 0
  %v942 = vperm.slane %v927, 0
  %v943 = vperm.slane %v847, 0
  %v944 = vperm.slane %v928, 0
  %v945 = vperm.slane %v929, 0
  %v946 = vperm.slane %v930, 0
  %v947 = vperm.slane %v931, 0
  %v948 = vperm.slane %v932, 0
  %v949 = vperm.slane %v933, 0
  %v950 = vperm.slane %v934, 0
  %v967 = vmul.f32 %v935, %v231
  %v968 = vmul.f32 %v935, %v232
  %v969 = vmul.f32 %v936, %v233
  %v970 = vmul.f32 %v936, %v234
  %v971 = vmul.f32 %v937, %v235
  %v972 = vmul.f32 %v937, %v236
  %v973 = vmul.f32 %v938, %v237
  %v974 = vmul.f32 %v938, %v238
  %v975 = vmul.f32 %v939, %v239
  %v976 = vmul.f32 %v939, %v240
  %v977 = vmul.f32 %v940, %v241
  %v978 = vmul.f32 %v940, %v242
  %v979 = vmul.f32 %v941, %v243
  %v980 = vmul.f32 %v941, %v244
  %v981 = vmul.f32 %v942, %v245
  %v982 = vmul.f32 %v942, %v246
  %v983 = vmul.f32 %v943, %v247
  %v984 = vmul.f32 %v943, %v248
  %v985 = vmul.f32 %v944, %v249
  %v986 = vmul.f32 %v944, %v250
  %v987 = vmul.f32 %v945, %v251
  %v988 = vmul.f32 %v945, %v252
  %v989 = vmul.f32 %v946, %v253
  %v990 = vmul.f32 %v946, %v254
  %v991 = vmul.f32 %v947, %v255
  %v992 = vmul.f32 %v947, %v256
  %v993 = vmul.f32 %v948, %v257
  %v994 = vmul.f32 %v948, %v258
  %v995 = vmul.f32 %v949, %v259
  %v996 = vmul.f32 %v949, %v260
  %v997 = vmul.f32 %v950, %v261
  %v998 = vmul.f32 %v950, %v262
  %vm999 = vcmask 130048
  %v1000 = vsel %vm999, %v967, 0.0
  %1001 = vadd.xlane.f32.xlu0 %v1000
  %v1002 = vpop.xlane.xlu0 %1001
  %v1003 = vsel %vm999, %v968, 0.0
  %1004 = vadd.xlane.f32.xlu0 %v1003
  %v1005 = vpop.xlane.xlu0 %1004
  %v1006 = vsel %vm999, %v969, 0.0
  %1007 = vadd.xlane.f32.xlu0 %v1006
  %v1008 = vpop.xlane.xlu0 %1007
  %v1009 = vsel %vm999, %v970, 0.0
  %1010 = vadd.xlane.f32.xlu0 %v1009
  %v1011 = vpop.xlane.xlu0 %1010
  %v1012 = vsel %vm999, %v971, 0.0
  %1013 = vadd.xlane.f32.xlu0 %v1012
  %v1014 = vpop.xlane.xlu0 %1013
  %v1015 = vsel %vm999, %v972, 0.0
  %1016 = vadd.xlane.f32.xlu0 %v1015
  %v1017 = vpop.xlane.xlu0 %1016
  %v1018 = vsel %vm999, %v973, 0.0
  %1019 = vadd.xlane.f32.xlu0 %v1018
  %v1020 = vpop.xlane.xlu0 %1019
  %v1021 = vsel %vm999, %v974, 0.0
  %1022 = vadd.xlane.f32.xlu0 %v1021
  %v1023 = vpop.xlane.xlu0 %1022
  %v1024 = vsel %vm999, %v975, 0.0
  %1025 = vadd.xlane.f32.xlu0 %v1024
  %v1026 = vpop.xlane.xlu0 %1025
  %v1027 = vsel %vm999, %v976, 0.0
  %1028 = vadd.xlane.f32.xlu0 %v1027
  %v1029 = vpop.xlane.xlu0 %1028
  %v1030 = vsel %vm999, %v977, 0.0
  %1031 = vadd.xlane.f32.xlu0 %v1030
  %v1032 = vpop.xlane.xlu0 %1031
  %v1033 = vsel %vm999, %v978, 0.0
  %1034 = vadd.xlane.f32.xlu0 %v1033
  %v1035 = vpop.xlane.xlu0 %1034
  %v1036 = vsel %vm999, %v979, 0.0
  %1037 = vadd.xlane.f32.xlu0 %v1036
  %v1038 = vpop.xlane.xlu0 %1037
  %v1039 = vsel %vm999, %v980, 0.0
  %1040 = vadd.xlane.f32.xlu0 %v1039
  %v1041 = vpop.xlane.xlu0 %1040
  %v1042 = vsel %vm999, %v981, 0.0
  %1043 = vadd.xlane.f32.xlu0 %v1042
  %v1044 = vpop.xlane.xlu0 %1043
  %v1045 = vsel %vm999, %v982, 0.0
  %1046 = vadd.xlane.f32.xlu0 %v1045
  %v1047 = vpop.xlane.xlu0 %1046
  %v1048 = vsel %vm999, %v983, 0.0
  %1049 = vadd.xlane.f32.xlu0 %v1048
  %v1050 = vpop.xlane.xlu0 %1049
  %v1051 = vsel %vm999, %v984, 0.0
  %1052 = vadd.xlane.f32.xlu0 %v1051
  %v1053 = vpop.xlane.xlu0 %1052
  %v1054 = vsel %vm999, %v985, 0.0
  %1055 = vadd.xlane.f32.xlu0 %v1054
  %v1056 = vpop.xlane.xlu0 %1055
  %v1057 = vsel %vm999, %v986, 0.0
  %1058 = vadd.xlane.f32.xlu0 %v1057
  %v1059 = vpop.xlane.xlu0 %1058
  %v1060 = vsel %vm999, %v987, 0.0
  %1061 = vadd.xlane.f32.xlu0 %v1060
  %v1062 = vpop.xlane.xlu0 %1061
  %v1063 = vsel %vm999, %v988, 0.0
  %1064 = vadd.xlane.f32.xlu0 %v1063
  %v1065 = vpop.xlane.xlu0 %1064
  %v1066 = vsel %vm999, %v989, 0.0
  %1067 = vadd.xlane.f32.xlu0 %v1066
  %v1068 = vpop.xlane.xlu0 %1067
  %v1069 = vsel %vm999, %v990, 0.0
  %1070 = vadd.xlane.f32.xlu0 %v1069
  %v1071 = vpop.xlane.xlu0 %1070
  %v1072 = vsel %vm999, %v991, 0.0
  %1073 = vadd.xlane.f32.xlu0 %v1072
  %v1074 = vpop.xlane.xlu0 %1073
  %v1075 = vsel %vm999, %v992, 0.0
  %1076 = vadd.xlane.f32.xlu0 %v1075
  %v1077 = vpop.xlane.xlu0 %1076
  %v1078 = vsel %vm999, %v993, 0.0
  %1079 = vadd.xlane.f32.xlu0 %v1078
  %v1080 = vpop.xlane.xlu0 %1079
  %v1081 = vsel %vm999, %v994, 0.0
  %1082 = vadd.xlane.f32.xlu0 %v1081
  %v1083 = vpop.xlane.xlu0 %1082
  %v1084 = vsel %vm999, %v995, 0.0
  %1085 = vadd.xlane.f32.xlu0 %v1084
  %v1086 = vpop.xlane.xlu0 %1085
  %v1087 = vsel %vm999, %v996, 0.0
  %1088 = vadd.xlane.f32.xlu0 %v1087
  %v1089 = vpop.xlane.xlu0 %1088
  %v1090 = vsel %vm999, %v997, 0.0
  %1091 = vadd.xlane.f32.xlu0 %v1090
  %v1092 = vpop.xlane.xlu0 %1091
  %v1093 = vsel %vm999, %v998, 0.0
  %1094 = vadd.xlane.f32.xlu0 %v1093
  %v1095 = vpop.xlane.xlu0 %1094
  %v1128 = vlaneseq
  %v1129 = vand.u32 %v1128, 127
  %v1130 = vperm.slane %v1002, %v1129
  %v1131 = vadd.s32 %v1129, 4294967288
  %v1132 = vperm.slane %v1005, %v1131
  %vm1133 = vcmask 130112
  %v1134 = vsel %vm1133, %v1132, %v1130
  %v1135 = vperm.slane %v1008, %v1129
  %v1136 = vperm.slane %v1011, %v1131
  %v1137 = vsel %vm1133, %v1136, %v1135
  %v1138 = vperm.slane %v1014, %v1129
  %v1139 = vperm.slane %v1017, %v1131
  %v1140 = vsel %vm1133, %v1139, %v1138
  %v1141 = vperm.slane %v1020, %v1129
  %v1142 = vperm.slane %v1023, %v1131
  %v1143 = vsel %vm1133, %v1142, %v1141
  %v1144 = vperm.slane %v1026, %v1129
  %v1145 = vperm.slane %v1029, %v1131
  %v1146 = vsel %vm1133, %v1145, %v1144
  %v1147 = vperm.slane %v1032, %v1129
  %v1148 = vperm.slane %v1035, %v1131
  %v1149 = vsel %vm1133, %v1148, %v1147
  %v1150 = vperm.slane %v1038, %v1129
  %v1151 = vperm.slane %v1041, %v1131
  %v1152 = vsel %vm1133, %v1151, %v1150
  %v1153 = vperm.slane %v1044, %v1129
  %v1154 = vperm.slane %v1047, %v1131
  %v1155 = vsel %vm1133, %v1154, %v1153
  %v1156 = vperm.slane %v1050, %v1129
  %v1157 = vperm.slane %v1053, %v1131
  %v1158 = vsel %vm1133, %v1157, %v1156
  %v1159 = vperm.slane %v1056, %v1129
  %v1160 = vperm.slane %v1059, %v1131
  %v1161 = vsel %vm1133, %v1160, %v1159
  %v1162 = vperm.slane %v1062, %v1129
  %v1163 = vperm.slane %v1065, %v1131
  %v1164 = vsel %vm1133, %v1163, %v1162
  %v1165 = vperm.slane %v1068, %v1129
  %v1166 = vperm.slane %v1071, %v1131
  %v1167 = vsel %vm1133, %v1166, %v1165
  %v1168 = vperm.slane %v1074, %v1129
  %v1169 = vperm.slane %v1077, %v1131
  %v1170 = vsel %vm1133, %v1169, %v1168
  %v1171 = vperm.slane %v1080, %v1129
  %v1172 = vperm.slane %v1083, %v1131
  %v1173 = vsel %vm1133, %v1172, %v1171
  %v1174 = vperm.slane %v1086, %v1129
  %v1175 = vperm.slane %v1089, %v1131
  %v1176 = vsel %vm1133, %v1175, %v1174
  %v1177 = vperm.slane %v1092, %v1129
  %v1178 = vperm.slane %v1095, %v1131
  %v1179 = vsel %vm1133, %v1178, %v1177
  %vm1180 = vcmask 1041409
  %v1181 = vsel %vm1180, %v1137, %v1134
  %vm1182 = vcmask 1042434
  %v1183 = vsel %vm1182, %v1140, %v1181
  %vm1184 = vcmask 1043459
  %v1185 = vsel %vm1184, %v1143, %v1183
  %vm1186 = vcmask 1044484
  %v1187 = vsel %vm1186, %v1146, %v1185
  %vm1188 = vcmask 1045509
  %v1189 = vsel %vm1188, %v1149, %v1187
  %vm1190 = vcmask 1046534
  %v1191 = vsel %vm1190, %v1152, %v1189
  %vm1192 = vcmask 1047559
  %v1193 = vsel %vm1192, %v1155, %v1191
  %v1194 = vsel %vm1180, %v1161, %v1158
  %v1195 = vsel %vm1182, %v1164, %v1194
  %v1196 = vsel %vm1184, %v1167, %v1195
  %v1197 = vsel %vm1186, %v1170, %v1196
  %v1198 = vsel %vm1188, %v1173, %v1197
  %v1199 = vsel %vm1190, %v1176, %v1198
  %v1200 = vsel %vm1192, %v1179, %v1199
  %v1203 = vsel %vm999, %v844, 0
  %v1205 = vsel %vm999, %v847, 0
  %v1208 = vsel %vm999, %v876, 0
  %v1211 = vsel %vm999, %v879, 0
  %1213 = vmatpush.xpose.msra.mxu0 0.0
  %1214 = vmatpush.xpose.msra.mxu0 0.0
  %1215 = vmatpush.xpose.msra.mxu0 0.0
  %1216 = vmatpush.xpose.msra.mxu0 0.0
  %1217 = vmatpush.xpose.msra.mxu0 0.0
  %1218 = vmatpush.xpose.msra.mxu0 0.0
  %1219 = vmatpush.xpose.msra.mxu0 0.0
  %1220 = vmatpush.xpose.msra.mxu0 0.0
  %1221 = vmatpush.xpose.msra.mxu0 0.0
  %1222 = vmatpush.xpose.msra.mxu0 0.0
  %1223 = vmatpush.xpose.msra.mxu0 0.0
  %1224 = vmatpush.xpose.msra.mxu0 0.0
  %1225 = vmatpush.xpose.msra.mxu0 0.0
  %1226 = vmatpush.xpose.msra.mxu0 0.0
  %1227 = vmatpush.xpose.msra.mxu0 %v1211
  %1228 = vmatpush.xpose.msra.mxu0 %v1208
  %1229 = vmatmul.f32.gmra.mxu0 %v1203
  %v1230 = vpop.f32.mrf.mxu0
  %v1231 = vadd.f32 %v1193, %v1230
  %1232 = vmatmul.f32.gmra.mxu0 %v1205
  %v1233 = vpop.f32.mrf.mxu0
  %v1234 = vadd.f32 %v1200, %v1233
  %1235 = vdwg.mxu0
  %v1236 = vmul.f32 %v1231, 0.25
  %v1237 = vmul.f32 %v1234, 0.25
  %v1238 = vsel %vm999, %v1236, -inf
  %1239 = vmax.xlane.f32.xlu0 %v1238
  %v1240 = vpop.xlane.xlu0 %1239
  %v1241 = vsel %vm999, %v1237, -inf
  %1242 = vmax.xlane.f32.xlu0 %v1241
  %v1243 = vpop.xlane.xlu0 %1242
  %v1244 = vsub.f32 %v1236, %v1240
  %v1245 = vsub.f32 %v1237, %v1243
  %v1246 = vmul.f32 %v1244, 1.442695
  %v1247 = vpow.pop %v1246
  %v1248 = vmul.f32 %v1245, 1.442695
  %v1249 = vpow.pop %v1248
  %v1250 = vsel %vm999, %v1247, 0.0
  %1251 = vadd.xlane.f32.xlu0 %v1250
  %v1252 = vpop.xlane.xlu0 %1251
  %v1253 = vsel %vm999, %v1249, 0.0
  %1254 = vadd.xlane.f32.xlu0 %v1253
  %v1255 = vpop.xlane.xlu0 %1254
  %v1256 = vrcp.pop %v1252
  %v1257 = vrcp.pop %v1255
  %v1258 = vmul.f32 %v1247, %v1256
  %v1259 = vmul.f32 %v1249, %v1257
  %v1261 = vsel %vm999, %v1258, 0
  %v1264 = vsel %vm999, %v1259, 0
  %1266 = vmatpush.msra.mxu0 0.0
  %1267 = vmatpush.msra.mxu0 0.0
  %1268 = vmatpush.msra.mxu0 0.0
  %1269 = vmatpush.msra.mxu0 0.0
  %1270 = vmatpush.msra.mxu0 0.0
  %1271 = vmatpush.msra.mxu0 0.0
  %1272 = vmatpush.msra.mxu0 0.0
  %1273 = vmatpush.msra.mxu0 0.0
  %1274 = vmatpush.msra.mxu0 0.0
  %1275 = vmatpush.msra.mxu0 0.0
  %1276 = vmatpush.msra.mxu0 0.0
  %1277 = vmatpush.msra.mxu0 0.0
  %1278 = vmatpush.msra.mxu0 0.0
  %1279 = vmatpush.msra.mxu0 0.0
  %1280 = vmatpush.msra.mxu0 %v911
  %1281 = vmatpush.msra.mxu0 %v908
  %1282 = vmatmul.f32.gmra.mxu0 %v1261
  %v1283 = vpop.f32.mrf.mxu0
  %v1284 = vadd.f32 0.0, %v1283
  %1285 = vmatmul.f32.gmra.mxu0 %v1264
  %v1286 = vpop.f32.mrf.mxu0
  %v1287 = vadd.f32 0.0, %v1286
  %1288 = vdwg.mxu0
  %1321 = vrot.lane.b32.xlu0 %v231, 16
  %v1322 = vpop.permute.xlu0 %1321
  %1323 = vrot.lane.b32.xlu0 %v232, 16
  %v1324 = vpop.permute.xlu0 %1323
  %1325 = vrot.lane.b32.xlu0 %v233, 16
  %v1326 = vpop.permute.xlu0 %1325
  %1327 = vrot.lane.b32.xlu0 %v234, 16
  %v1328 = vpop.permute.xlu0 %1327
  %1329 = vrot.lane.b32.xlu0 %v235, 16
  %v1330 = vpop.permute.xlu0 %1329
  %1331 = vrot.lane.b32.xlu0 %v236, 16
  %v1332 = vpop.permute.xlu0 %1331
  %1333 = vrot.lane.b32.xlu0 %v237, 16
  %v1334 = vpop.permute.xlu0 %1333
  %1335 = vrot.lane.b32.xlu0 %v238, 16
  %v1336 = vpop.permute.xlu0 %1335
  %1337 = vrot.lane.b32.xlu0 %v239, 16
  %v1338 = vpop.permute.xlu0 %1337
  %1339 = vrot.lane.b32.xlu0 %v240, 16
  %v1340 = vpop.permute.xlu0 %1339
  %1341 = vrot.lane.b32.xlu0 %v241, 16
  %v1342 = vpop.permute.xlu0 %1341
  %1343 = vrot.lane.b32.xlu0 %v242, 16
  %v1344 = vpop.permute.xlu0 %1343
  %1345 = vrot.lane.b32.xlu0 %v243, 16
  %v1346 = vpop.permute.xlu0 %1345
  %1347 = vrot.lane.b32.xlu0 %v244, 16
  %v1348 = vpop.permute.xlu0 %1347
  %1349 = vrot.lane.b32.xlu0 %v245, 16
  %v1350 = vpop.permute.xlu0 %1349
  %1351 = vrot.lane.b32.xlu0 %v246, 16
  %v1352 = vpop.permute.xlu0 %1351
  %1353 = vrot.lane.b32.xlu0 %v247, 16
  %v1354 = vpop.permute.xlu0 %1353
  %1355 = vrot.lane.b32.xlu0 %v248, 16
  %v1356 = vpop.permute.xlu0 %1355
  %1357 = vrot.lane.b32.xlu0 %v249, 16
  %v1358 = vpop.permute.xlu0 %1357
  %1359 = vrot.lane.b32.xlu0 %v250, 16
  %v1360 = vpop.permute.xlu0 %1359
  %1361 = vrot.lane.b32.xlu0 %v251, 16
  %v1362 = vpop.permute.xlu0 %1361
  %1363 = vrot.lane.b32.xlu0 %v252, 16
  %v1364 = vpop.permute.xlu0 %1363
  %1365 = vrot.lane.b32.xlu0 %v253, 16
  %v1366 = vpop.permute.xlu0 %1365
  %1367 = vrot.lane.b32.xlu0 %v254, 16
  %v1368 = vpop.permute.xlu0 %1367
  %1369 = vrot.lane.b32.xlu0 %v255, 16
  %v1370 = vpop.permute.xlu0 %1369
  %1371 = vrot.lane.b32.xlu0 %v256, 16
  %v1372 = vpop.permute.xlu0 %1371
  %1373 = vrot.lane.b32.xlu0 %v257, 16
  %v1374 = vpop.permute.xlu0 %1373
  %1375 = vrot.lane.b32.xlu0 %v258, 16
  %v1376 = vpop.permute.xlu0 %1375
  %1377 = vrot.lane.b32.xlu0 %v259, 16
  %v1378 = vpop.permute.xlu0 %1377
  %1379 = vrot.lane.b32.xlu0 %v260, 16
  %v1380 = vpop.permute.xlu0 %1379
  %1381 = vrot.lane.b32.xlu0 %v261, 16
  %v1382 = vpop.permute.xlu0 %1381
  %1383 = vrot.lane.b32.xlu0 %v262, 16
  %v1384 = vpop.permute.xlu0 %1383
  %v1417 = vmul.f32 %v935, %v1322
  %v1418 = vmul.f32 %v935, %v1324
  %v1419 = vmul.f32 %v936, %v1326
  %v1420 = vmul.f32 %v936, %v1328
  %v1421 = vmul.f32 %v937, %v1330
  %v1422 = vmul.f32 %v937, %v1332
  %v1423 = vmul.f32 %v938, %v1334
  %v1424 = vmul.f32 %v938, %v1336
  %v1425 = vmul.f32 %v939, %v1338
  %v1426 = vmul.f32 %v939, %v1340
  %v1427 = vmul.f32 %v940, %v1342
  %v1428 = vmul.f32 %v940, %v1344
  %v1429 = vmul.f32 %v941, %v1346
  %v1430 = vmul.f32 %v941, %v1348
  %v1431 = vmul.f32 %v942, %v1350
  %v1432 = vmul.f32 %v942, %v1352
  %v1433 = vmul.f32 %v943, %v1354
  %v1434 = vmul.f32 %v943, %v1356
  %v1435 = vmul.f32 %v944, %v1358
  %v1436 = vmul.f32 %v944, %v1360
  %v1437 = vmul.f32 %v945, %v1362
  %v1438 = vmul.f32 %v945, %v1364
  %v1439 = vmul.f32 %v946, %v1366
  %v1440 = vmul.f32 %v946, %v1368
  %v1441 = vmul.f32 %v947, %v1370
  %v1442 = vmul.f32 %v947, %v1372
  %v1443 = vmul.f32 %v948, %v1374
  %v1444 = vmul.f32 %v948, %v1376
  %v1445 = vmul.f32 %v949, %v1378
  %v1446 = vmul.f32 %v949, %v1380
  %v1447 = vmul.f32 %v950, %v1382
  %v1448 = vmul.f32 %v950, %v1384
  %1481 = vrot.lane.b32.xlu0 %v1417, 112
  %v1482 = vpop.permute.xlu0 %1481
  %1483 = vrot.lane.b32.xlu0 %v1418, 112
  %v1484 = vpop.permute.xlu0 %1483
  %1485 = vrot.lane.b32.xlu0 %v1419, 112
  %v1486 = vpop.permute.xlu0 %1485
  %1487 = vrot.lane.b32.xlu0 %v1420, 112
  %v1488 = vpop.permute.xlu0 %1487
  %1489 = vrot.lane.b32.xlu0 %v1421, 112
  %v1490 = vpop.permute.xlu0 %1489
  %1491 = vrot.lane.b32.xlu0 %v1422, 112
  %v1492 = vpop.permute.xlu0 %1491
  %1493 = vrot.lane.b32.xlu0 %v1423, 112
  %v1494 = vpop.permute.xlu0 %1493
  %1495 = vrot.lane.b32.xlu0 %v1424, 112
  %v1496 = vpop.permute.xlu0 %1495
  %1497 = vrot.lane.b32.xlu0 %v1425, 112
  %v1498 = vpop.permute.xlu0 %1497
  %1499 = vrot.lane.b32.xlu0 %v1426, 112
  %v1500 = vpop.permute.xlu0 %1499
  %1501 = vrot.lane.b32.xlu0 %v1427, 112
  %v1502 = vpop.permute.xlu0 %1501
  %1503 = vrot.lane.b32.xlu0 %v1428, 112
  %v1504 = vpop.permute.xlu0 %1503
  %1505 = vrot.lane.b32.xlu0 %v1429, 112
  %v1506 = vpop.permute.xlu0 %1505
  %1507 = vrot.lane.b32.xlu0 %v1430, 112
  %v1508 = vpop.permute.xlu0 %1507
  %1509 = vrot.lane.b32.xlu0 %v1431, 112
  %v1510 = vpop.permute.xlu0 %1509
  %1511 = vrot.lane.b32.xlu0 %v1432, 112
  %v1512 = vpop.permute.xlu0 %1511
  %1513 = vrot.lane.b32.xlu0 %v1433, 112
  %v1514 = vpop.permute.xlu0 %1513
  %1515 = vrot.lane.b32.xlu0 %v1434, 112
  %v1516 = vpop.permute.xlu0 %1515
  %1517 = vrot.lane.b32.xlu0 %v1435, 112
  %v1518 = vpop.permute.xlu0 %1517
  %1519 = vrot.lane.b32.xlu0 %v1436, 112
  %v1520 = vpop.permute.xlu0 %1519
  %1521 = vrot.lane.b32.xlu0 %v1437, 112
  %v1522 = vpop.permute.xlu0 %1521
  %1523 = vrot.lane.b32.xlu0 %v1438, 112
  %v1524 = vpop.permute.xlu0 %1523
  %1525 = vrot.lane.b32.xlu0 %v1439, 112
  %v1526 = vpop.permute.xlu0 %1525
  %1527 = vrot.lane.b32.xlu0 %v1440, 112
  %v1528 = vpop.permute.xlu0 %1527
  %1529 = vrot.lane.b32.xlu0 %v1441, 112
  %v1530 = vpop.permute.xlu0 %1529
  %1531 = vrot.lane.b32.xlu0 %v1442, 112
  %v1532 = vpop.permute.xlu0 %1531
  %1533 = vrot.lane.b32.xlu0 %v1443, 112
  %v1534 = vpop.permute.xlu0 %1533
  %1535 = vrot.lane.b32.xlu0 %v1444, 112
  %v1536 = vpop.permute.xlu0 %1535
  %1537 = vrot.lane.b32.xlu0 %v1445, 112
  %v1538 = vpop.permute.xlu0 %1537
  %1539 = vrot.lane.b32.xlu0 %v1446, 112
  %v1540 = vpop.permute.xlu0 %1539
  %1541 = vrot.lane.b32.xlu0 %v1447, 112
  %v1542 = vpop.permute.xlu0 %1541
  %1543 = vrot.lane.b32.xlu0 %v1448, 112
  %v1544 = vpop.permute.xlu0 %1543
  %v1577 = vsel %vm999, %v1482, 0.0
  %1578 = vadd.xlane.f32.xlu0 %v1577
  %v1579 = vpop.xlane.xlu0 %1578
  %v1580 = vsel %vm999, %v1484, 0.0
  %1581 = vadd.xlane.f32.xlu0 %v1580
  %v1582 = vpop.xlane.xlu0 %1581
  %v1583 = vsel %vm999, %v1486, 0.0
  %1584 = vadd.xlane.f32.xlu0 %v1583
  %v1585 = vpop.xlane.xlu0 %1584
  %v1586 = vsel %vm999, %v1488, 0.0
  %1587 = vadd.xlane.f32.xlu0 %v1586
  %v1588 = vpop.xlane.xlu0 %1587
  %v1589 = vsel %vm999, %v1490, 0.0
  %1590 = vadd.xlane.f32.xlu0 %v1589
  %v1591 = vpop.xlane.xlu0 %1590
  %v1592 = vsel %vm999, %v1492, 0.0
  %1593 = vadd.xlane.f32.xlu0 %v1592
  %v1594 = vpop.xlane.xlu0 %1593
  %v1595 = vsel %vm999, %v1494, 0.0
  %1596 = vadd.xlane.f32.xlu0 %v1595
  %v1597 = vpop.xlane.xlu0 %1596
  %v1598 = vsel %vm999, %v1496, 0.0
  %1599 = vadd.xlane.f32.xlu0 %v1598
  %v1600 = vpop.xlane.xlu0 %1599
  %v1601 = vsel %vm999, %v1498, 0.0
  %1602 = vadd.xlane.f32.xlu0 %v1601
  %v1603 = vpop.xlane.xlu0 %1602
  %v1604 = vsel %vm999, %v1500, 0.0
  %1605 = vadd.xlane.f32.xlu0 %v1604
  %v1606 = vpop.xlane.xlu0 %1605
  %v1607 = vsel %vm999, %v1502, 0.0
  %1608 = vadd.xlane.f32.xlu0 %v1607
  %v1609 = vpop.xlane.xlu0 %1608
  %v1610 = vsel %vm999, %v1504, 0.0
  %1611 = vadd.xlane.f32.xlu0 %v1610
  %v1612 = vpop.xlane.xlu0 %1611
  %v1613 = vsel %vm999, %v1506, 0.0
  %1614 = vadd.xlane.f32.xlu0 %v1613
  %v1615 = vpop.xlane.xlu0 %1614
  %v1616 = vsel %vm999, %v1508, 0.0
  %1617 = vadd.xlane.f32.xlu0 %v1616
  %v1618 = vpop.xlane.xlu0 %1617
  %v1619 = vsel %vm999, %v1510, 0.0
  %1620 = vadd.xlane.f32.xlu0 %v1619
  %v1621 = vpop.xlane.xlu0 %1620
  %v1622 = vsel %vm999, %v1512, 0.0
  %1623 = vadd.xlane.f32.xlu0 %v1622
  %v1624 = vpop.xlane.xlu0 %1623
  %v1625 = vsel %vm999, %v1514, 0.0
  %1626 = vadd.xlane.f32.xlu0 %v1625
  %v1627 = vpop.xlane.xlu0 %1626
  %v1628 = vsel %vm999, %v1516, 0.0
  %1629 = vadd.xlane.f32.xlu0 %v1628
  %v1630 = vpop.xlane.xlu0 %1629
  %v1631 = vsel %vm999, %v1518, 0.0
  %1632 = vadd.xlane.f32.xlu0 %v1631
  %v1633 = vpop.xlane.xlu0 %1632
  %v1634 = vsel %vm999, %v1520, 0.0
  %1635 = vadd.xlane.f32.xlu0 %v1634
  %v1636 = vpop.xlane.xlu0 %1635
  %v1637 = vsel %vm999, %v1522, 0.0
  %1638 = vadd.xlane.f32.xlu0 %v1637
  %v1639 = vpop.xlane.xlu0 %1638
  %v1640 = vsel %vm999, %v1524, 0.0
  %1641 = vadd.xlane.f32.xlu0 %v1640
  %v1642 = vpop.xlane.xlu0 %1641
  %v1643 = vsel %vm999, %v1526, 0.0
  %1644 = vadd.xlane.f32.xlu0 %v1643
  %v1645 = vpop.xlane.xlu0 %1644
  %v1646 = vsel %vm999, %v1528, 0.0
  %1647 = vadd.xlane.f32.xlu0 %v1646
  %v1648 = vpop.xlane.xlu0 %1647
  %v1649 = vsel %vm999, %v1530, 0.0
  %1650 = vadd.xlane.f32.xlu0 %v1649
  %v1651 = vpop.xlane.xlu0 %1650
  %v1652 = vsel %vm999, %v1532, 0.0
  %1653 = vadd.xlane.f32.xlu0 %v1652
  %v1654 = vpop.xlane.xlu0 %1653
  %v1655 = vsel %vm999, %v1534, 0.0
  %1656 = vadd.xlane.f32.xlu0 %v1655
  %v1657 = vpop.xlane.xlu0 %1656
  %v1658 = vsel %vm999, %v1536, 0.0
  %1659 = vadd.xlane.f32.xlu0 %v1658
  %v1660 = vpop.xlane.xlu0 %1659
  %v1661 = vsel %vm999, %v1538, 0.0
  %1662 = vadd.xlane.f32.xlu0 %v1661
  %v1663 = vpop.xlane.xlu0 %1662
  %v1664 = vsel %vm999, %v1540, 0.0
  %1665 = vadd.xlane.f32.xlu0 %v1664
  %v1666 = vpop.xlane.xlu0 %1665
  %v1667 = vsel %vm999, %v1542, 0.0
  %1668 = vadd.xlane.f32.xlu0 %v1667
  %v1669 = vpop.xlane.xlu0 %1668
  %v1670 = vsel %vm999, %v1544, 0.0
  %1671 = vadd.xlane.f32.xlu0 %v1670
  %v1672 = vpop.xlane.xlu0 %1671
  %1673 = vrot.lane.b32.xlu0 %v844, 112
  %v1674 = vpop.permute.xlu0 %1673
  %1675 = vrot.lane.b32.xlu0 %v847, 112
  %v1676 = vpop.permute.xlu0 %1675
  %1677 = vrot.lane.b32.xlu0 %v876, 112
  %v1678 = vpop.permute.xlu0 %1677
  %1679 = vrot.lane.b32.xlu0 %v879, 112
  %v1680 = vpop.permute.xlu0 %1679
  %v1713 = vperm.slane %v1579, %v1129
  %v1714 = vperm.slane %v1582, %v1131
  %v1715 = vsel %vm1133, %v1714, %v1713
  %v1716 = vperm.slane %v1585, %v1129
  %v1717 = vperm.slane %v1588, %v1131
  %v1718 = vsel %vm1133, %v1717, %v1716
  %v1719 = vperm.slane %v1591, %v1129
  %v1720 = vperm.slane %v1594, %v1131
  %v1721 = vsel %vm1133, %v1720, %v1719
  %v1722 = vperm.slane %v1597, %v1129
  %v1723 = vperm.slane %v1600, %v1131
  %v1724 = vsel %vm1133, %v1723, %v1722
  %v1725 = vperm.slane %v1603, %v1129
  %v1726 = vperm.slane %v1606, %v1131
  %v1727 = vsel %vm1133, %v1726, %v1725
  %v1728 = vperm.slane %v1609, %v1129
  %v1729 = vperm.slane %v1612, %v1131
  %v1730 = vsel %vm1133, %v1729, %v1728
  %v1731 = vperm.slane %v1615, %v1129
  %v1732 = vperm.slane %v1618, %v1131
  %v1733 = vsel %vm1133, %v1732, %v1731
  %v1734 = vperm.slane %v1621, %v1129
  %v1735 = vperm.slane %v1624, %v1131
  %v1736 = vsel %vm1133, %v1735, %v1734
  %v1737 = vperm.slane %v1627, %v1129
  %v1738 = vperm.slane %v1630, %v1131
  %v1739 = vsel %vm1133, %v1738, %v1737
  %v1740 = vperm.slane %v1633, %v1129
  %v1741 = vperm.slane %v1636, %v1131
  %v1742 = vsel %vm1133, %v1741, %v1740
  %v1743 = vperm.slane %v1639, %v1129
  %v1744 = vperm.slane %v1642, %v1131
  %v1745 = vsel %vm1133, %v1744, %v1743
  %v1746 = vperm.slane %v1645, %v1129
  %v1747 = vperm.slane %v1648, %v1131
  %v1748 = vsel %vm1133, %v1747, %v1746
  %v1749 = vperm.slane %v1651, %v1129
  %v1750 = vperm.slane %v1654, %v1131
  %v1751 = vsel %vm1133, %v1750, %v1749
  %v1752 = vperm.slane %v1657, %v1129
  %v1753 = vperm.slane %v1660, %v1131
  %v1754 = vsel %vm1133, %v1753, %v1752
  %v1755 = vperm.slane %v1663, %v1129
  %v1756 = vperm.slane %v1666, %v1131
  %v1757 = vsel %vm1133, %v1756, %v1755
  %v1758 = vperm.slane %v1669, %v1129
  %v1759 = vperm.slane %v1672, %v1131
  %v1760 = vsel %vm1133, %v1759, %v1758
  %v1761 = vsel %vm1180, %v1718, %v1715
  %v1762 = vsel %vm1182, %v1721, %v1761
  %v1763 = vsel %vm1184, %v1724, %v1762
  %v1764 = vsel %vm1186, %v1727, %v1763
  %v1765 = vsel %vm1188, %v1730, %v1764
  %v1766 = vsel %vm1190, %v1733, %v1765
  %v1767 = vsel %vm1192, %v1736, %v1766
  %v1768 = vsel %vm1180, %v1742, %v1739
  %v1769 = vsel %vm1182, %v1745, %v1768
  %v1770 = vsel %vm1184, %v1748, %v1769
  %v1771 = vsel %vm1186, %v1751, %v1770
  %v1772 = vsel %vm1188, %v1754, %v1771
  %v1773 = vsel %vm1190, %v1757, %v1772
  %v1774 = vsel %vm1192, %v1760, %v1773
  %v1777 = vsel %vm999, %v1674, 0
  %v1779 = vsel %vm999, %v1676, 0
  %v1781 = vsel %vm999, %v1678, 0
  %v1783 = vsel %vm999, %v1680, 0
  %1785 = vmatpush.xpose.msra.mxu0 0.0
  %1786 = vmatpush.xpose.msra.mxu0 0.0
  %1787 = vmatpush.xpose.msra.mxu0 0.0
  %1788 = vmatpush.xpose.msra.mxu0 0.0
  %1789 = vmatpush.xpose.msra.mxu0 0.0
  %1790 = vmatpush.xpose.msra.mxu0 0.0
  %1791 = vmatpush.xpose.msra.mxu0 0.0
  %1792 = vmatpush.xpose.msra.mxu0 0.0
  %1793 = vmatpush.xpose.msra.mxu0 0.0
  %1794 = vmatpush.xpose.msra.mxu0 0.0
  %1795 = vmatpush.xpose.msra.mxu0 0.0
  %1796 = vmatpush.xpose.msra.mxu0 0.0
  %1797 = vmatpush.xpose.msra.mxu0 0.0
  %1798 = vmatpush.xpose.msra.mxu0 0.0
  %1799 = vmatpush.xpose.msra.mxu0 %v1783
  %1800 = vmatpush.xpose.msra.mxu0 %v1781
  %1801 = vmatmul.f32.gmra.mxu0 %v1777
  %v1802 = vpop.f32.mrf.mxu0
  %v1803 = vadd.f32 %v1767, %v1802
  %1804 = vmatmul.f32.gmra.mxu0 %v1779
  %v1805 = vpop.f32.mrf.mxu0
  %v1806 = vadd.f32 %v1774, %v1805
  %1807 = vdwg.mxu0
  %v1808 = vmul.f32 %v1803, 0.25
  %v1809 = vmul.f32 %v1806, 0.25
  %v1810 = vsel %vm999, %v1808, -inf
  %1811 = vmax.xlane.f32.xlu0 %v1810
  %v1812 = vpop.xlane.xlu0 %1811
  %v1813 = vsel %vm999, %v1809, -inf
  %1814 = vmax.xlane.f32.xlu0 %v1813
  %v1815 = vpop.xlane.xlu0 %1814
  %v1816 = vsub.f32 %v1808, %v1812
  %v1817 = vsub.f32 %v1809, %v1815
  %v1818 = vmul.f32 %v1816, 1.442695
  %v1819 = vpow.pop %v1818
  %v1820 = vmul.f32 %v1817, 1.442695
  %v1821 = vpow.pop %v1820
  %v1822 = vsel %vm999, %v1819, 0.0
  %1823 = vadd.xlane.f32.xlu0 %v1822
  %v1824 = vpop.xlane.xlu0 %1823
  %v1825 = vsel %vm999, %v1821, 0.0
  %1826 = vadd.xlane.f32.xlu0 %v1825
  %v1827 = vpop.xlane.xlu0 %1826
  %v1828 = vrcp.pop %v1824
  %v1829 = vrcp.pop %v1827
  %v1830 = vmul.f32 %v1819, %v1828
  %v1831 = vmul.f32 %v1821, %v1829
  %1834 = vrot.lane.b32.xlu0 %v908, 112
  %v1835 = vpop.permute.xlu0 %1834
  %1836 = vrot.lane.b32.xlu0 %v911, 112
  %v1837 = vpop.permute.xlu0 %1836
  %v1841 = vsel %vm999, %v1830, 0
  %v1844 = vsel %vm999, %v1831, 0
  %1846 = vmatpush.msra.mxu0 0.0
  %1847 = vmatpush.msra.mxu0 0.0
  %1848 = vmatpush.msra.mxu0 0.0
  %1849 = vmatpush.msra.mxu0 0.0
  %1850 = vmatpush.msra.mxu0 0.0
  %1851 = vmatpush.msra.mxu0 0.0
  %1852 = vmatpush.msra.mxu0 0.0
  %1853 = vmatpush.msra.mxu0 0.0
  %1854 = vmatpush.msra.mxu0 0.0
  %1855 = vmatpush.msra.mxu0 0.0
  %1856 = vmatpush.msra.mxu0 0.0
  %1857 = vmatpush.msra.mxu0 0.0
  %1858 = vmatpush.msra.mxu0 0.0
  %1859 = vmatpush.msra.mxu0 0.0
  %1860 = vmatpush.msra.mxu0 %v1837
  %1861 = vmatpush.msra.mxu0 %v1835
  %1862 = vmatmul.f32.gmra.mxu0 %v1841
  %v1863 = vpop.f32.mrf.mxu0
  %v1864 = vadd.f32 0.0, %v1863
  %1865 = vmatmul.f32.gmra.mxu0 %v1844
  %v1866 = vpop.f32.mrf.mxu0
  %v1867 = vadd.f32 0.0, %v1866
  %1868 = vdwg.mxu0
  %1871 = vrot.lane.b32.xlu0 %v1864, 16
  %v1872 = vpop.permute.xlu0 %1871
  %1873 = vrot.lane.b32.xlu0 %v1867, 16
  %v1874 = vpop.permute.xlu0 %1873
  %v1877 = vsel %vm999, %v1284, %v1872
  %v1878 = vsel %vm999, %v1287, %v1874
  %v1881 = vrot.slane %v850, 1
  %v1882 = vrot.slane %v850, 2
  %v1883 = vrot.slane %v850, 3
  %v1884 = vrot.slane %v850, 4
  %v1885 = vrot.slane %v850, 5
  %v1886 = vrot.slane %v850, 6
  %v1887 = vrot.slane %v850, 7
  %v1888 = vrot.slane %v853, 1
  %v1889 = vrot.slane %v853, 2
  %v1890 = vrot.slane %v853, 3
  %v1891 = vrot.slane %v853, 4
  %v1892 = vrot.slane %v853, 5
  %v1893 = vrot.slane %v853, 6
  %v1894 = vrot.slane %v853, 7
  %v1895 = vperm.slane %v850, 0
  %v1896 = vperm.slane %v1881, 0
  %v1897 = vperm.slane %v1882, 0
  %v1898 = vperm.slane %v1883, 0
  %v1899 = vperm.slane %v1884, 0
  %v1900 = vperm.slane %v1885, 0
  %v1901 = vperm.slane %v1886, 0
  %v1902 = vperm.slane %v1887, 0
  %v1903 = vperm.slane %v853, 0
  %v1904 = vperm.slane %v1888, 0
  %v1905 = vperm.slane %v1889, 0
  %v1906 = vperm.slane %v1890, 0
  %v1907 = vperm.slane %v1891, 0
  %v1908 = vperm.slane %v1892, 0
  %v1909 = vperm.slane %v1893, 0
  %v1910 = vperm.slane %v1894, 0
  %v1927 = vmul.f32 %v1895, %v231
  %v1928 = vmul.f32 %v1895, %v232
  %v1929 = vmul.f32 %v1896, %v233
  %v1930 = vmul.f32 %v1896, %v234
  %v1931 = vmul.f32 %v1897, %v235
  %v1932 = vmul.f32 %v1897, %v236
  %v1933 = vmul.f32 %v1898, %v237
  %v1934 = vmul.f32 %v1898, %v238
  %v1935 = vmul.f32 %v1899, %v239
  %v1936 = vmul.f32 %v1899, %v240
  %v1937 = vmul.f32 %v1900, %v241
  %v1938 = vmul.f32 %v1900, %v242
  %v1939 = vmul.f32 %v1901, %v243
  %v1940 = vmul.f32 %v1901, %v244
  %v1941 = vmul.f32 %v1902, %v245
  %v1942 = vmul.f32 %v1902, %v246
  %v1943 = vmul.f32 %v1903, %v247
  %v1944 = vmul.f32 %v1903, %v248
  %v1945 = vmul.f32 %v1904, %v249
  %v1946 = vmul.f32 %v1904, %v250
  %v1947 = vmul.f32 %v1905, %v251
  %v1948 = vmul.f32 %v1905, %v252
  %v1949 = vmul.f32 %v1906, %v253
  %v1950 = vmul.f32 %v1906, %v254
  %v1951 = vmul.f32 %v1907, %v255
  %v1952 = vmul.f32 %v1907, %v256
  %v1953 = vmul.f32 %v1908, %v257
  %v1954 = vmul.f32 %v1908, %v258
  %v1955 = vmul.f32 %v1909, %v259
  %v1956 = vmul.f32 %v1909, %v260
  %v1957 = vmul.f32 %v1910, %v261
  %v1958 = vmul.f32 %v1910, %v262
  %v1959 = vsel %vm999, %v1927, 0.0
  %1960 = vadd.xlane.f32.xlu0 %v1959
  %v1961 = vpop.xlane.xlu0 %1960
  %v1962 = vsel %vm999, %v1928, 0.0
  %1963 = vadd.xlane.f32.xlu0 %v1962
  %v1964 = vpop.xlane.xlu0 %1963
  %v1965 = vsel %vm999, %v1929, 0.0
  %1966 = vadd.xlane.f32.xlu0 %v1965
  %v1967 = vpop.xlane.xlu0 %1966
  %v1968 = vsel %vm999, %v1930, 0.0
  %1969 = vadd.xlane.f32.xlu0 %v1968
  %v1970 = vpop.xlane.xlu0 %1969
  %v1971 = vsel %vm999, %v1931, 0.0
  %1972 = vadd.xlane.f32.xlu0 %v1971
  %v1973 = vpop.xlane.xlu0 %1972
  %v1974 = vsel %vm999, %v1932, 0.0
  %1975 = vadd.xlane.f32.xlu0 %v1974
  %v1976 = vpop.xlane.xlu0 %1975
  %v1977 = vsel %vm999, %v1933, 0.0
  %1978 = vadd.xlane.f32.xlu0 %v1977
  %v1979 = vpop.xlane.xlu0 %1978
  %v1980 = vsel %vm999, %v1934, 0.0
  %1981 = vadd.xlane.f32.xlu0 %v1980
  %v1982 = vpop.xlane.xlu0 %1981
  %v1983 = vsel %vm999, %v1935, 0.0
  %1984 = vadd.xlane.f32.xlu0 %v1983
  %v1985 = vpop.xlane.xlu0 %1984
  %v1986 = vsel %vm999, %v1936, 0.0
  %1987 = vadd.xlane.f32.xlu0 %v1986
  %v1988 = vpop.xlane.xlu0 %1987
  %v1989 = vsel %vm999, %v1937, 0.0
  %1990 = vadd.xlane.f32.xlu0 %v1989
  %v1991 = vpop.xlane.xlu0 %1990
  %v1992 = vsel %vm999, %v1938, 0.0
  %1993 = vadd.xlane.f32.xlu0 %v1992
  %v1994 = vpop.xlane.xlu0 %1993
  %v1995 = vsel %vm999, %v1939, 0.0
  %1996 = vadd.xlane.f32.xlu0 %v1995
  %v1997 = vpop.xlane.xlu0 %1996
  %v1998 = vsel %vm999, %v1940, 0.0
  %1999 = vadd.xlane.f32.xlu0 %v1998
  %v2000 = vpop.xlane.xlu0 %1999
  %v2001 = vsel %vm999, %v1941, 0.0
  %2002 = vadd.xlane.f32.xlu0 %v2001
  %v2003 = vpop.xlane.xlu0 %2002
  %v2004 = vsel %vm999, %v1942, 0.0
  %2005 = vadd.xlane.f32.xlu0 %v2004
  %v2006 = vpop.xlane.xlu0 %2005
  %v2007 = vsel %vm999, %v1943, 0.0
  %2008 = vadd.xlane.f32.xlu0 %v2007
  %v2009 = vpop.xlane.xlu0 %2008
  %v2010 = vsel %vm999, %v1944, 0.0
  %2011 = vadd.xlane.f32.xlu0 %v2010
  %v2012 = vpop.xlane.xlu0 %2011
  %v2013 = vsel %vm999, %v1945, 0.0
  %2014 = vadd.xlane.f32.xlu0 %v2013
  %v2015 = vpop.xlane.xlu0 %2014
  %v2016 = vsel %vm999, %v1946, 0.0
  %2017 = vadd.xlane.f32.xlu0 %v2016
  %v2018 = vpop.xlane.xlu0 %2017
  %v2019 = vsel %vm999, %v1947, 0.0
  %2020 = vadd.xlane.f32.xlu0 %v2019
  %v2021 = vpop.xlane.xlu0 %2020
  %v2022 = vsel %vm999, %v1948, 0.0
  %2023 = vadd.xlane.f32.xlu0 %v2022
  %v2024 = vpop.xlane.xlu0 %2023
  %v2025 = vsel %vm999, %v1949, 0.0
  %2026 = vadd.xlane.f32.xlu0 %v2025
  %v2027 = vpop.xlane.xlu0 %2026
  %v2028 = vsel %vm999, %v1950, 0.0
  %2029 = vadd.xlane.f32.xlu0 %v2028
  %v2030 = vpop.xlane.xlu0 %2029
  %v2031 = vsel %vm999, %v1951, 0.0
  %2032 = vadd.xlane.f32.xlu0 %v2031
  %v2033 = vpop.xlane.xlu0 %2032
  %v2034 = vsel %vm999, %v1952, 0.0
  %2035 = vadd.xlane.f32.xlu0 %v2034
  %v2036 = vpop.xlane.xlu0 %2035
  %v2037 = vsel %vm999, %v1953, 0.0
  %2038 = vadd.xlane.f32.xlu0 %v2037
  %v2039 = vpop.xlane.xlu0 %2038
  %v2040 = vsel %vm999, %v1954, 0.0
  %2041 = vadd.xlane.f32.xlu0 %v2040
  %v2042 = vpop.xlane.xlu0 %2041
  %v2043 = vsel %vm999, %v1955, 0.0
  %2044 = vadd.xlane.f32.xlu0 %v2043
  %v2045 = vpop.xlane.xlu0 %2044
  %v2046 = vsel %vm999, %v1956, 0.0
  %2047 = vadd.xlane.f32.xlu0 %v2046
  %v2048 = vpop.xlane.xlu0 %2047
  %v2049 = vsel %vm999, %v1957, 0.0
  %2050 = vadd.xlane.f32.xlu0 %v2049
  %v2051 = vpop.xlane.xlu0 %2050
  %v2052 = vsel %vm999, %v1958, 0.0
  %2053 = vadd.xlane.f32.xlu0 %v2052
  %v2054 = vpop.xlane.xlu0 %2053
  %v2087 = vperm.slane %v1961, %v1129
  %v2088 = vperm.slane %v1964, %v1131
  %v2089 = vsel %vm1133, %v2088, %v2087
  %v2090 = vperm.slane %v1967, %v1129
  %v2091 = vperm.slane %v1970, %v1131
  %v2092 = vsel %vm1133, %v2091, %v2090
  %v2093 = vperm.slane %v1973, %v1129
  %v2094 = vperm.slane %v1976, %v1131
  %v2095 = vsel %vm1133, %v2094, %v2093
  %v2096 = vperm.slane %v1979, %v1129
  %v2097 = vperm.slane %v1982, %v1131
  %v2098 = vsel %vm1133, %v2097, %v2096
  %v2099 = vperm.slane %v1985, %v1129
  %v2100 = vperm.slane %v1988, %v1131
  %v2101 = vsel %vm1133, %v2100, %v2099
  %v2102 = vperm.slane %v1991, %v1129
  %v2103 = vperm.slane %v1994, %v1131
  %v2104 = vsel %vm1133, %v2103, %v2102
  %v2105 = vperm.slane %v1997, %v1129
  %v2106 = vperm.slane %v2000, %v1131
  %v2107 = vsel %vm1133, %v2106, %v2105
  %v2108 = vperm.slane %v2003, %v1129
  %v2109 = vperm.slane %v2006, %v1131
  %v2110 = vsel %vm1133, %v2109, %v2108
  %v2111 = vperm.slane %v2009, %v1129
  %v2112 = vperm.slane %v2012, %v1131
  %v2113 = vsel %vm1133, %v2112, %v2111
  %v2114 = vperm.slane %v2015, %v1129
  %v2115 = vperm.slane %v2018, %v1131
  %v2116 = vsel %vm1133, %v2115, %v2114
  %v2117 = vperm.slane %v2021, %v1129
  %v2118 = vperm.slane %v2024, %v1131
  %v2119 = vsel %vm1133, %v2118, %v2117
  %v2120 = vperm.slane %v2027, %v1129
  %v2121 = vperm.slane %v2030, %v1131
  %v2122 = vsel %vm1133, %v2121, %v2120
  %v2123 = vperm.slane %v2033, %v1129
  %v2124 = vperm.slane %v2036, %v1131
  %v2125 = vsel %vm1133, %v2124, %v2123
  %v2126 = vperm.slane %v2039, %v1129
  %v2127 = vperm.slane %v2042, %v1131
  %v2128 = vsel %vm1133, %v2127, %v2126
  %v2129 = vperm.slane %v2045, %v1129
  %v2130 = vperm.slane %v2048, %v1131
  %v2131 = vsel %vm1133, %v2130, %v2129
  %v2132 = vperm.slane %v2051, %v1129
  %v2133 = vperm.slane %v2054, %v1131
  %v2134 = vsel %vm1133, %v2133, %v2132
  %v2135 = vsel %vm1180, %v2092, %v2089
  %v2136 = vsel %vm1182, %v2095, %v2135
  %v2137 = vsel %vm1184, %v2098, %v2136
  %v2138 = vsel %vm1186, %v2101, %v2137
  %v2139 = vsel %vm1188, %v2104, %v2138
  %v2140 = vsel %vm1190, %v2107, %v2139
  %v2141 = vsel %vm1192, %v2110, %v2140
  %v2142 = vsel %vm1180, %v2116, %v2113
  %v2143 = vsel %vm1182, %v2119, %v2142
  %v2144 = vsel %vm1184, %v2122, %v2143
  %v2145 = vsel %vm1186, %v2125, %v2144
  %v2146 = vsel %vm1188, %v2128, %v2145
  %v2147 = vsel %vm1190, %v2131, %v2146
  %v2148 = vsel %vm1192, %v2134, %v2147
  %v2151 = vsel %vm999, %v850, 0
  %v2153 = vsel %vm999, %v853, 0
  %v2156 = vsel %vm999, %v882, 0
  %v2159 = vsel %vm999, %v885, 0
  %2161 = vmatpush.xpose.msra.mxu0 0.0
  %2162 = vmatpush.xpose.msra.mxu0 0.0
  %2163 = vmatpush.xpose.msra.mxu0 0.0
  %2164 = vmatpush.xpose.msra.mxu0 0.0
  %2165 = vmatpush.xpose.msra.mxu0 0.0
  %2166 = vmatpush.xpose.msra.mxu0 0.0
  %2167 = vmatpush.xpose.msra.mxu0 0.0
  %2168 = vmatpush.xpose.msra.mxu0 0.0
  %2169 = vmatpush.xpose.msra.mxu0 0.0
  %2170 = vmatpush.xpose.msra.mxu0 0.0
  %2171 = vmatpush.xpose.msra.mxu0 0.0
  %2172 = vmatpush.xpose.msra.mxu0 0.0
  %2173 = vmatpush.xpose.msra.mxu0 0.0
  %2174 = vmatpush.xpose.msra.mxu0 0.0
  %2175 = vmatpush.xpose.msra.mxu0 %v2159
  %2176 = vmatpush.xpose.msra.mxu0 %v2156
  %2177 = vmatmul.f32.gmra.mxu0 %v2151
  %v2178 = vpop.f32.mrf.mxu0
  %v2179 = vadd.f32 %v2141, %v2178
  %2180 = vmatmul.f32.gmra.mxu0 %v2153
  %v2181 = vpop.f32.mrf.mxu0
  %v2182 = vadd.f32 %v2148, %v2181
  %2183 = vdwg.mxu0
  %v2184 = vmul.f32 %v2179, 0.25
  %v2185 = vmul.f32 %v2182, 0.25
  %v2186 = vsel %vm999, %v2184, -inf
  %2187 = vmax.xlane.f32.xlu0 %v2186
  %v2188 = vpop.xlane.xlu0 %2187
  %v2189 = vsel %vm999, %v2185, -inf
  %2190 = vmax.xlane.f32.xlu0 %v2189
  %v2191 = vpop.xlane.xlu0 %2190
  %v2192 = vsub.f32 %v2184, %v2188
  %v2193 = vsub.f32 %v2185, %v2191
  %v2194 = vmul.f32 %v2192, 1.442695
  %v2195 = vpow.pop %v2194
  %v2196 = vmul.f32 %v2193, 1.442695
  %v2197 = vpow.pop %v2196
  %v2198 = vsel %vm999, %v2195, 0.0
  %2199 = vadd.xlane.f32.xlu0 %v2198
  %v2200 = vpop.xlane.xlu0 %2199
  %v2201 = vsel %vm999, %v2197, 0.0
  %2202 = vadd.xlane.f32.xlu0 %v2201
  %v2203 = vpop.xlane.xlu0 %2202
  %v2204 = vrcp.pop %v2200
  %v2205 = vrcp.pop %v2203
  %v2206 = vmul.f32 %v2195, %v2204
  %v2207 = vmul.f32 %v2197, %v2205
  %v2209 = vsel %vm999, %v2206, 0
  %v2212 = vsel %vm999, %v2207, 0
  %2214 = vmatpush.msra.mxu0 0.0
  %2215 = vmatpush.msra.mxu0 0.0
  %2216 = vmatpush.msra.mxu0 0.0
  %2217 = vmatpush.msra.mxu0 0.0
  %2218 = vmatpush.msra.mxu0 0.0
  %2219 = vmatpush.msra.mxu0 0.0
  %2220 = vmatpush.msra.mxu0 0.0
  %2221 = vmatpush.msra.mxu0 0.0
  %2222 = vmatpush.msra.mxu0 0.0
  %2223 = vmatpush.msra.mxu0 0.0
  %2224 = vmatpush.msra.mxu0 0.0
  %2225 = vmatpush.msra.mxu0 0.0
  %2226 = vmatpush.msra.mxu0 0.0
  %2227 = vmatpush.msra.mxu0 0.0
  %2228 = vmatpush.msra.mxu0 %v917
  %2229 = vmatpush.msra.mxu0 %v914
  %2230 = vmatmul.f32.gmra.mxu0 %v2209
  %v2231 = vpop.f32.mrf.mxu0
  %v2232 = vadd.f32 0.0, %v2231
  %2233 = vmatmul.f32.gmra.mxu0 %v2212
  %v2234 = vpop.f32.mrf.mxu0
  %v2235 = vadd.f32 0.0, %v2234
  %2236 = vdwg.mxu0
  %v2237 = vmul.f32 %v1895, %v1322
  %v2238 = vmul.f32 %v1895, %v1324
  %v2239 = vmul.f32 %v1896, %v1326
  %v2240 = vmul.f32 %v1896, %v1328
  %v2241 = vmul.f32 %v1897, %v1330
  %v2242 = vmul.f32 %v1897, %v1332
  %v2243 = vmul.f32 %v1898, %v1334
  %v2244 = vmul.f32 %v1898, %v1336
  %v2245 = vmul.f32 %v1899, %v1338
  %v2246 = vmul.f32 %v1899, %v1340
  %v2247 = vmul.f32 %v1900, %v1342
  %v2248 = vmul.f32 %v1900, %v1344
  %v2249 = vmul.f32 %v1901, %v1346
  %v2250 = vmul.f32 %v1901, %v1348
  %v2251 = vmul.f32 %v1902, %v1350
  %v2252 = vmul.f32 %v1902, %v1352
  %v2253 = vmul.f32 %v1903, %v1354
  %v2254 = vmul.f32 %v1903, %v1356
  %v2255 = vmul.f32 %v1904, %v1358
  %v2256 = vmul.f32 %v1904, %v1360
  %v2257 = vmul.f32 %v1905, %v1362
  %v2258 = vmul.f32 %v1905, %v1364
  %v2259 = vmul.f32 %v1906, %v1366
  %v2260 = vmul.f32 %v1906, %v1368
  %v2261 = vmul.f32 %v1907, %v1370
  %v2262 = vmul.f32 %v1907, %v1372
  %v2263 = vmul.f32 %v1908, %v1374
  %v2264 = vmul.f32 %v1908, %v1376
  %v2265 = vmul.f32 %v1909, %v1378
  %v2266 = vmul.f32 %v1909, %v1380
  %v2267 = vmul.f32 %v1910, %v1382
  %v2268 = vmul.f32 %v1910, %v1384
  %2301 = vrot.lane.b32.xlu0 %v2237, 112
  %v2302 = vpop.permute.xlu0 %2301
  %2303 = vrot.lane.b32.xlu0 %v2238, 112
  %v2304 = vpop.permute.xlu0 %2303
  %2305 = vrot.lane.b32.xlu0 %v2239, 112
  %v2306 = vpop.permute.xlu0 %2305
  %2307 = vrot.lane.b32.xlu0 %v2240, 112
  %v2308 = vpop.permute.xlu0 %2307
  %2309 = vrot.lane.b32.xlu0 %v2241, 112
  %v2310 = vpop.permute.xlu0 %2309
  %2311 = vrot.lane.b32.xlu0 %v2242, 112
  %v2312 = vpop.permute.xlu0 %2311
  %2313 = vrot.lane.b32.xlu0 %v2243, 112
  %v2314 = vpop.permute.xlu0 %2313
  %2315 = vrot.lane.b32.xlu0 %v2244, 112
  %v2316 = vpop.permute.xlu0 %2315
  %2317 = vrot.lane.b32.xlu0 %v2245, 112
  %v2318 = vpop.permute.xlu0 %2317
  %2319 = vrot.lane.b32.xlu0 %v2246, 112
  %v2320 = vpop.permute.xlu0 %2319
  %2321 = vrot.lane.b32.xlu0 %v2247, 112
  %v2322 = vpop.permute.xlu0 %2321
  %2323 = vrot.lane.b32.xlu0 %v2248, 112
  %v2324 = vpop.permute.xlu0 %2323
  %2325 = vrot.lane.b32.xlu0 %v2249, 112
  %v2326 = vpop.permute.xlu0 %2325
  %2327 = vrot.lane.b32.xlu0 %v2250, 112
  %v2328 = vpop.permute.xlu0 %2327
  %2329 = vrot.lane.b32.xlu0 %v2251, 112
  %v2330 = vpop.permute.xlu0 %2329
  %2331 = vrot.lane.b32.xlu0 %v2252, 112
  %v2332 = vpop.permute.xlu0 %2331
  %2333 = vrot.lane.b32.xlu0 %v2253, 112
  %v2334 = vpop.permute.xlu0 %2333
  %2335 = vrot.lane.b32.xlu0 %v2254, 112
  %v2336 = vpop.permute.xlu0 %2335
  %2337 = vrot.lane.b32.xlu0 %v2255, 112
  %v2338 = vpop.permute.xlu0 %2337
  %2339 = vrot.lane.b32.xlu0 %v2256, 112
  %v2340 = vpop.permute.xlu0 %2339
  %2341 = vrot.lane.b32.xlu0 %v2257, 112
  %v2342 = vpop.permute.xlu0 %2341
  %2343 = vrot.lane.b32.xlu0 %v2258, 112
  %v2344 = vpop.permute.xlu0 %2343
  %2345 = vrot.lane.b32.xlu0 %v2259, 112
  %v2346 = vpop.permute.xlu0 %2345
  %2347 = vrot.lane.b32.xlu0 %v2260, 112
  %v2348 = vpop.permute.xlu0 %2347
  %2349 = vrot.lane.b32.xlu0 %v2261, 112
  %v2350 = vpop.permute.xlu0 %2349
  %2351 = vrot.lane.b32.xlu0 %v2262, 112
  %v2352 = vpop.permute.xlu0 %2351
  %2353 = vrot.lane.b32.xlu0 %v2263, 112
  %v2354 = vpop.permute.xlu0 %2353
  %2355 = vrot.lane.b32.xlu0 %v2264, 112
  %v2356 = vpop.permute.xlu0 %2355
  %2357 = vrot.lane.b32.xlu0 %v2265, 112
  %v2358 = vpop.permute.xlu0 %2357
  %2359 = vrot.lane.b32.xlu0 %v2266, 112
  %v2360 = vpop.permute.xlu0 %2359
  %2361 = vrot.lane.b32.xlu0 %v2267, 112
  %v2362 = vpop.permute.xlu0 %2361
  %2363 = vrot.lane.b32.xlu0 %v2268, 112
  %v2364 = vpop.permute.xlu0 %2363
  %v2397 = vsel %vm999, %v2302, 0.0
  %2398 = vadd.xlane.f32.xlu0 %v2397
  %v2399 = vpop.xlane.xlu0 %2398
  %v2400 = vsel %vm999, %v2304, 0.0
  %2401 = vadd.xlane.f32.xlu0 %v2400
  %v2402 = vpop.xlane.xlu0 %2401
  %v2403 = vsel %vm999, %v2306, 0.0
  %2404 = vadd.xlane.f32.xlu0 %v2403
  %v2405 = vpop.xlane.xlu0 %2404
  %v2406 = vsel %vm999, %v2308, 0.0
  %2407 = vadd.xlane.f32.xlu0 %v2406
  %v2408 = vpop.xlane.xlu0 %2407
  %v2409 = vsel %vm999, %v2310, 0.0
  %2410 = vadd.xlane.f32.xlu0 %v2409
  %v2411 = vpop.xlane.xlu0 %2410
  %v2412 = vsel %vm999, %v2312, 0.0
  %2413 = vadd.xlane.f32.xlu0 %v2412
  %v2414 = vpop.xlane.xlu0 %2413
  %v2415 = vsel %vm999, %v2314, 0.0
  %2416 = vadd.xlane.f32.xlu0 %v2415
  %v2417 = vpop.xlane.xlu0 %2416
  %v2418 = vsel %vm999, %v2316, 0.0
  %2419 = vadd.xlane.f32.xlu0 %v2418
  %v2420 = vpop.xlane.xlu0 %2419
  %v2421 = vsel %vm999, %v2318, 0.0
  %2422 = vadd.xlane.f32.xlu0 %v2421
  %v2423 = vpop.xlane.xlu0 %2422
  %v2424 = vsel %vm999, %v2320, 0.0
  %2425 = vadd.xlane.f32.xlu0 %v2424
  %v2426 = vpop.xlane.xlu0 %2425
  %v2427 = vsel %vm999, %v2322, 0.0
  %2428 = vadd.xlane.f32.xlu0 %v2427
  %v2429 = vpop.xlane.xlu0 %2428
  %v2430 = vsel %vm999, %v2324, 0.0
  %2431 = vadd.xlane.f32.xlu0 %v2430
  %v2432 = vpop.xlane.xlu0 %2431
  %v2433 = vsel %vm999, %v2326, 0.0
  %2434 = vadd.xlane.f32.xlu0 %v2433
  %v2435 = vpop.xlane.xlu0 %2434
  %v2436 = vsel %vm999, %v2328, 0.0
  %2437 = vadd.xlane.f32.xlu0 %v2436
  %v2438 = vpop.xlane.xlu0 %2437
  %v2439 = vsel %vm999, %v2330, 0.0
  %2440 = vadd.xlane.f32.xlu0 %v2439
  %v2441 = vpop.xlane.xlu0 %2440
  %v2442 = vsel %vm999, %v2332, 0.0
  %2443 = vadd.xlane.f32.xlu0 %v2442
  %v2444 = vpop.xlane.xlu0 %2443
  %v2445 = vsel %vm999, %v2334, 0.0
  %2446 = vadd.xlane.f32.xlu0 %v2445
  %v2447 = vpop.xlane.xlu0 %2446
  %v2448 = vsel %vm999, %v2336, 0.0
  %2449 = vadd.xlane.f32.xlu0 %v2448
  %v2450 = vpop.xlane.xlu0 %2449
  %v2451 = vsel %vm999, %v2338, 0.0
  %2452 = vadd.xlane.f32.xlu0 %v2451
  %v2453 = vpop.xlane.xlu0 %2452
  %v2454 = vsel %vm999, %v2340, 0.0
  %2455 = vadd.xlane.f32.xlu0 %v2454
  %v2456 = vpop.xlane.xlu0 %2455
  %v2457 = vsel %vm999, %v2342, 0.0
  %2458 = vadd.xlane.f32.xlu0 %v2457
  %v2459 = vpop.xlane.xlu0 %2458
  %v2460 = vsel %vm999, %v2344, 0.0
  %2461 = vadd.xlane.f32.xlu0 %v2460
  %v2462 = vpop.xlane.xlu0 %2461
  %v2463 = vsel %vm999, %v2346, 0.0
  %2464 = vadd.xlane.f32.xlu0 %v2463
  %v2465 = vpop.xlane.xlu0 %2464
  %v2466 = vsel %vm999, %v2348, 0.0
  %2467 = vadd.xlane.f32.xlu0 %v2466
  %v2468 = vpop.xlane.xlu0 %2467
  %v2469 = vsel %vm999, %v2350, 0.0
  %2470 = vadd.xlane.f32.xlu0 %v2469
  %v2471 = vpop.xlane.xlu0 %2470
  %v2472 = vsel %vm999, %v2352, 0.0
  %2473 = vadd.xlane.f32.xlu0 %v2472
  %v2474 = vpop.xlane.xlu0 %2473
  %v2475 = vsel %vm999, %v2354, 0.0
  %2476 = vadd.xlane.f32.xlu0 %v2475
  %v2477 = vpop.xlane.xlu0 %2476
  %v2478 = vsel %vm999, %v2356, 0.0
  %2479 = vadd.xlane.f32.xlu0 %v2478
  %v2480 = vpop.xlane.xlu0 %2479
  %v2481 = vsel %vm999, %v2358, 0.0
  %2482 = vadd.xlane.f32.xlu0 %v2481
  %v2483 = vpop.xlane.xlu0 %2482
  %v2484 = vsel %vm999, %v2360, 0.0
  %2485 = vadd.xlane.f32.xlu0 %v2484
  %v2486 = vpop.xlane.xlu0 %2485
  %v2487 = vsel %vm999, %v2362, 0.0
  %2488 = vadd.xlane.f32.xlu0 %v2487
  %v2489 = vpop.xlane.xlu0 %2488
  %v2490 = vsel %vm999, %v2364, 0.0
  %2491 = vadd.xlane.f32.xlu0 %v2490
  %v2492 = vpop.xlane.xlu0 %2491
  %2493 = vrot.lane.b32.xlu0 %v850, 112
  %v2494 = vpop.permute.xlu0 %2493
  %2495 = vrot.lane.b32.xlu0 %v853, 112
  %v2496 = vpop.permute.xlu0 %2495
  %2497 = vrot.lane.b32.xlu0 %v882, 112
  %v2498 = vpop.permute.xlu0 %2497
  %2499 = vrot.lane.b32.xlu0 %v885, 112
  %v2500 = vpop.permute.xlu0 %2499
  %v2533 = vperm.slane %v2399, %v1129
  %v2534 = vperm.slane %v2402, %v1131
  %v2535 = vsel %vm1133, %v2534, %v2533
  %v2536 = vperm.slane %v2405, %v1129
  %v2537 = vperm.slane %v2408, %v1131
  %v2538 = vsel %vm1133, %v2537, %v2536
  %v2539 = vperm.slane %v2411, %v1129
  %v2540 = vperm.slane %v2414, %v1131
  %v2541 = vsel %vm1133, %v2540, %v2539
  %v2542 = vperm.slane %v2417, %v1129
  %v2543 = vperm.slane %v2420, %v1131
  %v2544 = vsel %vm1133, %v2543, %v2542
  %v2545 = vperm.slane %v2423, %v1129
  %v2546 = vperm.slane %v2426, %v1131
  %v2547 = vsel %vm1133, %v2546, %v2545
  %v2548 = vperm.slane %v2429, %v1129
  %v2549 = vperm.slane %v2432, %v1131
  %v2550 = vsel %vm1133, %v2549, %v2548
  %v2551 = vperm.slane %v2435, %v1129
  %v2552 = vperm.slane %v2438, %v1131
  %v2553 = vsel %vm1133, %v2552, %v2551
  %v2554 = vperm.slane %v2441, %v1129
  %v2555 = vperm.slane %v2444, %v1131
  %v2556 = vsel %vm1133, %v2555, %v2554
  %v2557 = vperm.slane %v2447, %v1129
  %v2558 = vperm.slane %v2450, %v1131
  %v2559 = vsel %vm1133, %v2558, %v2557
  %v2560 = vperm.slane %v2453, %v1129
  %v2561 = vperm.slane %v2456, %v1131
  %v2562 = vsel %vm1133, %v2561, %v2560
  %v2563 = vperm.slane %v2459, %v1129
  %v2564 = vperm.slane %v2462, %v1131
  %v2565 = vsel %vm1133, %v2564, %v2563
  %v2566 = vperm.slane %v2465, %v1129
  %v2567 = vperm.slane %v2468, %v1131
  %v2568 = vsel %vm1133, %v2567, %v2566
  %v2569 = vperm.slane %v2471, %v1129
  %v2570 = vperm.slane %v2474, %v1131
  %v2571 = vsel %vm1133, %v2570, %v2569
  %v2572 = vperm.slane %v2477, %v1129
  %v2573 = vperm.slane %v2480, %v1131
  %v2574 = vsel %vm1133, %v2573, %v2572
  %v2575 = vperm.slane %v2483, %v1129
  %v2576 = vperm.slane %v2486, %v1131
  %v2577 = vsel %vm1133, %v2576, %v2575
  %v2578 = vperm.slane %v2489, %v1129
  %v2579 = vperm.slane %v2492, %v1131
  %v2580 = vsel %vm1133, %v2579, %v2578
  %v2581 = vsel %vm1180, %v2538, %v2535
  %v2582 = vsel %vm1182, %v2541, %v2581
  %v2583 = vsel %vm1184, %v2544, %v2582
  %v2584 = vsel %vm1186, %v2547, %v2583
  %v2585 = vsel %vm1188, %v2550, %v2584
  %v2586 = vsel %vm1190, %v2553, %v2585
  %v2587 = vsel %vm1192, %v2556, %v2586
  %v2588 = vsel %vm1180, %v2562, %v2559
  %v2589 = vsel %vm1182, %v2565, %v2588
  %v2590 = vsel %vm1184, %v2568, %v2589
  %v2591 = vsel %vm1186, %v2571, %v2590
  %v2592 = vsel %vm1188, %v2574, %v2591
  %v2593 = vsel %vm1190, %v2577, %v2592
  %v2594 = vsel %vm1192, %v2580, %v2593
  %v2597 = vsel %vm999, %v2494, 0
  %v2599 = vsel %vm999, %v2496, 0
  %v2601 = vsel %vm999, %v2498, 0
  %v2603 = vsel %vm999, %v2500, 0
  %2605 = vmatpush.xpose.msra.mxu0 0.0
  %2606 = vmatpush.xpose.msra.mxu0 0.0
  %2607 = vmatpush.xpose.msra.mxu0 0.0
  %2608 = vmatpush.xpose.msra.mxu0 0.0
  %2609 = vmatpush.xpose.msra.mxu0 0.0
  %2610 = vmatpush.xpose.msra.mxu0 0.0
  %2611 = vmatpush.xpose.msra.mxu0 0.0
  %2612 = vmatpush.xpose.msra.mxu0 0.0
  %2613 = vmatpush.xpose.msra.mxu0 0.0
  %2614 = vmatpush.xpose.msra.mxu0 0.0
  %2615 = vmatpush.xpose.msra.mxu0 0.0
  %2616 = vmatpush.xpose.msra.mxu0 0.0
  %2617 = vmatpush.xpose.msra.mxu0 0.0
  %2618 = vmatpush.xpose.msra.mxu0 0.0
  %2619 = vmatpush.xpose.msra.mxu0 %v2603
  %2620 = vmatpush.xpose.msra.mxu0 %v2601
  %2621 = vmatmul.f32.gmra.mxu0 %v2597
  %v2622 = vpop.f32.mrf.mxu0
  %v2623 = vadd.f32 %v2587, %v2622
  %2624 = vmatmul.f32.gmra.mxu0 %v2599
  %v2625 = vpop.f32.mrf.mxu0
  %v2626 = vadd.f32 %v2594, %v2625
  %2627 = vdwg.mxu0
  %v2628 = vmul.f32 %v2623, 0.25
  %v2629 = vmul.f32 %v2626, 0.25
  %v2630 = vsel %vm999, %v2628, -inf
  %2631 = vmax.xlane.f32.xlu0 %v2630
  %v2632 = vpop.xlane.xlu0 %2631
  %v2633 = vsel %vm999, %v2629, -inf
  %2634 = vmax.xlane.f32.xlu0 %v2633
  %v2635 = vpop.xlane.xlu0 %2634
  %v2636 = vsub.f32 %v2628, %v2632
  %v2637 = vsub.f32 %v2629, %v2635
  %v2638 = vmul.f32 %v2636, 1.442695
  %v2639 = vpow.pop %v2638
  %v2640 = vmul.f32 %v2637, 1.442695
  %v2641 = vpow.pop %v2640
  %v2642 = vsel %vm999, %v2639, 0.0
  %2643 = vadd.xlane.f32.xlu0 %v2642
  %v2644 = vpop.xlane.xlu0 %2643
  %v2645 = vsel %vm999, %v2641, 0.0
  %2646 = vadd.xlane.f32.xlu0 %v2645
  %v2647 = vpop.xlane.xlu0 %2646
  %v2648 = vrcp.pop %v2644
  %v2649 = vrcp.pop %v2647
  %v2650 = vmul.f32 %v2639, %v2648
  %v2651 = vmul.f32 %v2641, %v2649
  %2654 = vrot.lane.b32.xlu0 %v914, 112
  %v2655 = vpop.permute.xlu0 %2654
  %2656 = vrot.lane.b32.xlu0 %v917, 112
  %v2657 = vpop.permute.xlu0 %2656
  %v2661 = vsel %vm999, %v2650, 0
  %v2664 = vsel %vm999, %v2651, 0
  %2666 = vmatpush.msra.mxu0 0.0
  %2667 = vmatpush.msra.mxu0 0.0
  %2668 = vmatpush.msra.mxu0 0.0
  %2669 = vmatpush.msra.mxu0 0.0
  %2670 = vmatpush.msra.mxu0 0.0
  %2671 = vmatpush.msra.mxu0 0.0
  %2672 = vmatpush.msra.mxu0 0.0
  %2673 = vmatpush.msra.mxu0 0.0
  %2674 = vmatpush.msra.mxu0 0.0
  %2675 = vmatpush.msra.mxu0 0.0
  %2676 = vmatpush.msra.mxu0 0.0
  %2677 = vmatpush.msra.mxu0 0.0
  %2678 = vmatpush.msra.mxu0 0.0
  %2679 = vmatpush.msra.mxu0 0.0
  %2680 = vmatpush.msra.mxu0 %v2657
  %2681 = vmatpush.msra.mxu0 %v2655
  %2682 = vmatmul.f32.gmra.mxu0 %v2661
  %v2683 = vpop.f32.mrf.mxu0
  %v2684 = vadd.f32 0.0, %v2683
  %2685 = vmatmul.f32.gmra.mxu0 %v2664
  %v2686 = vpop.f32.mrf.mxu0
  %v2687 = vadd.f32 0.0, %v2686
  %2688 = vdwg.mxu0
  %2691 = vrot.lane.b32.xlu0 %v2684, 16
  %v2692 = vpop.permute.xlu0 %2691
  %2693 = vrot.lane.b32.xlu0 %v2687, 16
  %v2694 = vpop.permute.xlu0 %2693
  %v2697 = vsel %vm999, %v2232, %v2692
  %v2698 = vsel %vm999, %v2235, %v2694
  %v2700 = vsel %vm616, %v1877, 0
  %v2703 = vsel %vm616, %v1878, 0
  %v2706 = vsel %vm616, %v2697, 0
  %v2709 = vsel %vm616, %v2698, 0
  %2711 = vmatpush.msra.mxu0 0.0
  %2712 = vmatpush.msra.mxu0 0.0
  %2713 = vmatpush.msra.mxu0 0.0
  %2714 = vmatpush.msra.mxu0 0.0
  %2715 = vmatpush.msra.mxu0 0.0
  %2716 = vmatpush.msra.mxu0 0.0
  %2717 = vmatpush.msra.mxu0 0.0
  %2718 = vmatpush.msra.mxu0 0.0
  %2719 = vmatpush.msra.mxu0 0.0
  %2720 = vmatpush.msra.mxu0 0.0
  %2721 = vmatpush.msra.mxu0 0.0
  %2722 = vmatpush.msra.mxu0 0.0
  %2723 = vmatpush.msra.mxu0 %v698
  %2724 = vmatpush.msra.mxu0 %v697
  %2725 = vmatpush.msra.mxu0 %v696
  %2726 = vmatpush.msra.mxu0 %v695
  %2727 = vmatmul.f32.gmra.mxu0 %v2700
  %v2728 = vpop.f32.mrf.mxu0
  %v2729 = vadd.f32 0.0, %v2728
  %2730 = vmatmul.f32.gmra.mxu0 %v2703
  %v2731 = vpop.f32.mrf.mxu0
  %v2732 = vadd.f32 0.0, %v2731
  %2733 = vmatmul.f32.gmra.mxu0 %v2706
  %v2734 = vpop.f32.mrf.mxu0
  %v2735 = vadd.f32 0.0, %v2734
  %2736 = vmatmul.f32.gmra.mxu0 %v2709
  %v2737 = vpop.f32.mrf.mxu0
  %v2738 = vadd.f32 0.0, %v2737
  %2739 = vdwg.mxu0
  %v2740 = vadd.f32 %v676, %v2729
  %v2741 = vadd.f32 %v677, %v2732
  %v2742 = vadd.f32 %v678, %v2735
  %v2743 = vadd.f32 %v679, %v2738
  %v2745 = vperm.slane %v699, 0
  %v2747 = vadd.f32 %v2740, %v2745
  %v2748 = vadd.f32 %v2741, %v2745
  %v2749 = vadd.f32 %v2742, %v2745
  %v2750 = vadd.f32 %v2743, %v2745
  %v2751 = vld [vmem:[%s45] sm:$0xff]
  %v2752 = vld [vmem:[%s45 + $0x8] sm:$0xff]
  %v2753 = vld [vmem:[%s45 + $0x10] sm:$0xff]
  %v2754 = vld [vmem:[%s45 + $0x18] sm:$0xff]
  %v2755 = vld [vmem:[%s47] sm:$0x1]
  %v2756 = vld [vmem:[%s49] sm:$0xff]
  %v2757 = vld [vmem:[%s49 + $0x8] sm:$0xff]
  %v2758 = vld [vmem:[%s49 + $0x10] sm:$0xff]
  %v2759 = vld [vmem:[%s49 + $0x18] sm:$0xff]
  %v2760 = vld [vmem:[%s49 + $0x20] sm:$0xff]
  %v2761 = vld [vmem:[%s49 + $0x28] sm:$0xff]
  %v2762 = vld [vmem:[%s49 + $0x30] sm:$0xff]
  %v2763 = vld [vmem:[%s49 + $0x38] sm:$0xff]
  %v2764 = vld [vmem:[%s51] sm:$0x1]
  %v2765 = vld [vmem:[%s53] sm:$0x1]
  %v2766 = vld [vmem:[%s55] sm:$0x1]
  %v2767 = vsel %vm616, %v2747, 0.0
  %2768 = vadd.xlane.f32.xlu0 %v2767
  %v2769 = vpop.xlane.xlu0 %2768
  %v2770 = vsel %vm616, %v2748, 0.0
  %2771 = vadd.xlane.f32.xlu0 %v2770
  %v2772 = vpop.xlane.xlu0 %2771
  %v2773 = vsel %vm616, %v2749, 0.0
  %2774 = vadd.xlane.f32.xlu0 %v2773
  %v2775 = vpop.xlane.xlu0 %2774
  %v2776 = vsel %vm616, %v2750, 0.0
  %2777 = vadd.xlane.f32.xlu0 %v2776
  %v2778 = vpop.xlane.xlu0 %2777
  %v2779 = vmul.f32 %v2769, %v720
  %v2780 = vmul.f32 %v2772, %v720
  %v2781 = vmul.f32 %v2775, %v720
  %v2782 = vmul.f32 %v2778, %v720
  %v2783 = vsub.f32 %v2747, %v2779
  %v2784 = vsub.f32 %v2748, %v2780
  %v2785 = vsub.f32 %v2749, %v2781
  %v2786 = vsub.f32 %v2750, %v2782
  %v2787 = vmul.f32 %v2783, %v2783
  %v2788 = vmul.f32 %v2784, %v2784
  %v2789 = vmul.f32 %v2785, %v2785
  %v2790 = vmul.f32 %v2786, %v2786
  %v2791 = vsel %vm616, %v2787, 0.0
  %2792 = vadd.xlane.f32.xlu0 %v2791
  %v2793 = vpop.xlane.xlu0 %2792
  %v2794 = vsel %vm616, %v2788, 0.0
  %2795 = vadd.xlane.f32.xlu0 %v2794
  %v2796 = vpop.xlane.xlu0 %2795
  %v2797 = vsel %vm616, %v2789, 0.0
  %2798 = vadd.xlane.f32.xlu0 %v2797
  %v2799 = vpop.xlane.xlu0 %2798
  %v2800 = vsel %vm616, %v2790, 0.0
  %2801 = vadd.xlane.f32.xlu0 %v2800
  %v2802 = vpop.xlane.xlu0 %2801
  %v2803 = vmul.f32 %v2793, %v720
  %v2804 = vmul.f32 %v2796, %v720
  %v2805 = vmul.f32 %v2799, %v720
  %v2806 = vmul.f32 %v2802, %v720
  %v2807 = vadd.f32 %v2803, 1e-05
  %v2808 = vadd.f32 %v2804, 1e-05
  %v2809 = vadd.f32 %v2805, 1e-05
  %v2810 = vadd.f32 %v2806, 1e-05
  %v2811 = vrsqrt.pop %v2807
  %v2812 = vmul.f32 %v2811, %v2807
  %v2813 = vmul.f32 %v2812, %v2811
  %v2814 = vmul.f32 0.5, %v2813
  %v2815 = vsub.f32 1.5, %v2814
  %v2816 = vmul.f32 %v2811, %v2815
  %vm2817 = vweird.f32 %v2807
  %vm2818 = vweird.f32 %v2811
  %vm2819 = vmor %vm2817, %vm2818
  %v2820 = vsel %vm2819, %v2811, %v2816
  %v2821 = vrsqrt.pop %v2808
  %v2822 = vmul.f32 %v2821, %v2808
  %v2823 = vmul.f32 %v2822, %v2821
  %v2824 = vmul.f32 0.5, %v2823
  %v2825 = vsub.f32 1.5, %v2824
  %v2826 = vmul.f32 %v2821, %v2825
  %vm2827 = vweird.f32 %v2808
  %vm2828 = vweird.f32 %v2821
  %vm2829 = vmor %vm2827, %vm2828
  %v2830 = vsel %vm2829, %v2821, %v2826
  %v2831 = vrsqrt.pop %v2809
  %v2832 = vmul.f32 %v2831, %v2809
  %v2833 = vmul.f32 %v2832, %v2831
  %v2834 = vmul.f32 0.5, %v2833
  %v2835 = vsub.f32 1.5, %v2834
  %v2836 = vmul.f32 %v2831, %v2835
  %vm2837 = vweird.f32 %v2809
  %vm2838 = vweird.f32 %v2831
  %vm2839 = vmor %vm2837, %vm2838
  %v2840 = vsel %vm2839, %v2831, %v2836
  %v2841 = vrsqrt.pop %v2810
  %v2842 = vmul.f32 %v2841, %v2810
  %v2843 = vmul.f32 %v2842, %v2841
  %v2844 = vmul.f32 0.5, %v2843
  %v2845 = vsub.f32 1.5, %v2844
  %v2846 = vmul.f32 %v2841, %v2845
  %vm2847 = vweird.f32 %v2810
  %vm2848 = vweird.f32 %v2841
  %vm2849 = vmor %vm2847, %vm2848
  %v2850 = vsel %vm2849, %v2841, %v2846
  %v2851 = vmul.f32 %v2783, %v2820
  %v2852 = vmul.f32 %v2784, %v2830
  %v2853 = vmul.f32 %v2785, %v2840
  %v2854 = vmul.f32 %v2786, %v2850
  %v2856 = vperm.slane %v2765, 0
  %v2858 = vmul.f32 %v2851, %v2856
  %v2859 = vmul.f32 %v2852, %v2856
  %v2860 = vmul.f32 %v2853, %v2856
  %v2861 = vmul.f32 %v2854, %v2856
  %v2863 = vperm.slane %v2766, 0
  %v2865 = vadd.f32 %v2858, %v2863
  %v2866 = vadd.f32 %v2859, %v2863
  %v2867 = vadd.f32 %v2860, %v2863
  %v2868 = vadd.f32 %v2861, %v2863
  %v2870 = vperm.slane %v2755, 0
  %v2873 = vsel %vm616, %v2865, 0
  %v2876 = vsel %vm616, %v2866, 0
  %v2879 = vsel %vm616, %v2867, 0
  %v2882 = vsel %vm616, %v2868, 0
  %2884 = vmatpush.msra.mxu0 0.0
  %2885 = vmatpush.msra.mxu0 0.0
  %2886 = vmatpush.msra.mxu0 0.0
  %2887 = vmatpush.msra.mxu0 0.0
  %2888 = vmatpush.msra.mxu0 0.0
  %2889 = vmatpush.msra.mxu0 0.0
  %2890 = vmatpush.msra.mxu0 0.0
  %2891 = vmatpush.msra.mxu0 0.0
  %2892 = vmatpush.msra.mxu0 0.0
  %2893 = vmatpush.msra.mxu0 0.0
  %2894 = vmatpush.msra.mxu0 0.0
  %2895 = vmatpush.msra.mxu0 0.0
  %2896 = vmatpush.msra.mxu0 %v2754
  %2897 = vmatpush.msra.mxu0 %v2753
  %2898 = vmatpush.msra.mxu0 %v2752
  %2899 = vmatpush.msra.mxu0 %v2751
  %2900 = vmatmul.f32.gmra.mxu0 %v2873
  %v2901 = vpop.f32.mrf.mxu0
  %v2902 = vadd.f32 %v2870, %v2901
  %2903 = vmatmul.f32.gmra.mxu0 %v2876
  %v2904 = vpop.f32.mrf.mxu0
  %v2905 = vadd.f32 %v2870, %v2904
  %2906 = vmatmul.f32.gmra.mxu0 %v2879
  %v2907 = vpop.f32.mrf.mxu0
  %v2908 = vadd.f32 %v2870, %v2907
  %2909 = vmatmul.f32.gmra.mxu0 %v2882
  %v2910 = vpop.f32.mrf.mxu0
  %v2911 = vadd.f32 %v2870, %v2910
  %2912 = vdwg.mxu0
  %v2913 = vmax.f32 %v2902, 0.0
  %v2914 = vmax.f32 %v2905, 0.0
  %v2915 = vmax.f32 %v2908, 0.0
  %v2916 = vmax.f32 %v2911, 0.0
  %vm2917 = vcmask 523264
  %v2919 = vsel %vm2917, %v2913, 0
  %v2922 = vsel %vm2917, %v2914, 0
  %v2925 = vsel %vm2917, %v2915, 0
  %v2928 = vsel %vm2917, %v2916, 0
  %2930 = vmatpush.msra.mxu0 0.0
  %2931 = vmatpush.msra.mxu0 0.0
  %2932 = vmatpush.msra.mxu0 0.0
  %2933 = vmatpush.msra.mxu0 0.0
  %2934 = vmatpush.msra.mxu0 0.0
  %2935 = vmatpush.msra.mxu0 0.0
  %2936 = vmatpush.msra.mxu0 0.0
  %2937 = vmatpush.msra.mxu0 0.0
  %2938 = vmatpush.msra.mxu0 %v2763
  %2939 = vmatpush.msra.mxu0 %v2762
  %2940 = vmatpush.msra.mxu0 %v2761
  %2941 = vmatpush.msra.mxu0 %v2760
  %2942 = vmatpush.msra.mxu0 %v2759
  %2943 = vmatpush.msra.mxu0 %v2758
  %2944 = vmatpush.msra.mxu0 %v2757
  %2945 = vmatpush.msra.mxu0 %v2756
  %2946 = vmatmul.f32.gmra.mxu0 %v2919
  %v2947 = vpop.f32.mrf.mxu0
  %v2948 = vadd.f32 0.0, %v2947
  %2949 = vmatmul.f32.gmra.mxu0 %v2922
  %v2950 = vpop.f32.mrf.mxu0
  %v2951 = vadd.f32 0.0, %v2950
  %2952 = vmatmul.f32.gmra.mxu0 %v2925
  %v2953 = vpop.f32.mrf.mxu0
  %v2954 = vadd.f32 0.0, %v2953
  %2955 = vmatmul.f32.gmra.mxu0 %v2928
  %v2956 = vpop.f32.mrf.mxu0
  %v2957 = vadd.f32 0.0, %v2956
  %2958 = vdwg.mxu0
  %v2959 = vadd.f32 %v2747, %v2948
  %v2960 = vadd.f32 %v2748, %v2951
  %v2961 = vadd.f32 %v2749, %v2954
  %v2962 = vadd.f32 %v2750, %v2957
  %v2964 = vperm.slane %v2764, 0
  %v2966 = vadd.f32 %v2959, %v2964
  %v2967 = vadd.f32 %v2960, %v2964
  %v2968 = vadd.f32 %v2961, %v2964
  %v2969 = vadd.f32 %v2962, %v2964
  %v2970 = vld [vmem:[%s57] sm:$0xff]
  %v2971 = vld [vmem:[%s57 + $0x8] sm:$0xff]
  %v2972 = vld [vmem:[%s57 + $0x10] sm:$0xff]
  %v2973 = vld [vmem:[%s57 + $0x18] sm:$0xff]
  %v2974 = vld [vmem:[%s59] sm:$0x1]
  %v2975 = vld [vmem:[%s61] sm:$0xff]
  %v2976 = vld [vmem:[%s61 + $0x8] sm:$0xff]
  %v2977 = vld [vmem:[%s61 + $0x10] sm:$0xff]
  %v2978 = vld [vmem:[%s61 + $0x18] sm:$0xff]
  %v2979 = vld [vmem:[%s63] sm:$0x1]
  %v2980 = vld [vmem:[%s65] sm:$0xff]
  %v2981 = vld [vmem:[%s65 + $0x8] sm:$0xff]
  %v2982 = vld [vmem:[%s65 + $0x10] sm:$0xff]
  %v2983 = vld [vmem:[%s65 + $0x18] sm:$0xff]
  %v2984 = vld [vmem:[%s67] sm:$0x1]
  %v2985 = vld [vmem:[%s69] sm:$0xff]
  %v2986 = vld [vmem:[%s69 + $0x8] sm:$0xff]
  %v2987 = vld [vmem:[%s69 + $0x10] sm:$0xff]
  %v2988 = vld [vmem:[%s69 + $0x18] sm:$0xff]
  %v2989 = vld [vmem:[%s71] sm:$0x1]
  %v2990 = vld [vmem:[%s73] sm:$0x1]
  %v2991 = vld [vmem:[%s75] sm:$0x1]
  %v2992 = vsel %vm616, %v2966, 0.0
  %2993 = vadd.xlane.f32.xlu0 %v2992
  %v2994 = vpop.xlane.xlu0 %2993
  %v2995 = vsel %vm616, %v2967, 0.0
  %2996 = vadd.xlane.f32.xlu0 %v2995
  %v2997 = vpop.xlane.xlu0 %2996
  %v2998 = vsel %vm616, %v2968, 0.0
  %2999 = vadd.xlane.f32.xlu0 %v2998
  %v3000 = vpop.xlane.xlu0 %2999
  %v3001 = vsel %vm616, %v2969, 0.0
  %3002 = vadd.xlane.f32.xlu0 %v3001
  %v3003 = vpop.xlane.xlu0 %3002
  %v3004 = vmul.f32 %v2994, %v720
  %v3005 = vmul.f32 %v2997, %v720
  %v3006 = vmul.f32 %v3000, %v720
  %v3007 = vmul.f32 %v3003, %v720
  %v3008 = vsub.f32 %v2966, %v3004
  %v3009 = vsub.f32 %v2967, %v3005
  %v3010 = vsub.f32 %v2968, %v3006
  %v3011 = vsub.f32 %v2969, %v3007
  %v3012 = vmul.f32 %v3008, %v3008
  %v3013 = vmul.f32 %v3009, %v3009
  %v3014 = vmul.f32 %v3010, %v3010
  %v3015 = vmul.f32 %v3011, %v3011
  %v3016 = vsel %vm616, %v3012, 0.0
  %3017 = vadd.xlane.f32.xlu0 %v3016
  %v3018 = vpop.xlane.xlu0 %3017
  %v3019 = vsel %vm616, %v3013, 0.0
  %3020 = vadd.xlane.f32.xlu0 %v3019
  %v3021 = vpop.xlane.xlu0 %3020
  %v3022 = vsel %vm616, %v3014, 0.0
  %3023 = vadd.xlane.f32.xlu0 %v3022
  %v3024 = vpop.xlane.xlu0 %3023
  %v3025 = vsel %vm616, %v3015, 0.0
  %3026 = vadd.xlane.f32.xlu0 %v3025
  %v3027 = vpop.xlane.xlu0 %3026
  %v3028 = vmul.f32 %v3018, %v720
  %v3029 = vmul.f32 %v3021, %v720
  %v3030 = vmul.f32 %v3024, %v720
  %v3031 = vmul.f32 %v3027, %v720
  %v3032 = vadd.f32 %v3028, 1e-05
  %v3033 = vadd.f32 %v3029, 1e-05
  %v3034 = vadd.f32 %v3030, 1e-05
  %v3035 = vadd.f32 %v3031, 1e-05
  %v3036 = vrsqrt.pop %v3032
  %v3037 = vmul.f32 %v3036, %v3032
  %v3038 = vmul.f32 %v3037, %v3036
  %v3039 = vmul.f32 0.5, %v3038
  %v3040 = vsub.f32 1.5, %v3039
  %v3041 = vmul.f32 %v3036, %v3040
  %vm3042 = vweird.f32 %v3032
  %vm3043 = vweird.f32 %v3036
  %vm3044 = vmor %vm3042, %vm3043
  %v3045 = vsel %vm3044, %v3036, %v3041
  %v3046 = vrsqrt.pop %v3033
  %v3047 = vmul.f32 %v3046, %v3033
  %v3048 = vmul.f32 %v3047, %v3046
  %v3049 = vmul.f32 0.5, %v3048
  %v3050 = vsub.f32 1.5, %v3049
  %v3051 = vmul.f32 %v3046, %v3050
  %vm3052 = vweird.f32 %v3033
  %vm3053 = vweird.f32 %v3046
  %vm3054 = vmor %vm3052, %vm3053
  %v3055 = vsel %vm3054, %v3046, %v3051
  %v3056 = vrsqrt.pop %v3034
  %v3057 = vmul.f32 %v3056, %v3034
  %v3058 = vmul.f32 %v3057, %v3056
  %v3059 = vmul.f32 0.5, %v3058
  %v3060 = vsub.f32 1.5, %v3059
  %v3061 = vmul.f32 %v3056, %v3060
  %vm3062 = vweird.f32 %v3034
  %vm3063 = vweird.f32 %v3056
  %vm3064 = vmor %vm3062, %vm3063
  %v3065 = vsel %vm3064, %v3056, %v3061
  %v3066 = vrsqrt.pop %v3035
  %v3067 = vmul.f32 %v3066, %v3035
  %v3068 = vmul.f32 %v3067, %v3066
  %v3069 = vmul.f32 0.5, %v3068
  %v3070 = vsub.f32 1.5, %v3069
  %v3071 = vmul.f32 %v3066, %v3070
  %vm3072 = vweird.f32 %v3035
  %vm3073 = vweird.f32 %v3066
  %vm3074 = vmor %vm3072, %vm3073
  %v3075 = vsel %vm3074, %v3066, %v3071
  %v3076 = vmul.f32 %v3008, %v3045
  %v3077 = vmul.f32 %v3009, %v3055
  %v3078 = vmul.f32 %v3010, %v3065
  %v3079 = vmul.f32 %v3011, %v3075
  %v3081 = vperm.slane %v2990, 0
  %v3083 = vmul.f32 %v3076, %v3081
  %v3084 = vmul.f32 %v3077, %v3081
  %v3085 = vmul.f32 %v3078, %v3081
  %v3086 = vmul.f32 %v3079, %v3081
  %v3088 = vperm.slane %v2991, 0
  %v3090 = vadd.f32 %v3083, %v3088
  %v3091 = vadd.f32 %v3084, %v3088
  %v3092 = vadd.f32 %v3085, %v3088
  %v3093 = vadd.f32 %v3086, %v3088
  %v3095 = vperm.slane %v2974, 0
  %v3098 = vsel %vm616, %v3090, 0
  %v3101 = vsel %vm616, %v3091, 0
  %v3104 = vsel %vm616, %v3092, 0
  %v3107 = vsel %vm616, %v3093, 0
  %3109 = vmatpush.msra.mxu0 0.0
  %3110 = vmatpush.msra.mxu0 0.0
  %3111 = vmatpush.msra.mxu0 0.0
  %3112 = vmatpush.msra.mxu0 0.0
  %3113 = vmatpush.msra.mxu0 0.0
  %3114 = vmatpush.msra.mxu0 0.0
  %3115 = vmatpush.msra.mxu0 0.0
  %3116 = vmatpush.msra.mxu0 0.0
  %3117 = vmatpush.msra.mxu0 0.0
  %3118 = vmatpush.msra.mxu0 0.0
  %3119 = vmatpush.msra.mxu0 0.0
  %3120 = vmatpush.msra.mxu0 0.0
  %3121 = vmatpush.msra.mxu0 %v2973
  %3122 = vmatpush.msra.mxu0 %v2972
  %3123 = vmatpush.msra.mxu0 %v2971
  %3124 = vmatpush.msra.mxu0 %v2970
  %3125 = vmatmul.f32.gmra.mxu0 %v3098
  %v3126 = vpop.f32.mrf.mxu0
  %v3127 = vadd.f32 %v3095, %v3126
  %3128 = vmatmul.f32.gmra.mxu0 %v3101
  %v3129 = vpop.f32.mrf.mxu0
  %v3130 = vadd.f32 %v3095, %v3129
  %3131 = vmatmul.f32.gmra.mxu0 %v3104
  %v3132 = vpop.f32.mrf.mxu0
  %v3133 = vadd.f32 %v3095, %v3132
  %3134 = vmatmul.f32.gmra.mxu0 %v3107
  %v3135 = vpop.f32.mrf.mxu0
  %v3136 = vadd.f32 %v3095, %v3135
  %3137 = vdwg.mxu0
  %v3139 = vperm.slane %v2979, 0
  %3141 = vmatpush.msra.mxu0 0.0
  %3142 = vmatpush.msra.mxu0 0.0
  %3143 = vmatpush.msra.mxu0 0.0
  %3144 = vmatpush.msra.mxu0 0.0
  %3145 = vmatpush.msra.mxu0 0.0
  %3146 = vmatpush.msra.mxu0 0.0
  %3147 = vmatpush.msra.mxu0 0.0
  %3148 = vmatpush.msra.mxu0 0.0
  %3149 = vmatpush.msra.mxu0 0.0
  %3150 = vmatpush.msra.mxu0 0.0
  %3151 = vmatpush.msra.mxu0 0.0
  %3152 = vmatpush.msra.mxu0 0.0
  %3153 = vmatpush.msra.mxu0 %v2978
  %3154 = vmatpush.msra.mxu0 %v2977
  %3155 = vmatpush.msra.mxu0 %v2976
  %3156 = vmatpush.msra.mxu0 %v2975
  %3157 = vmatmul.f32.gmra.mxu0 %v3098
  %v3158 = vpop.f32.mrf.mxu0
  %v3159 = vadd.f32 %v3139, %v3158
  %3160 = vmatmul.f32.gmra.mxu0 %v3101
  %v3161 = vpop.f32.mrf.mxu0
  %v3162 = vadd.f32 %v3139, %v3161
  %3163 = vmatmul.f32.gmra.mxu0 %v3104
  %v3164 = vpop.f32.mrf.mxu0
  %v3165 = vadd.f32 %v3139, %v3164
  %3166 = vmatmul.f32.gmra.mxu0 %v3107
  %v3167 = vpop.f32.mrf.mxu0
  %v3168 = vadd.f32 %v3139, %v3167
  %3169 = vdwg.mxu0
  %v3171 = vperm.slane %v2984, 0
  %3173 = vmatpush.msra.mxu0 0.0
  %3174 = vmatpush.msra.mxu0 0.0
  %3175 = vmatpush.msra.mxu0 0.0
  %3176 = vmatpush.msra.mxu0 0.0
  %3177 = vmatpush.msra.mxu0 0.0
  %3178 = vmatpush.msra.mxu0 0.0
  %3179 = vmatpush.msra.mxu0 0.0
  %3180 = vmatpush.msra.mxu0 0.0
  %3181 = vmatpush.msra.mxu0 0.0
  %3182 = vmatpush.msra.mxu0 0.0
  %3183 = vmatpush.msra.mxu0 0.0
  %3184 = vmatpush.msra.mxu0 0.0
  %3185 = vmatpush.msra.mxu0 %v2983
  %3186 = vmatpush.msra.mxu0 %v2982
  %3187 = vmatpush.msra.mxu0 %v2981
  %3188 = vmatpush.msra.mxu0 %v2980
  %3189 = vmatmul.f32.gmra.mxu0 %v3098
  %v3190 = vpop.f32.mrf.mxu0
  %v3191 = vadd.f32 %v3171, %v3190
  %3192 = vmatmul.f32.gmra.mxu0 %v3101
  %v3193 = vpop.f32.mrf.mxu0
  %v3194 = vadd.f32 %v3171, %v3193
  %3195 = vmatmul.f32.gmra.mxu0 %v3104
  %v3196 = vpop.f32.mrf.mxu0
  %v3197 = vadd.f32 %v3171, %v3196
  %3198 = vmatmul.f32.gmra.mxu0 %v3107
  %v3199 = vpop.f32.mrf.mxu0
  %v3200 = vadd.f32 %v3171, %v3199
  %3201 = vdwg.mxu0
  %v3204 = vrot.slane %v3127, 1
  %v3205 = vrot.slane %v3127, 2
  %v3206 = vrot.slane %v3127, 3
  %v3207 = vrot.slane %v3127, 4
  %v3208 = vrot.slane %v3127, 5
  %v3209 = vrot.slane %v3127, 6
  %v3210 = vrot.slane %v3127, 7
  %v3211 = vrot.slane %v3130, 1
  %v3212 = vrot.slane %v3130, 2
  %v3213 = vrot.slane %v3130, 3
  %v3214 = vrot.slane %v3130, 4
  %v3215 = vrot.slane %v3130, 5
  %v3216 = vrot.slane %v3130, 6
  %v3217 = vrot.slane %v3130, 7
  %v3218 = vperm.slane %v3127, 0
  %v3219 = vperm.slane %v3204, 0
  %v3220 = vperm.slane %v3205, 0
  %v3221 = vperm.slane %v3206, 0
  %v3222 = vperm.slane %v3207, 0
  %v3223 = vperm.slane %v3208, 0
  %v3224 = vperm.slane %v3209, 0
  %v3225 = vperm.slane %v3210, 0
  %v3226 = vperm.slane %v3130, 0
  %v3227 = vperm.slane %v3211, 0
  %v3228 = vperm.slane %v3212, 0
  %v3229 = vperm.slane %v3213, 0
  %v3230 = vperm.slane %v3214, 0
  %v3231 = vperm.slane %v3215, 0
  %v3232 = vperm.slane %v3216, 0
  %v3233 = vperm.slane %v3217, 0
  %v3250 = vmul.f32 %v3218, %v231
  %v3251 = vmul.f32 %v3218, %v232
  %v3252 = vmul.f32 %v3219, %v233
  %v3253 = vmul.f32 %v3219, %v234
  %v3254 = vmul.f32 %v3220, %v235
  %v3255 = vmul.f32 %v3220, %v236
  %v3256 = vmul.f32 %v3221, %v237
  %v3257 = vmul.f32 %v3221, %v238
  %v3258 = vmul.f32 %v3222, %v239
  %v3259 = vmul.f32 %v3222, %v240
  %v3260 = vmul.f32 %v3223, %v241
  %v3261 = vmul.f32 %v3223, %v242
  %v3262 = vmul.f32 %v3224, %v243
  %v3263 = vmul.f32 %v3224, %v244
  %v3264 = vmul.f32 %v3225, %v245
  %v3265 = vmul.f32 %v3225, %v246
  %v3266 = vmul.f32 %v3226, %v247
  %v3267 = vmul.f32 %v3226, %v248
  %v3268 = vmul.f32 %v3227, %v249
  %v3269 = vmul.f32 %v3227, %v250
  %v3270 = vmul.f32 %v3228, %v251
  %v3271 = vmul.f32 %v3228, %v252
  %v3272 = vmul.f32 %v3229, %v253
  %v3273 = vmul.f32 %v3229, %v254
  %v3274 = vmul.f32 %v3230, %v255
  %v3275 = vmul.f32 %v3230, %v256
  %v3276 = vmul.f32 %v3231, %v257
  %v3277 = vmul.f32 %v3231, %v258
  %v3278 = vmul.f32 %v3232, %v259
  %v3279 = vmul.f32 %v3232, %v260
  %v3280 = vmul.f32 %v3233, %v261
  %v3281 = vmul.f32 %v3233, %v262
  %v3282 = vsel %vm999, %v3250, 0.0
  %3283 = vadd.xlane.f32.xlu0 %v3282
  %v3284 = vpop.xlane.xlu0 %3283
  %v3285 = vsel %vm999, %v3251, 0.0
  %3286 = vadd.xlane.f32.xlu0 %v3285
  %v3287 = vpop.xlane.xlu0 %3286
  %v3288 = vsel %vm999, %v3252, 0.0
  %3289 = vadd.xlane.f32.xlu0 %v3288
  %v3290 = vpop.xlane.xlu0 %3289
  %v3291 = vsel %vm999, %v3253, 0.0
  %3292 = vadd.xlane.f32.xlu0 %v3291
  %v3293 = vpop.xlane.xlu0 %3292
  %v3294 = vsel %vm999, %v3254, 0.0
  %3295 = vadd.xlane.f32.xlu0 %v3294
  %v3296 = vpop.xlane.xlu0 %3295
  %v3297 = vsel %vm999, %v3255, 0.0
  %3298 = vadd.xlane.f32.xlu0 %v3297
  %v3299 = vpop.xlane.xlu0 %3298
  %v3300 = vsel %vm999, %v3256, 0.0
  %3301 = vadd.xlane.f32.xlu0 %v3300
  %v3302 = vpop.xlane.xlu0 %3301
  %v3303 = vsel %vm999, %v3257, 0.0
  %3304 = vadd.xlane.f32.xlu0 %v3303
  %v3305 = vpop.xlane.xlu0 %3304
  %v3306 = vsel %vm999, %v3258, 0.0
  %3307 = vadd.xlane.f32.xlu0 %v3306
  %v3308 = vpop.xlane.xlu0 %3307
  %v3309 = vsel %vm999, %v3259, 0.0
  %3310 = vadd.xlane.f32.xlu0 %v3309
  %v3311 = vpop.xlane.xlu0 %3310
  %v3312 = vsel %vm999, %v3260, 0.0
  %3313 = vadd.xlane.f32.xlu0 %v3312
  %v3314 = vpop.xlane.xlu0 %3313
  %v3315 = vsel %vm999, %v3261, 0.0
  %3316 = vadd.xlane.f32.xlu0 %v3315
  %v3317 = vpop.xlane.xlu0 %3316
  %v3318 = vsel %vm999, %v3262, 0.0
  %3319 = vadd.xlane.f32.xlu0 %v3318
  %v3320 = vpop.xlane.xlu0 %3319
  %v3321 = vsel %vm999, %v3263, 0.0
  %3322 = vadd.xlane.f32.xlu0 %v3321
  %v3323 = vpop.xlane.xlu0 %3322
  %v3324 = vsel %vm999, %v3264, 0.0
  %3325 = vadd.xlane.f32.xlu0 %v3324
  %v3326 = vpop.xlane.xlu0 %3325
  %v3327 = vsel %vm999, %v3265, 0.0
  %3328 = vadd.xlane.f32.xlu0 %v3327
  %v3329 = vpop.xlane.xlu0 %3328
  %v3330 = vsel %vm999, %v3266, 0.0
  %3331 = vadd.xlane.f32.xlu0 %v3330
  %v3332 = vpop.xlane.xlu0 %3331
  %v3333 = vsel %vm999, %v3267, 0.0
  %3334 = vadd.xlane.f32.xlu0 %v3333
  %v3335 = vpop.xlane.xlu0 %3334
  %v3336 = vsel %vm999, %v3268, 0.0
  %3337 = vadd.xlane.f32.xlu0 %v3336
  %v3338 = vpop.xlane.xlu0 %3337
  %v3339 = vsel %vm999, %v3269, 0.0
  %3340 = vadd.xlane.f32.xlu0 %v3339
  %v3341 = vpop.xlane.xlu0 %3340
  %v3342 = vsel %vm999, %v3270, 0.0
  %3343 = vadd.xlane.f32.xlu0 %v3342
  %v3344 = vpop.xlane.xlu0 %3343
  %v3345 = vsel %vm999, %v3271, 0.0
  %3346 = vadd.xlane.f32.xlu0 %v3345
  %v3347 = vpop.xlane.xlu0 %3346
  %v3348 = vsel %vm999, %v3272, 0.0
  %3349 = vadd.xlane.f32.xlu0 %v3348
  %v3350 = vpop.xlane.xlu0 %3349
  %v3351 = vsel %vm999, %v3273, 0.0
  %3352 = vadd.xlane.f32.xlu0 %v3351
  %v3353 = vpop.xlane.xlu0 %3352
  %v3354 = vsel %vm999, %v3274, 0.0
  %3355 = vadd.xlane.f32.xlu0 %v3354
  %v3356 = vpop.xlane.xlu0 %3355
  %v3357 = vsel %vm999, %v3275, 0.0
  %3358 = vadd.xlane.f32.xlu0 %v3357
  %v3359 = vpop.xlane.xlu0 %3358
  %v3360 = vsel %vm999, %v3276, 0.0
  %3361 = vadd.xlane.f32.xlu0 %v3360
  %v3362 = vpop.xlane.xlu0 %3361
  %v3363 = vsel %vm999, %v3277, 0.0
  %3364 = vadd.xlane.f32.xlu0 %v3363
  %v3365 = vpop.xlane.xlu0 %3364
  %v3366 = vsel %vm999, %v3278, 0.0
  %3367 = vadd.xlane.f32.xlu0 %v3366
  %v3368 = vpop.xlane.xlu0 %3367
  %v3369 = vsel %vm999, %v3279, 0.0
  %3370 = vadd.xlane.f32.xlu0 %v3369
  %v3371 = vpop.xlane.xlu0 %3370
  %v3372 = vsel %vm999, %v3280, 0.0
  %3373 = vadd.xlane.f32.xlu0 %v3372
  %v3374 = vpop.xlane.xlu0 %3373
  %v3375 = vsel %vm999, %v3281, 0.0
  %3376 = vadd.xlane.f32.xlu0 %v3375
  %v3377 = vpop.xlane.xlu0 %3376
  %v3410 = vperm.slane %v3284, %v1129
  %v3411 = vperm.slane %v3287, %v1131
  %v3412 = vsel %vm1133, %v3411, %v3410
  %v3413 = vperm.slane %v3290, %v1129
  %v3414 = vperm.slane %v3293, %v1131
  %v3415 = vsel %vm1133, %v3414, %v3413
  %v3416 = vperm.slane %v3296, %v1129
  %v3417 = vperm.slane %v3299, %v1131
  %v3418 = vsel %vm1133, %v3417, %v3416
  %v3419 = vperm.slane %v3302, %v1129
  %v3420 = vperm.slane %v3305, %v1131
  %v3421 = vsel %vm1133, %v3420, %v3419
  %v3422 = vperm.slane %v3308, %v1129
  %v3423 = vperm.slane %v3311, %v1131
  %v3424 = vsel %vm1133, %v3423, %v3422
  %v3425 = vperm.slane %v3314, %v1129
  %v3426 = vperm.slane %v3317, %v1131
  %v3427 = vsel %vm1133, %v3426, %v3425
  %v3428 = vperm.slane %v3320, %v1129
  %v3429 = vperm.slane %v3323, %v1131
  %v3430 = vsel %vm1133, %v3429, %v3428
  %v3431 = vperm.slane %v3326, %v1129
  %v3432 = vperm.slane %v3329, %v1131
  %v3433 = vsel %vm1133, %v3432, %v3431
  %v3434 = vperm.slane %v3332, %v1129
  %v3435 = vperm.slane %v3335, %v1131
  %v3436 = vsel %vm1133, %v3435, %v3434
  %v3437 = vperm.slane %v3338, %v1129
  %v3438 = vperm.slane %v3341, %v1131
  %v3439 = vsel %vm1133, %v3438, %v3437
  %v3440 = vperm.slane %v3344, %v1129
  %v3441 = vperm.slane %v3347, %v1131
  %v3442 = vsel %vm1133, %v3441, %v3440
  %v3443 = vperm.slane %v3350, %v1129
  %v3444 = vperm.slane %v3353, %v1131
  %v3445 = vsel %vm1133, %v3444, %v3443
  %v3446 = vperm.slane %v3356, %v1129
  %v3447 = vperm.slane %v3359, %v1131
  %v3448 = vsel %vm1133, %v3447, %v3446
  %v3449 = vperm.slane %v3362, %v1129
  %v3450 = vperm.slane %v3365, %v1131
  %v3451 = vsel %vm1133, %v3450, %v3449
  %v3452 = vperm.slane %v3368, %v1129
  %v3453 = vperm.slane %v3371, %v1131
  %v3454 = vsel %vm1133, %v3453, %v3452
  %v3455 = vperm.slane %v3374, %v1129
  %v3456 = vperm.slane %v3377, %v1131
  %v3457 = vsel %vm1133, %v3456, %v3455
  %v3458 = vsel %vm1180, %v3415, %v3412
  %v3459 = vsel %vm1182, %v3418, %v3458
  %v3460 = vsel %vm1184, %v3421, %v3459
  %v3461 = vsel %vm1186, %v3424, %v3460
  %v3462 = vsel %vm1188, %v3427, %v3461
  %v3463 = vsel %vm1190, %v3430, %v3462
  %v3464 = vsel %vm1192, %v3433, %v3463
  %v3465 = vsel %vm1180, %v3439, %v3436
  %v3466 = vsel %vm1182, %v3442, %v3465
  %v3467 = vsel %vm1184, %v3445, %v3466
  %v3468 = vsel %vm1186, %v3448, %v3467
  %v3469 = vsel %vm1188, %v3451, %v3468
  %v3470 = vsel %vm1190, %v3454, %v3469
  %v3471 = vsel %vm1192, %v3457, %v3470
  %v3474 = vsel %vm999, %v3127, 0
  %v3476 = vsel %vm999, %v3130, 0
  %v3479 = vsel %vm999, %v3159, 0
  %v3482 = vsel %vm999, %v3162, 0
  %3484 = vmatpush.xpose.msra.mxu0 0.0
  %3485 = vmatpush.xpose.msra.mxu0 0.0
  %3486 = vmatpush.xpose.msra.mxu0 0.0
  %3487 = vmatpush.xpose.msra.mxu0 0.0
  %3488 = vmatpush.xpose.msra.mxu0 0.0
  %3489 = vmatpush.xpose.msra.mxu0 0.0
  %3490 = vmatpush.xpose.msra.mxu0 0.0
  %3491 = vmatpush.xpose.msra.mxu0 0.0
  %3492 = vmatpush.xpose.msra.mxu0 0.0
  %3493 = vmatpush.xpose.msra.mxu0 0.0
  %3494 = vmatpush.xpose.msra.mxu0 0.0
  %3495 = vmatpush.xpose.msra.mxu0 0.0
  %3496 = vmatpush.xpose.msra.mxu0 0.0
  %3497 = vmatpush.xpose.msra.mxu0 0.0
  %3498 = vmatpush.xpose.msra.mxu0 %v3482
  %3499 = vmatpush.xpose.msra.mxu0 %v3479
  %3500 = vmatmul.f32.gmra.mxu0 %v3474
  %v3501 = vpop.f32.mrf.mxu0
  %v3502 = vadd.f32 %v3464, %v3501
  %3503 = vmatmul.f32.gmra.mxu0 %v3476
  %v3504 = vpop.f32.mrf.mxu0
  %v3505 = vadd.f32 %v3471, %v3504
  %3506 = vdwg.mxu0
  %v3507 = vmul.f32 %v3502, 0.25
  %v3508 = vmul.f32 %v3505, 0.25
  %v3509 = vsel %vm999, %v3507, -inf
  %3510 = vmax.xlane.f32.xlu0 %v3509
  %v3511 = vpop.xlane.xlu0 %3510
  %v3512 = vsel %vm999, %v3508, -inf
  %3513 = vmax.xlane.f32.xlu0 %v3512
  %v3514 = vpop.xlane.xlu0 %3513
  %v3515 = vsub.f32 %v3507, %v3511
  %v3516 = vsub.f32 %v3508, %v3514
  %v3517 = vmul.f32 %v3515, 1.442695
  %v3518 = vpow.pop %v3517
  %v3519 = vmul.f32 %v3516, 1.442695
  %v3520 = vpow.pop %v3519
  %v3521 = vsel %vm999, %v3518, 0.0
  %3522 = vadd.xlane.f32.xlu0 %v3521
  %v3523 = vpop.xlane.xlu0 %3522
  %v3524 = vsel %vm999, %v3520, 0.0
  %3525 = vadd.xlane.f32.xlu0 %v3524
  %v3526 = vpop.xlane.xlu0 %3525
  %v3527 = vrcp.pop %v3523
  %v3528 = vrcp.pop %v3526
  %v3529 = vmul.f32 %v3518, %v3527
  %v3530 = vmul.f32 %v3520, %v3528
  %v3532 = vsel %vm999, %v3529, 0
  %v3535 = vsel %vm999, %v3530, 0
  %3537 = vmatpush.msra.mxu0 0.0
  %3538 = vmatpush.msra.mxu0 0.0
  %3539 = vmatpush.msra.mxu0 0.0
  %3540 = vmatpush.msra.mxu0 0.0
  %3541 = vmatpush.msra.mxu0 0.0
  %3542 = vmatpush.msra.mxu0 0.0
  %3543 = vmatpush.msra.mxu0 0.0
  %3544 = vmatpush.msra.mxu0 0.0
  %3545 = vmatpush.msra.mxu0 0.0
  %3546 = vmatpush.msra.mxu0 0.0
  %3547 = vmatpush.msra.mxu0 0.0
  %3548 = vmatpush.msra.mxu0 0.0
  %3549 = vmatpush.msra.mxu0 0.0
  %3550 = vmatpush.msra.mxu0 0.0
  %3551 = vmatpush.msra.mxu0 %v3194
  %3552 = vmatpush.msra.mxu0 %v3191
  %3553 = vmatmul.f32.gmra.mxu0 %v3532
  %v3554 = vpop.f32.mrf.mxu0
  %v3555 = vadd.f32 0.0, %v3554
  %3556 = vmatmul.f32.gmra.mxu0 %v3535
  %v3557 = vpop.f32.mrf.mxu0
  %v3558 = vadd.f32 0.0, %v3557
  %3559 = vdwg.mxu0
  %v3560 = vmul.f32 %v3218, %v1322
  %v3561 = vmul.f32 %v3218, %v1324
  %v3562 = vmul.f32 %v3219, %v1326
  %v3563 = vmul.f32 %v3219, %v1328
  %v3564 = vmul.f32 %v3220, %v1330
  %v3565 = vmul.f32 %v3220, %v1332
  %v3566 = vmul.f32 %v3221, %v1334
  %v3567 = vmul.f32 %v3221, %v1336
  %v3568 = vmul.f32 %v3222, %v1338
  %v3569 = vmul.f32 %v3222, %v1340
  %v3570 = vmul.f32 %v3223, %v1342
  %v3571 = vmul.f32 %v3223, %v1344
  %v3572 = vmul.f32 %v3224, %v1346
  %v3573 = vmul.f32 %v3224, %v1348
  %v3574 = vmul.f32 %v3225, %v1350
  %v3575 = vmul.f32 %v3225, %v1352
  %v3576 = vmul.f32 %v3226, %v1354
  %v3577 = vmul.f32 %v3226, %v1356
  %v3578 = vmul.f32 %v3227, %v1358
  %v3579 = vmul.f32 %v3227, %v1360
  %v3580 = vmul.f32 %v3228, %v1362
  %v3581 = vmul.f32 %v3228, %v1364
  %v3582 = vmul.f32 %v3229, %v1366
  %v3583 = vmul.f32 %v3229, %v1368
  %v3584 = vmul.f32 %v3230, %v1370
  %v3585 = vmul.f32 %v3230, %v1372
  %v3586 = vmul.f32 %v3231, %v1374
  %v3587 = vmul.f32 %v3231, %v1376
  %v3588 = vmul.f32 %v3232, %v1378
  %v3589 = vmul.f32 %v3232, %v1380
  %v3590 = vmul.f32 %v3233, %v1382
  %v3591 = vmul.f32 %v3233, %v1384
  %3624 = vrot.lane.b32.xlu0 %v3560, 112
  %v3625 = vpop.permute.xlu0 %3624
  %3626 = vrot.lane.b32.xlu0 %v3561, 112
  %v3627 = vpop.permute.xlu0 %3626
  %3628 = vrot.lane.b32.xlu0 %v3562, 112
  %v3629 = vpop.permute.xlu0 %3628
  %3630 = vrot.lane.b32.xlu0 %v3563, 112
  %v3631 = vpop.permute.xlu0 %3630
  %3632 = vrot.lane.b32.xlu0 %v3564, 112
  %v3633 = vpop.permute.xlu0 %3632
  %3634 = vrot.lane.b32.xlu0 %v3565, 112
  %v3635 = vpop.permute.xlu0 %3634
  %3636 = vrot.lane.b32.xlu0 %v3566, 112
  %v3637 = vpop.permute.xlu0 %3636
  %3638 = vrot.lane.b32.xlu0 %v3567, 112
  %v3639 = vpop.permute.xlu0 %3638
  %3640 = vrot.lane.b32.xlu0 %v3568, 112
  %v3641 = vpop.permute.xlu0 %3640
  %3642 = vrot.lane.b32.xlu0 %v3569, 112
  %v3643 = vpop.permute.xlu0 %3642
  %3644 = vrot.lane.b32.xlu0 %v3570, 112
  %v3645 = vpop.permute.xlu0 %3644
  %3646 = vrot.lane.b32.xlu0 %v3571, 112
  %v3647 = vpop.permute.xlu0 %3646
  %3648 = vrot.lane.b32.xlu0 %v3572, 112
  %v3649 = vpop.permute.xlu0 %3648
  %3650 = vrot.lane.b32.xlu0 %v3573, 112
  %v3651 = vpop.permute.xlu0 %3650
  %3652 = vrot.lane.b32.xlu0 %v3574, 112
  %v3653 = vpop.permute.xlu0 %3652
  %3654 = vrot.lane.b32.xlu0 %v3575, 112
  %v3655 = vpop.permute.xlu0 %3654
  %3656 = vrot.lane.b32.xlu0 %v3576, 112
  %v3657 = vpop.permute.xlu0 %3656
  %3658 = vrot.lane.b32.xlu0 %v3577, 112
  %v3659 = vpop.permute.xlu0 %3658
  %3660 = vrot.lane.b32.xlu0 %v3578, 112
  %v3661 = vpop.permute.xlu0 %3660
  %3662 = vrot.lane.b32.xlu0 %v3579, 112
  %v3663 = vpop.permute.xlu0 %3662
  %3664 = vrot.lane.b32.xlu0 %v3580, 112
  %v3665 = vpop.permute.xlu0 %3664
  %3666 = vrot.lane.b32.xlu0 %v3581, 112
  %v3667 = vpop.permute.xlu0 %3666
  %3668 = vrot.lane.b32.xlu0 %v3582, 112
  %v3669 = vpop.permute.xlu0 %3668
  %3670 = vrot.lane.b32.xlu0 %v3583, 112
  %v3671 = vpop.permute.xlu0 %3670
  %3672 = vrot.lane.b32.xlu0 %v3584, 112
  %v3673 = vpop.permute.xlu0 %3672
  %3674 = vrot.lane.b32.xlu0 %v3585, 112
  %v3675 = vpop.permute.xlu0 %3674
  %3676 = vrot.lane.b32.xlu0 %v3586, 112
  %v3677 = vpop.permute.xlu0 %3676
  %3678 = vrot.lane.b32.xlu0 %v3587, 112
  %v3679 = vpop.permute.xlu0 %3678
  %3680 = vrot.lane.b32.xlu0 %v3588, 112
  %v3681 = vpop.permute.xlu0 %3680
  %3682 = vrot.lane.b32.xlu0 %v3589, 112
  %v3683 = vpop.permute.xlu0 %3682
  %3684 = vrot.lane.b32.xlu0 %v3590, 112
  %v3685 = vpop.permute.xlu0 %3684
  %3686 = vrot.lane.b32.xlu0 %v3591, 112
  %v3687 = vpop.permute.xlu0 %3686
  %v3720 = vsel %vm999, %v3625, 0.0
  %3721 = vadd.xlane.f32.xlu0 %v3720
  %v3722 = vpop.xlane.xlu0 %3721
  %v3723 = vsel %vm999, %v3627, 0.0
  %3724 = vadd.xlane.f32.xlu0 %v3723
  %v3725 = vpop.xlane.xlu0 %3724
  %v3726 = vsel %vm999, %v3629, 0.0
  %3727 = vadd.xlane.f32.xlu0 %v3726
  %v3728 = vpop.xlane.xlu0 %3727
  %v3729 = vsel %vm999, %v3631, 0.0
  %3730 = vadd.xlane.f32.xlu0 %v3729
  %v3731 = vpop.xlane.xlu0 %3730
  %v3732 = vsel %vm999, %v3633, 0.0
  %3733 = vadd.xlane.f32.xlu0 %v3732
  %v3734 = vpop.xlane.xlu0 %3733
  %v3735 = vsel %vm999, %v3635, 0.0
  %3736 = vadd.xlane.f32.xlu0 %v3735
  %v3737 = vpop.xlane.xlu0 %3736
  %v3738 = vsel %vm999, %v3637, 0.0
  %3739 = vadd.xlane.f32.xlu0 %v3738
  %v3740 = vpop.xlane.xlu0 %3739
  %v3741 = vsel %vm999, %v3639, 0.0
  %3742 = vadd.xlane.f32.xlu0 %v3741
  %v3743 = vpop.xlane.xlu0 %3742
  %v3744 = vsel %vm999, %v3641, 0.0
  %3745 = vadd.xlane.f32.xlu0 %v3744
  %v3746 = vpop.xlane.xlu0 %3745
  %v3747 = vsel %vm999, %v3643, 0.0
  %3748 = vadd.xlane.f32.xlu0 %v3747
  %v3749 = vpop.xlane.xlu0 %3748
  %v3750 = vsel %vm999, %v3645, 0.0
  %3751 = vadd.xlane.f32.xlu0 %v3750
  %v3752 = vpop.xlane.xlu0 %3751
  %v3753 = vsel %vm999, %v3647, 0.0
  %3754 = vadd.xlane.f32.xlu0 %v3753
  %v3755 = vpop.xlane.xlu0 %3754
  %v3756 = vsel %vm999, %v3649, 0.0
  %3757 = vadd.xlane.f32.xlu0 %v3756
  %v3758 = vpop.xlane.xlu0 %3757
  %v3759 = vsel %vm999, %v3651, 0.0
  %3760 = vadd.xlane.f32.xlu0 %v3759
  %v3761 = vpop.xlane.xlu0 %3760
  %v3762 = vsel %vm999, %v3653, 0.0
  %3763 = vadd.xlane.f32.xlu0 %v3762
  %v3764 = vpop.xlane.xlu0 %3763
  %v3765 = vsel %vm999, %v3655, 0.0
  %3766 = vadd.xlane.f32.xlu0 %v3765
  %v3767 = vpop.xlane.xlu0 %3766
  %v3768 = vsel %vm999, %v3657, 0.0
  %3769 = vadd.xlane.f32.xlu0 %v3768
  %v3770 = vpop.xlane.xlu0 %3769
  %v3771 = vsel %vm999, %v3659, 0.0
  %3772 = vadd.xlane.f32.xlu0 %v3771
  %v3773 = vpop.xlane.xlu0 %3772
  %v3774 = vsel %vm999, %v3661, 0.0
  %3775 = vadd.xlane.f32.xlu0 %v3774
  %v3776 = vpop.xlane.xlu0 %3775
  %v3777 = vsel %vm999, %v3663, 0.0
  %3778 = vadd.xlane.f32.xlu0 %v3777
  %v3779 = vpop.xlane.xlu0 %3778
  %v3780 = vsel %vm999, %v3665, 0.0
  %3781 = vadd.xlane.f32.xlu0 %v3780
  %v3782 = vpop.xlane.xlu0 %3781
  %v3783 = vsel %vm999, %v3667, 0.0
  %3784 = vadd.xlane.f32.xlu0 %v3783
  %v3785 = vpop.xlane.xlu0 %3784
  %v3786 = vsel %vm999, %v3669, 0.0
  %3787 = vadd.xlane.f32.xlu0 %v3786
  %v3788 = vpop.xlane.xlu0 %3787
  %v3789 = vsel %vm999, %v3671, 0.0
  %3790 = vadd.xlane.f32.xlu0 %v3789
  %v3791 = vpop.xlane.xlu0 %3790
  %v3792 = vsel %vm999, %v3673, 0.0
  %3793 = vadd.xlane.f32.xlu0 %v3792
  %v3794 = vpop.xlane.xlu0 %3793
  %v3795 = vsel %vm999, %v3675, 0.0
  %3796 = vadd.xlane.f32.xlu0 %v3795
  %v3797 = vpop.xlane.xlu0 %3796
  %v3798 = vsel %vm999, %v3677, 0.0
  %3799 = vadd.xlane.f32.xlu0 %v3798
  %v3800 = vpop.xlane.xlu0 %3799
  %v3801 = vsel %vm999, %v3679, 0.0
  %3802 = vadd.xlane.f32.xlu0 %v3801
  %v3803 = vpop.xlane.xlu0 %3802
  %v3804 = vsel %vm999, %v3681, 0.0
  %3805 = vadd.xlane.f32.xlu0 %v3804
  %v3806 = vpop.xlane.xlu0 %3805
  %v3807 = vsel %vm999, %v3683, 0.0
  %3808 = vadd.xlane.f32.xlu0 %v3807
  %v3809 = vpop.xlane.xlu0 %3808
  %v3810 = vsel %vm999, %v3685, 0.0
  %3811 = vadd.xlane.f32.xlu0 %v3810
  %v3812 = vpop.xlane.xlu0 %3811
  %v3813 = vsel %vm999, %v3687, 0.0
  %3814 = vadd.xlane.f32.xlu0 %v3813
  %v3815 = vpop.xlane.xlu0 %3814
  %3816 = vrot.lane.b32.xlu0 %v3127, 112
  %v3817 = vpop.permute.xlu0 %3816
  %3818 = vrot.lane.b32.xlu0 %v3130, 112
  %v3819 = vpop.permute.xlu0 %3818
  %3820 = vrot.lane.b32.xlu0 %v3159, 112
  %v3821 = vpop.permute.xlu0 %3820
  %3822 = vrot.lane.b32.xlu0 %v3162, 112
  %v3823 = vpop.permute.xlu0 %3822
  %v3856 = vperm.slane %v3722, %v1129
  %v3857 = vperm.slane %v3725, %v1131
  %v3858 = vsel %vm1133, %v3857, %v3856
  %v3859 = vperm.slane %v3728, %v1129
  %v3860 = vperm.slane %v3731, %v1131
  %v3861 = vsel %vm1133, %v3860, %v3859
  %v3862 = vperm.slane %v3734, %v1129
  %v3863 = vperm.slane %v3737, %v1131
  %v3864 = vsel %vm1133, %v3863, %v3862
  %v3865 = vperm.slane %v3740, %v1129
  %v3866 = vperm.slane %v3743, %v1131
  %v3867 = vsel %vm1133, %v3866, %v3865
  %v3868 = vperm.slane %v3746, %v1129
  %v3869 = vperm.slane %v3749, %v1131
  %v3870 = vsel %vm1133, %v3869, %v3868
  %v3871 = vperm.slane %v3752, %v1129
  %v3872 = vperm.slane %v3755, %v1131
  %v3873 = vsel %vm1133, %v3872, %v3871
  %v3874 = vperm.slane %v3758, %v1129
  %v3875 = vperm.slane %v3761, %v1131
  %v3876 = vsel %vm1133, %v3875, %v3874
  %v3877 = vperm.slane %v3764, %v1129
  %v3878 = vperm.slane %v3767, %v1131
  %v3879 = vsel %vm1133, %v3878, %v3877
  %v3880 = vperm.slane %v3770, %v1129
  %v3881 = vperm.slane %v3773, %v1131
  %v3882 = vsel %vm1133, %v3881, %v3880
  %v3883 = vperm.slane %v3776, %v1129
  %v3884 = vperm.slane %v3779, %v1131
  %v3885 = vsel %vm1133, %v3884, %v3883
  %v3886 = vperm.slane %v3782, %v1129
  %v3887 = vperm.slane %v3785, %v1131
  %v3888 = vsel %vm1133, %v3887, %v3886
  %v3889 = vperm.slane %v3788, %v1129
  %v3890 = vperm.slane %v3791, %v1131
  %v3891 = vsel %vm1133, %v3890, %v3889
  %v3892 = vperm.slane %v3794, %v1129
  %v3893 = vperm.slane %v3797, %v1131
  %v3894 = vsel %vm1133, %v3893, %v3892
  %v3895 = vperm.slane %v3800, %v1129
  %v3896 = vperm.slane %v3803, %v1131
  %v3897 = vsel %vm1133, %v3896, %v3895
  %v3898 = vperm.slane %v3806, %v1129
  %v3899 = vperm.slane %v3809, %v1131
  %v3900 = vsel %vm1133, %v3899, %v3898
  %v3901 = vperm.slane %v3812, %v1129
  %v3902 = vperm.slane %v3815, %v1131
  %v3903 = vsel %vm1133, %v3902, %v3901
  %v3904 = vsel %vm1180, %v3861, %v3858
  %v3905 = vsel %vm1182, %v3864, %v3904
  %v3906 = vsel %vm1184, %v3867, %v3905
  %v3907 = vsel %vm1186, %v3870, %v3906
  %v3908 = vsel %vm1188, %v3873, %v3907
  %v3909 = vsel %vm1190, %v3876, %v3908
  %v3910 = vsel %vm1192, %v3879, %v3909
  %v3911 = vsel %vm1180, %v3885, %v3882
  %v3912 = vsel %vm1182, %v3888, %v3911
  %v3913 = vsel %vm1184, %v3891, %v3912
  %v3914 = vsel %vm1186, %v3894, %v3913
  %v3915 = vsel %vm1188, %v3897, %v3914
  %v3916 = vsel %vm1190, %v3900, %v3915
  %v3917 = vsel %vm1192, %v3903, %v3916
  %v3920 = vsel %vm999, %v3817, 0
  %v3922 = vsel %vm999, %v3819, 0
  %v3924 = vsel %vm999, %v3821, 0
  %v3926 = vsel %vm999, %v3823, 0
  %3928 = vmatpush.xpose.msra.mxu0 0.0
  %3929 = vmatpush.xpose.msra.mxu0 0.0
  %3930 = vmatpush.xpose.msra.mxu0 0.0
  %3931 = vmatpush.xpose.msra.mxu0 0.0
  %3932 = vmatpush.xpose.msra.mxu0 0.0
  %3933 = vmatpush.xpose.msra.mxu0 0.0
  %3934 = vmatpush.xpose.msra.mxu0 0.0
  %3935 = vmatpush.xpose.msra.mxu0 0.0
  %3936 = vmatpush.xpose.msra.mxu0 0.0
  %3937 = vmatpush.xpose.msra.mxu0 0.0
  %3938 = vmatpush.xpose.msra.mxu0 0.0
  %3939 = vmatpush.xpose.msra.mxu0 0.0
  %3940 = vmatpush.xpose.msra.mxu0 0.0
  %3941 = vmatpush.xpose.msra.mxu0 0.0
  %3942 = vmatpush.xpose.msra.mxu0 %v3926
  %3943 = vmatpush.xpose.msra.mxu0 %v3924
  %3944 = vmatmul.f32.gmra.mxu0 %v3920
  %v3945 = vpop.f32.mrf.mxu0
  %v3946 = vadd.f32 %v3910, %v3945
  %3947 = vmatmul.f32.gmra.mxu0 %v3922
  %v3948 = vpop.f32.mrf.mxu0
  %v3949 = vadd.f32 %v3917, %v3948
  %3950 = vdwg.mxu0
  %v3951 = vmul.f32 %v3946, 0.25
  %v3952 = vmul.f32 %v3949, 0.25
  %v3953 = vsel %vm999, %v3951, -inf
  %3954 = vmax.xlane.f32.xlu0 %v3953
  %v3955 = vpop.xlane.xlu0 %3954
  %v3956 = vsel %vm999, %v3952, -inf
  %3957 = vmax.xlane.f32.xlu0 %v3956
  %v3958 = vpop.xlane.xlu0 %3957
  %v3959 = vsub.f32 %v3951, %v3955
  %v3960 = vsub.f32 %v3952, %v3958
  %v3961 = vmul.f32 %v3959, 1.442695
  %v3962 = vpow.pop %v3961
  %v3963 = vmul.f32 %v3960, 1.442695
  %v3964 = vpow.pop %v3963
  %v3965 = vsel %vm999, %v3962, 0.0
  %3966 = vadd.xlane.f32.xlu0 %v3965
  %v3967 = vpop.xlane.xlu0 %3966
  %v3968 = vsel %vm999, %v3964, 0.0
  %3969 = vadd.xlane.f32.xlu0 %v3968
  %v3970 = vpop.xlane.xlu0 %3969
  %v3971 = vrcp.pop %v3967
  %v3972 = vrcp.pop %v3970
  %v3973 = vmul.f32 %v3962, %v3971
  %v3974 = vmul.f32 %v3964, %v3972
  %3977 = vrot.lane.b32.xlu0 %v3191, 112
  %v3978 = vpop.permute.xlu0 %3977
  %3979 = vrot.lane.b32.xlu0 %v3194, 112
  %v3980 = vpop.permute.xlu0 %3979
  %v3984 = vsel %vm999, %v3973, 0
  %v3987 = vsel %vm999, %v3974, 0
  %3989 = vmatpush.msra.mxu0 0.0
  %3990 = vmatpush.msra.mxu0 0.0
  %3991 = vmatpush.msra.mxu0 0.0
  %3992 = vmatpush.msra.mxu0 0.0
  %3993 = vmatpush.msra.mxu0 0.0
  %3994 = vmatpush.msra.mxu0 0.0
  %3995 = vmatpush.msra.mxu0 0.0
  %3996 = vmatpush.msra.mxu0 0.0
  %3997 = vmatpush.msra.mxu0 0.0
  %3998 = vmatpush.msra.mxu0 0.0
  %3999 = vmatpush.msra.mxu0 0.0
  %4000 = vmatpush.msra.mxu0 0.0
  %4001 = vmatpush.msra.mxu0 0.0
  %4002 = vmatpush.msra.mxu0 0.0
  %4003 = vmatpush.msra.mxu0 %v3980
  %4004 = vmatpush.msra.mxu0 %v3978
  %4005 = vmatmul.f32.gmra.mxu0 %v3984
  %v4006 = vpop.f32.mrf.mxu0
  %v4007 = vadd.f32 0.0, %v4006
  %4008 = vmatmul.f32.gmra.mxu0 %v3987
  %v4009 = vpop.f32.mrf.mxu0
  %v4010 = vadd.f32 0.0, %v4009
  %4011 = vdwg.mxu0
  %4014 = vrot.lane.b32.xlu0 %v4007, 16
  %v4015 = vpop.permute.xlu0 %4014
  %4016 = vrot.lane.b32.xlu0 %v4010, 16
  %v4017 = vpop.permute.xlu0 %4016
  %v4020 = vsel %vm999, %v3555, %v4015
  %v4021 = vsel %vm999, %v3558, %v4017
  %v4024 = vrot.slane %v3133, 1
  %v4025 = vrot.slane %v3133, 2
  %v4026 = vrot.slane %v3133, 3
  %v4027 = vrot.slane %v3133, 4
  %v4028 = vrot.slane %v3133, 5
  %v4029 = vrot.slane %v3133, 6
  %v4030 = vrot.slane %v3133, 7
  %v4031 = vrot.slane %v3136, 1
  %v4032 = vrot.slane %v3136, 2
  %v4033 = vrot.slane %v3136, 3
  %v4034 = vrot.slane %v3136, 4
  %v4035 = vrot.slane %v3136, 5
  %v4036 = vrot.slane %v3136, 6
  %v4037 = vrot.slane %v3136, 7
  %v4038 = vperm.slane %v3133, 0
  %v4039 = vperm.slane %v4024, 0
  %v4040 = vperm.slane %v4025, 0
  %v4041 = vperm.slane %v4026, 0
  %v4042 = vperm.slane %v4027, 0
  %v4043 = vperm.slane %v4028, 0
  %v4044 = vperm.slane %v4029, 0
  %v4045 = vperm.slane %v4030, 0
  %v4046 = vperm.slane %v3136, 0
  %v4047 = vperm.slane %v4031, 0
  %v4048 = vperm.slane %v4032, 0
  %v4049 = vperm.slane %v4033, 0
  %v4050 = vperm.slane %v4034, 0
  %v4051 = vperm.slane %v4035, 0
  %v4052 = vperm.slane %v4036, 0
  %v4053 = vperm.slane %v4037, 0
  %v4070 = vmul.f32 %v4038, %v231
  %v4071 = vmul.f32 %v4038, %v232
  %v4072 = vmul.f32 %v4039, %v233
  %v4073 = vmul.f32 %v4039, %v234
  %v4074 = vmul.f32 %v4040, %v235
  %v4075 = vmul.f32 %v4040, %v236
  %v4076 = vmul.f32 %v4041, %v237
  %v4077 = vmul.f32 %v4041, %v238
  %v4078 = vmul.f32 %v4042, %v239
  %v4079 = vmul.f32 %v4042, %v240
  %v4080 = vmul.f32 %v4043, %v241
  %v4081 = vmul.f32 %v4043, %v242
  %v4082 = vmul.f32 %v4044, %v243
  %v4083 = vmul.f32 %v4044, %v244
  %v4084 = vmul.f32 %v4045, %v245
  %v4085 = vmul.f32 %v4045, %v246
  %v4086 = vmul.f32 %v4046, %v247
  %v4087 = vmul.f32 %v4046, %v248
  %v4088 = vmul.f32 %v4047, %v249
  %v4089 = vmul.f32 %v4047, %v250
  %v4090 = vmul.f32 %v4048, %v251
  %v4091 = vmul.f32 %v4048, %v252
  %v4092 = vmul.f32 %v4049, %v253
  %v4093 = vmul.f32 %v4049, %v254
  %v4094 = vmul.f32 %v4050, %v255
  %v4095 = vmul.f32 %v4050, %v256
  %v4096 = vmul.f32 %v4051, %v257
  %v4097 = vmul.f32 %v4051, %v258
  %v4098 = vmul.f32 %v4052, %v259
  %v4099 = vmul.f32 %v4052, %v260
  %v4100 = vmul.f32 %v4053, %v261
  %v4101 = vmul.f32 %v4053, %v262
  %v4102 = vsel %vm999, %v4070, 0.0
  %4103 = vadd.xlane.f32.xlu0 %v4102
  %v4104 = vpop.xlane.xlu0 %4103
  %v4105 = vsel %vm999, %v4071, 0.0
  %4106 = vadd.xlane.f32.xlu0 %v4105
  %v4107 = vpop.xlane.xlu0 %4106
  %v4108 = vsel %vm999, %v4072, 0.0
  %4109 = vadd.xlane.f32.xlu0 %v4108
  %v4110 = vpop.xlane.xlu0 %4109
  %v4111 = vsel %vm999, %v4073, 0.0
  %4112 = vadd.xlane.f32.xlu0 %v4111
  %v4113 = vpop.xlane.xlu0 %4112
  %v4114 = vsel %vm999, %v4074, 0.0
  %4115 = vadd.xlane.f32.xlu0 %v4114
  %v4116 = vpop.xlane.xlu0 %4115
  %v4117 = vsel %vm999, %v4075, 0.0
  %4118 = vadd.xlane.f32.xlu0 %v4117
  %v4119 = vpop.xlane.xlu0 %4118
  %v4120 = vsel %vm999, %v4076, 0.0
  %4121 = vadd.xlane.f32.xlu0 %v4120
  %v4122 = vpop.xlane.xlu0 %4121
  %v4123 = vsel %vm999, %v4077, 0.0
  %4124 = vadd.xlane.f32.xlu0 %v4123
  %v4125 = vpop.xlane.xlu0 %4124
  %v4126 = vsel %vm999, %v4078, 0.0
  %4127 = vadd.xlane.f32.xlu0 %v4126
  %v4128 = vpop.xlane.xlu0 %4127
  %v4129 = vsel %vm999, %v4079, 0.0
  %4130 = vadd.xlane.f32.xlu0 %v4129
  %v4131 = vpop.xlane.xlu0 %4130
  %v4132 = vsel %vm999, %v4080, 0.0
  %4133 = vadd.xlane.f32.xlu0 %v4132
  %v4134 = vpop.xlane.xlu0 %4133
  %v4135 = vsel %vm999, %v4081, 0.0
  %4136 = vadd.xlane.f32.xlu0 %v4135
  %v4137 = vpop.xlane.xlu0 %4136
  %v4138 = vsel %vm999, %v4082, 0.0
  %4139 = vadd.xlane.f32.xlu0 %v4138
  %v4140 = vpop.xlane.xlu0 %4139
  %v4141 = vsel %vm999, %v4083, 0.0
  %4142 = vadd.xlane.f32.xlu0 %v4141
  %v4143 = vpop.xlane.xlu0 %4142
  %v4144 = vsel %vm999, %v4084, 0.0
  %4145 = vadd.xlane.f32.xlu0 %v4144
  %v4146 = vpop.xlane.xlu0 %4145
  %v4147 = vsel %vm999, %v4085, 0.0
  %4148 = vadd.xlane.f32.xlu0 %v4147
  %v4149 = vpop.xlane.xlu0 %4148
  %v4150 = vsel %vm999, %v4086, 0.0
  %4151 = vadd.xlane.f32.xlu0 %v4150
  %v4152 = vpop.xlane.xlu0 %4151
  %v4153 = vsel %vm999, %v4087, 0.0
  %4154 = vadd.xlane.f32.xlu0 %v4153
  %v4155 = vpop.xlane.xlu0 %4154
  %v4156 = vsel %vm999, %v4088, 0.0
  %4157 = vadd.xlane.f32.xlu0 %v4156
  %v4158 = vpop.xlane.xlu0 %4157
  %v4159 = vsel %vm999, %v4089, 0.0
  %4160 = vadd.xlane.f32.xlu0 %v4159
  %v4161 = vpop.xlane.xlu0 %4160
  %v4162 = vsel %vm999, %v4090, 0.0
  %4163 = vadd.xlane.f32.xlu0 %v4162
  %v4164 = vpop.xlane.xlu0 %4163
  %v4165 = vsel %vm999, %v4091, 0.0
  %4166 = vadd.xlane.f32.xlu0 %v4165
  %v4167 = vpop.xlane.xlu0 %4166
  %v4168 = vsel %vm999, %v4092, 0.0
  %4169 = vadd.xlane.f32.xlu0 %v4168
  %v4170 = vpop.xlane.xlu0 %4169
  %v4171 = vsel %vm999, %v4093, 0.0
  %4172 = vadd.xlane.f32.xlu0 %v4171
  %v4173 = vpop.xlane.xlu0 %4172
  %v4174 = vsel %vm999, %v4094, 0.0
  %4175 = vadd.xlane.f32.xlu0 %v4174
  %v4176 = vpop.xlane.xlu0 %4175
  %v4177 = vsel %vm999, %v4095, 0.0
  %4178 = vadd.xlane.f32.xlu0 %v4177
  %v4179 = vpop.xlane.xlu0 %4178
  %v4180 = vsel %vm999, %v4096, 0.0
  %4181 = vadd.xlane.f32.xlu0 %v4180
  %v4182 = vpop.xlane.xlu0 %4181
  %v4183 = vsel %vm999, %v4097, 0.0
  %4184 = vadd.xlane.f32.xlu0 %v4183
  %v4185 = vpop.xlane.xlu0 %4184
  %v4186 = vsel %vm999, %v4098, 0.0
  %4187 = vadd.xlane.f32.xlu0 %v4186
  %v4188 = vpop.xlane.xlu0 %4187
  %v4189 = vsel %vm999, %v4099, 0.0
  %4190 = vadd.xlane.f32.xlu0 %v4189
  %v4191 = vpop.xlane.xlu0 %4190
  %v4192 = vsel %vm999, %v4100, 0.0
  %4193 = vadd.xlane.f32.xlu0 %v4192
  %v4194 = vpop.xlane.xlu0 %4193
  %v4195 = vsel %vm999, %v4101, 0.0
  %4196 = vadd.xlane.f32.xlu0 %v4195
  %v4197 = vpop.xlane.xlu0 %4196
  %v4230 = vperm.slane %v4104, %v1129
  %v4231 = vperm.slane %v4107, %v1131
  %v4232 = vsel %vm1133, %v4231, %v4230
  %v4233 = vperm.slane %v4110, %v1129
  %v4234 = vperm.slane %v4113, %v1131
  %v4235 = vsel %vm1133, %v4234, %v4233
  %v4236 = vperm.slane %v4116, %v1129
  %v4237 = vperm.slane %v4119, %v1131
  %v4238 = vsel %vm1133, %v4237, %v4236
  %v4239 = vperm.slane %v4122, %v1129
  %v4240 = vperm.slane %v4125, %v1131
  %v4241 = vsel %vm1133, %v4240, %v4239
  %v4242 = vperm.slane %v4128, %v1129
  %v4243 = vperm.slane %v4131, %v1131
  %v4244 = vsel %vm1133, %v4243, %v4242
  %v4245 = vperm.slane %v4134, %v1129
  %v4246 = vperm.slane %v4137, %v1131
  %v4247 = vsel %vm1133, %v4246, %v4245
  %v4248 = vperm.slane %v4140, %v1129
  %v4249 = vperm.slane %v4143, %v1131
  %v4250 = vsel %vm1133, %v4249, %v4248
  %v4251 = vperm.slane %v4146, %v1129
  %v4252 = vperm.slane %v4149, %v1131
  %v4253 = vsel %vm1133, %v4252, %v4251
  %v4254 = vperm.slane %v4152, %v1129
  %v4255 = vperm.slane %v4155, %v1131
  %v4256 = vsel %vm1133, %v4255, %v4254
  %v4257 = vperm.slane %v4158, %v1129
  %v4258 = vperm.slane %v4161, %v1131
  %v4259 = vsel %vm1133, %v4258, %v4257
  %v4260 = vperm.slane %v4164, %v1129
  %v4261 = vperm.slane %v4167, %v1131
  %v4262 = vsel %vm1133, %v4261, %v4260
  %v4263 = vperm.slane %v4170, %v1129
  %v4264 = vperm.slane %v4173, %v1131
  %v4265 = vsel %vm1133, %v4264, %v4263
  %v4266 = vperm.slane %v4176, %v1129
  %v4267 = vperm.slane %v4179, %v1131
  %v4268 = vsel %vm1133, %v4267, %v4266
  %v4269 = vperm.slane %v4182, %v1129
  %v4270 = vperm.slane %v4185, %v1131
  %v4271 = vsel %vm1133, %v4270, %v4269
  %v4272 = vperm.slane %v4188, %v1129
  %v4273 = vperm.slane %v4191, %v1131
  %v4274 = vsel %vm1133, %v4273, %v4272
  %v4275 = vperm.slane %v4194, %v1129
  %v4276 = vperm.slane %v4197, %v1131
  %v4277 = vsel %vm1133, %v4276, %v4275
  %v4278 = vsel %vm1180, %v4235, %v4232
  %v4279 = vsel %vm1182, %v4238, %v4278
  %v4280 = vsel %vm1184, %v4241, %v4279
  %v4281 = vsel %vm1186, %v4244, %v4280
  %v4282 = vsel %vm1188, %v4247, %v4281
  %v4283 = vsel %vm1190, %v4250, %v4282
  %v4284 = vsel %vm1192, %v4253, %v4283
  %v4285 = vsel %vm1180, %v4259, %v4256
  %v4286 = vsel %vm1182, %v4262, %v4285
  %v4287 = vsel %vm1184, %v4265, %v4286
  %v4288 = vsel %vm1186, %v4268, %v4287
  %v4289 = vsel %vm1188, %v4271, %v4288
  %v4290 = vsel %vm1190, %v4274, %v4289
  %v4291 = vsel %vm1192, %v4277, %v4290
  %v4294 = vsel %vm999, %v3133, 0
  %v4296 = vsel %vm999, %v3136, 0
  %v4299 = vsel %vm999, %v3165, 0
  %v4302 = vsel %vm999, %v3168, 0
  %4304 = vmatpush.xpose.msra.mxu0 0.0
  %4305 = vmatpush.xpose.msra.mxu0 0.0
  %4306 = vmatpush.xpose.msra.mxu0 0.0
  %4307 = vmatpush.xpose.msra.mxu0 0.0
  %4308 = vmatpush.xpose.msra.mxu0 0.0
  %4309 = vmatpush.xpose.msra.mxu0 0.0
  %4310 = vmatpush.xpose.msra.mxu0 0.0
  %4311 = vmatpush.xpose.msra.mxu0 0.0
  %4312 = vmatpush.xpose.msra.mxu0 0.0
  %4313 = vmatpush.xpose.msra.mxu0 0.0
  %4314 = vmatpush.xpose.msra.mxu0 0.0
  %4315 = vmatpush.xpose.msra.mxu0 0.0
  %4316 = vmatpush.xpose.msra.mxu0 0.0
  %4317 = vmatpush.xpose.msra.mxu0 0.0
  %4318 = vmatpush.xpose.msra.mxu0 %v4302
  %4319 = vmatpush.xpose.msra.mxu0 %v4299
  %4320 = vmatmul.f32.gmra.mxu0 %v4294
  %v4321 = vpop.f32.mrf.mxu0
  %v4322 = vadd.f32 %v4284, %v4321
  %4323 = vmatmul.f32.gmra.mxu0 %v4296
  %v4324 = vpop.f32.mrf.mxu0
  %v4325 = vadd.f32 %v4291, %v4324
  %4326 = vdwg.mxu0
  %v4327 = vmul.f32 %v4322, 0.25
  %v4328 = vmul.f32 %v4325, 0.25
  %v4329 = vsel %vm999, %v4327, -inf
  %4330 = vmax.xlane.f32.xlu0 %v4329
  %v4331 = vpop.xlane.xlu0 %4330
  %v4332 = vsel %vm999, %v4328, -inf
  %4333 = vmax.xlane.f32.xlu0 %v4332
  %v4334 = vpop.xlane.xlu0 %4333
  %v4335 = vsub.f32 %v4327, %v4331
  %v4336 = vsub.f32 %v4328, %v4334
  %v4337 = vmul.f32 %v4335, 1.442695
  %v4338 = vpow.pop %v4337
  %v4339 = vmul.f32 %v4336, 1.442695
  %v4340 = vpow.pop %v4339
  %v4341 = vsel %vm999, %v4338, 0.0
  %4342 = vadd.xlane.f32.xlu0 %v4341
  %v4343 = vpop.xlane.xlu0 %4342
  %v4344 = vsel %vm999, %v4340, 0.0
  %4345 = vadd.xlane.f32.xlu0 %v4344
  %v4346 = vpop.xlane.xlu0 %4345
  %v4347 = vrcp.pop %v4343
  %v4348 = vrcp.pop %v4346
  %v4349 = vmul.f32 %v4338, %v4347
  %v4350 = vmul.f32 %v4340, %v4348
  %v4352 = vsel %vm999, %v4349, 0
  %v4355 = vsel %vm999, %v4350, 0
  %4357 = vmatpush.msra.mxu0 0.0
  %4358 = vmatpush.msra.mxu0 0.0
  %4359 = vmatpush.msra.mxu0 0.0
  %4360 = vmatpush.msra.mxu0 0.0
  %4361 = vmatpush.msra.mxu0 0.0
  %4362 = vmatpush.msra.mxu0 0.0
  %4363 = vmatpush.msra.mxu0 0.0
  %4364 = vmatpush.msra.mxu0 0.0
  %4365 = vmatpush.msra.mxu0 0.0
  %4366 = vmatpush.msra.mxu0 0.0
  %4367 = vmatpush.msra.mxu0 0.0
  %4368 = vmatpush.msra.mxu0 0.0
  %4369 = vmatpush.msra.mxu0 0.0
  %4370 = vmatpush.msra.mxu0 0.0
  %4371 = vmatpush.msra.mxu0 %v3200
  %4372 = vmatpush.msra.mxu0 %v3197
  %4373 = vmatmul.f32.gmra.mxu0 %v4352
  %v4374 = vpop.f32.mrf.mxu0
  %v4375 = vadd.f32 0.0, %v4374
  %4376 = vmatmul.f32.gmra.mxu0 %v4355
  %v4377 = vpop.f32.mrf.mxu0
  %v4378 = vadd.f32 0.0, %v4377
  %4379 = vdwg.mxu0
  %v4380 = vmul.f32 %v4038, %v1322
  %v4381 = vmul.f32 %v4038, %v1324
  %v4382 = vmul.f32 %v4039, %v1326
  %v4383 = vmul.f32 %v4039, %v1328
  %v4384 = vmul.f32 %v4040, %v1330
  %v4385 = vmul.f32 %v4040, %v1332
  %v4386 = vmul.f32 %v4041, %v1334
  %v4387 = vmul.f32 %v4041, %v1336
  %v4388 = vmul.f32 %v4042, %v1338
  %v4389 = vmul.f32 %v4042, %v1340
  %v4390 = vmul.f32 %v4043, %v1342
  %v4391 = vmul.f32 %v4043, %v1344
  %v4392 = vmul.f32 %v4044, %v1346
  %v4393 = vmul.f32 %v4044, %v1348
  %v4394 = vmul.f32 %v4045, %v1350
  %v4395 = vmul.f32 %v4045, %v1352
  %v4396 = vmul.f32 %v4046, %v1354
  %v4397 = vmul.f32 %v4046, %v1356
  %v4398 = vmul.f32 %v4047, %v1358
  %v4399 = vmul.f32 %v4047, %v1360
  %v4400 = vmul.f32 %v4048, %v1362
  %v4401 = vmul.f32 %v4048, %v1364
  %v4402 = vmul.f32 %v4049, %v1366
  %v4403 = vmul.f32 %v4049, %v1368
  %v4404 = vmul.f32 %v4050, %v1370
  %v4405 = vmul.f32 %v4050, %v1372
  %v4406 = vmul.f32 %v4051, %v1374
  %v4407 = vmul.f32 %v4051, %v1376
  %v4408 = vmul.f32 %v4052, %v1378
  %v4409 = vmul.f32 %v4052, %v1380
  %v4410 = vmul.f32 %v4053, %v1382
  %v4411 = vmul.f32 %v4053, %v1384
  %4444 = vrot.lane.b32.xlu0 %v4380, 112
  %v4445 = vpop.permute.xlu0 %4444
  %4446 = vrot.lane.b32.xlu0 %v4381, 112
  %v4447 = vpop.permute.xlu0 %4446
  %4448 = vrot.lane.b32.xlu0 %v4382, 112
  %v4449 = vpop.permute.xlu0 %4448
  %4450 = vrot.lane.b32.xlu0 %v4383, 112
  %v4451 = vpop.permute.xlu0 %4450
  %4452 = vrot.lane.b32.xlu0 %v4384, 112
  %v4453 = vpop.permute.xlu0 %4452
  %4454 = vrot.lane.b32.xlu0 %v4385, 112
  %v4455 = vpop.permute.xlu0 %4454
  %4456 = vrot.lane.b32.xlu0 %v4386, 112
  %v4457 = vpop.permute.xlu0 %4456
  %4458 = vrot.lane.b32.xlu0 %v4387, 112
  %v4459 = vpop.permute.xlu0 %4458
  %4460 = vrot.lane.b32.xlu0 %v4388, 112
  %v4461 = vpop.permute.xlu0 %4460
  %4462 = vrot.lane.b32.xlu0 %v4389, 112
  %v4463 = vpop.permute.xlu0 %4462
  %4464 = vrot.lane.b32.xlu0 %v4390, 112
  %v4465 = vpop.permute.xlu0 %4464
  %4466 = vrot.lane.b32.xlu0 %v4391, 112
  %v4467 = vpop.permute.xlu0 %4466
  %4468 = vrot.lane.b32.xlu0 %v4392, 112
  %v4469 = vpop.permute.xlu0 %4468
  %4470 = vrot.lane.b32.xlu0 %v4393, 112
  %v4471 = vpop.permute.xlu0 %4470
  %4472 = vrot.lane.b32.xlu0 %v4394, 112
  %v4473 = vpop.permute.xlu0 %4472
  %4474 = vrot.lane.b32.xlu0 %v4395, 112
  %v4475 = vpop.permute.xlu0 %4474
  %4476 = vrot.lane.b32.xlu0 %v4396, 112
  %v4477 = vpop.permute.xlu0 %4476
  %4478 = vrot.lane.b32.xlu0 %v4397, 112
  %v4479 = vpop.permute.xlu0 %4478
  %4480 = vrot.lane.b32.xlu0 %v4398, 112
  %v4481 = vpop.permute.xlu0 %4480
  %4482 = vrot.lane.b32.xlu0 %v4399, 112
  %v4483 = vpop.permute.xlu0 %4482
  %4484 = vrot.lane.b32.xlu0 %v4400, 112
  %v4485 = vpop.permute.xlu0 %4484
  %4486 = vrot.lane.b32.xlu0 %v4401, 112
  %v4487 = vpop.permute.xlu0 %4486
  %4488 = vrot.lane.b32.xlu0 %v4402, 112
  %v4489 = vpop.permute.xlu0 %4488
  %4490 = vrot.lane.b32.xlu0 %v4403, 112
  %v4491 = vpop.permute.xlu0 %4490
  %4492 = vrot.lane.b32.xlu0 %v4404, 112
  %v4493 = vpop.permute.xlu0 %4492
  %4494 = vrot.lane.b32.xlu0 %v4405, 112
  %v4495 = vpop.permute.xlu0 %4494
  %4496 = vrot.lane.b32.xlu0 %v4406, 112
  %v4497 = vpop.permute.xlu0 %4496
  %4498 = vrot.lane.b32.xlu0 %v4407, 112
  %v4499 = vpop.permute.xlu0 %4498
  %4500 = vrot.lane.b32.xlu0 %v4408, 112
  %v4501 = vpop.permute.xlu0 %4500
  %4502 = vrot.lane.b32.xlu0 %v4409, 112
  %v4503 = vpop.permute.xlu0 %4502
  %4504 = vrot.lane.b32.xlu0 %v4410, 112
  %v4505 = vpop.permute.xlu0 %4504
  %4506 = vrot.lane.b32.xlu0 %v4411, 112
  %v4507 = vpop.permute.xlu0 %4506
  %v4540 = vsel %vm999, %v4445, 0.0
  %4541 = vadd.xlane.f32.xlu0 %v4540
  %v4542 = vpop.xlane.xlu0 %4541
  %v4543 = vsel %vm999, %v4447, 0.0
  %4544 = vadd.xlane.f32.xlu0 %v4543
  %v4545 = vpop.xlane.xlu0 %4544
  %v4546 = vsel %vm999, %v4449, 0.0
  %4547 = vadd.xlane.f32.xlu0 %v4546
  %v4548 = vpop.xlane.xlu0 %4547
  %v4549 = vsel %vm999, %v4451, 0.0
  %4550 = vadd.xlane.f32.xlu0 %v4549
  %v4551 = vpop.xlane.xlu0 %4550
  %v4552 = vsel %vm999, %v4453, 0.0
  %4553 = vadd.xlane.f32.xlu0 %v4552
  %v4554 = vpop.xlane.xlu0 %4553
  %v4555 = vsel %vm999, %v4455, 0.0
  %4556 = vadd.xlane.f32.xlu0 %v4555
  %v4557 = vpop.xlane.xlu0 %4556
  %v4558 = vsel %vm999, %v4457, 0.0
  %4559 = vadd.xlane.f32.xlu0 %v4558
  %v4560 = vpop.xlane.xlu0 %4559
  %v4561 = vsel %vm999, %v4459, 0.0
  %4562 = vadd.xlane.f32.xlu0 %v4561
  %v4563 = vpop.xlane.xlu0 %4562
  %v4564 = vsel %vm999, %v4461, 0.0
  %4565 = vadd.xlane.f32.xlu0 %v4564
  %v4566 = vpop.xlane.xlu0 %4565
  %v4567 = vsel %vm999, %v4463, 0.0
  %4568 = vadd.xlane.f32.xlu0 %v4567
  %v4569 = vpop.xlane.xlu0 %4568
  %v4570 = vsel %vm999, %v4465, 0.0
  %4571 = vadd.xlane.f32.xlu0 %v4570
  %v4572 = vpop.xlane.xlu0 %4571
  %v4573 = vsel %vm999, %v4467, 0.0
  %4574 = vadd.xlane.f32.xlu0 %v4573
  %v4575 = vpop.xlane.xlu0 %4574
  %v4576 = vsel %vm999, %v4469, 0.0
  %4577 = vadd.xlane.f32.xlu0 %v4576
  %v4578 = vpop.xlane.xlu0 %4577
  %v4579 = vsel %vm999, %v4471, 0.0
  %4580 = vadd.xlane.f32.xlu0 %v4579
  %v4581 = vpop.xlane.xlu0 %4580
  %v4582 = vsel %vm999, %v4473, 0.0
  %4583 = vadd.xlane.f32.xlu0 %v4582
  %v4584 = vpop.xlane.xlu0 %4583
  %v4585 = vsel %vm999, %v4475, 0.0
  %4586 = vadd.xlane.f32.xlu0 %v4585
  %v4587 = vpop.xlane.xlu0 %4586
  %v4588 = vsel %vm999, %v4477, 0.0
  %4589 = vadd.xlane.f32.xlu0 %v4588
  %v4590 = vpop.xlane.xlu0 %4589
  %v4591 = vsel %vm999, %v4479, 0.0
  %4592 = vadd.xlane.f32.xlu0 %v4591
  %v4593 = vpop.xlane.xlu0 %4592
  %v4594 = vsel %vm999, %v4481, 0.0
  %4595 = vadd.xlane.f32.xlu0 %v4594
  %v4596 = vpop.xlane.xlu0 %4595
  %v4597 = vsel %vm999, %v4483, 0.0
  %4598 = vadd.xlane.f32.xlu0 %v4597
  %v4599 = vpop.xlane.xlu0 %4598
  %v4600 = vsel %vm999, %v4485, 0.0
  %4601 = vadd.xlane.f32.xlu0 %v4600
  %v4602 = vpop.xlane.xlu0 %4601
  %v4603 = vsel %vm999, %v4487, 0.0
  %4604 = vadd.xlane.f32.xlu0 %v4603
  %v4605 = vpop.xlane.xlu0 %4604
  %v4606 = vsel %vm999, %v4489, 0.0
  %4607 = vadd.xlane.f32.xlu0 %v4606
  %v4608 = vpop.xlane.xlu0 %4607
  %v4609 = vsel %vm999, %v4491, 0.0
  %4610 = vadd.xlane.f32.xlu0 %v4609
  %v4611 = vpop.xlane.xlu0 %4610
  %v4612 = vsel %vm999, %v4493, 0.0
  %4613 = vadd.xlane.f32.xlu0 %v4612
  %v4614 = vpop.xlane.xlu0 %4613
  %v4615 = vsel %vm999, %v4495, 0.0
  %4616 = vadd.xlane.f32.xlu0 %v4615
  %v4617 = vpop.xlane.xlu0 %4616
  %v4618 = vsel %vm999, %v4497, 0.0
  %4619 = vadd.xlane.f32.xlu0 %v4618
  %v4620 = vpop.xlane.xlu0 %4619
  %v4621 = vsel %vm999, %v4499, 0.0
  %4622 = vadd.xlane.f32.xlu0 %v4621
  %v4623 = vpop.xlane.xlu0 %4622
  %v4624 = vsel %vm999, %v4501, 0.0
  %4625 = vadd.xlane.f32.xlu0 %v4624
  %v4626 = vpop.xlane.xlu0 %4625
  %v4627 = vsel %vm999, %v4503, 0.0
  %4628 = vadd.xlane.f32.xlu0 %v4627
  %v4629 = vpop.xlane.xlu0 %4628
  %v4630 = vsel %vm999, %v4505, 0.0
  %4631 = vadd.xlane.f32.xlu0 %v4630
  %v4632 = vpop.xlane.xlu0 %4631
  %v4633 = vsel %vm999, %v4507, 0.0
  %4634 = vadd.xlane.f32.xlu0 %v4633
  %v4635 = vpop.xlane.xlu0 %4634
  %4636 = vrot.lane.b32.xlu0 %v3133, 112
  %v4637 = vpop.permute.xlu0 %4636
  %4638 = vrot.lane.b32.xlu0 %v3136, 112
  %v4639 = vpop.permute.xlu0 %4638
  %4640 = vrot.lane.b32.xlu0 %v3165, 112
  %v4641 = vpop.permute.xlu0 %4640
  %4642 = vrot.lane.b32.xlu0 %v3168, 112
  %v4643 = vpop.permute.xlu0 %4642
  %v4676 = vperm.slane %v4542, %v1129
  %v4677 = vperm.slane %v4545, %v1131
  %v4678 = vsel %vm1133, %v4677, %v4676
  %v4679 = vperm.slane %v4548, %v1129
  %v4680 = vperm.slane %v4551, %v1131
  %v4681 = vsel %vm1133, %v4680, %v4679
  %v4682 = vperm.slane %v4554, %v1129
  %v4683 = vperm.slane %v4557, %v1131
  %v4684 = vsel %vm1133, %v4683, %v4682
  %v4685 = vperm.slane %v4560, %v1129
  %v4686 = vperm.slane %v4563, %v1131
  %v4687 = vsel %vm1133, %v4686, %v4685
  %v4688 = vperm.slane %v4566, %v1129
  %v4689 = vperm.slane %v4569, %v1131
  %v4690 = vsel %vm1133, %v4689, %v4688
  %v4691 = vperm.slane %v4572, %v1129
  %v4692 = vperm.slane %v4575, %v1131
  %v4693 = vsel %vm1133, %v4692, %v4691
  %v4694 = vperm.slane %v4578, %v1129
  %v4695 = vperm.slane %v4581, %v1131
  %v4696 = vsel %vm1133, %v4695, %v4694
  %v4697 = vperm.slane %v4584, %v1129
  %v4698 = vperm.slane %v4587, %v1131
  %v4699 = vsel %vm1133, %v4698, %v4697
  %v4700 = vperm.slane %v4590, %v1129
  %v4701 = vperm.slane %v4593, %v1131
  %v4702 = vsel %vm1133, %v4701, %v4700
  %v4703 = vperm.slane %v4596, %v1129
  %v4704 = vperm.slane %v4599, %v1131
  %v4705 = vsel %vm1133, %v4704, %v4703
  %v4706 = vperm.slane %v4602, %v1129
  %v4707 = vperm.slane %v4605, %v1131
  %v4708 = vsel %vm1133, %v4707, %v4706
  %v4709 = vperm.slane %v4608, %v1129
  %v4710 = vperm.slane %v4611, %v1131
  %v4711 = vsel %vm1133, %v4710, %v4709
  %v4712 = vperm.slane %v4614, %v1129
  %v4713 = vperm.slane %v4617, %v1131
  %v4714 = vsel %vm1133, %v4713, %v4712
  %v4715 = vperm.slane %v4620, %v1129
  %v4716 = vperm.slane %v4623, %v1131
  %v4717 = vsel %vm1133, %v4716, %v4715
  %v4718 = vperm.slane %v4626, %v1129
  %v4719 = vperm.slane %v4629, %v1131
  %v4720 = vsel %vm1133, %v4719, %v4718
  %v4721 = vperm.slane %v4632, %v1129
  %v4722 = vperm.slane %v4635, %v1131
  %v4723 = vsel %vm1133, %v4722, %v4721
  %v4724 = vsel %vm1180, %v4681, %v4678
  %v4725 = vsel %vm1182, %v4684, %v4724
  %v4726 = vsel %vm1184, %v4687, %v4725
  %v4727 = vsel %vm1186, %v4690, %v4726
  %v4728 = vsel %vm1188, %v4693, %v4727
  %v4729 = vsel %vm1190, %v4696, %v4728
  %v4730 = vsel %vm1192, %v4699, %v4729
  %v4731 = vsel %vm1180, %v4705, %v4702
  %v4732 = vsel %vm1182, %v4708, %v4731
  %v4733 = vsel %vm1184, %v4711, %v4732
  %v4734 = vsel %vm1186, %v4714, %v4733
  %v4735 = vsel %vm1188, %v4717, %v4734
  %v4736 = vsel %vm1190, %v4720, %v4735
  %v4737 = vsel %vm1192, %v4723, %v4736
  %v4740 = vsel %vm999, %v4637, 0
  %v4742 = vsel %vm999, %v4639, 0
  %v4744 = vsel %vm999, %v4641, 0
  %v4746 = vsel %vm999, %v4643, 0
  %4748 = vmatpush.xpose.msra.mxu0 0.0
  %4749 = vmatpush.xpose.msra.mxu0 0.0
  %4750 = vmatpush.xpose.msra.mxu0 0.0
  %4751 = vmatpush.xpose.msra.mxu0 0.0
  %4752 = vmatpush.xpose.msra.mxu0 0.0
  %4753 = vmatpush.xpose.msra.mxu0 0.0
  %4754 = vmatpush.xpose.msra.mxu0 0.0
  %4755 = vmatpush.xpose.msra.mxu0 0.0
  %4756 = vmatpush.xpose.msra.mxu0 0.0
  %4757 = vmatpush.xpose.msra.mxu0 0.0
  %4758 = vmatpush.xpose.msra.mxu0 0.0
  %4759 = vmatpush.xpose.msra.mxu0 0.0
  %4760 = vmatpush.xpose.msra.mxu0 0.0
  %4761 = vmatpush.xpose.msra.mxu0 0.0
  %4762 = vmatpush.xpose.msra.mxu0 %v4746
  %4763 = vmatpush.xpose.msra.mxu0 %v4744
  %4764 = vmatmul.f32.gmra.mxu0 %v4740
  %v4765 = vpop.f32.mrf.mxu0
  %v4766 = vadd.f32 %v4730, %v4765
  %4767 = vmatmul.f32.gmra.mxu0 %v4742
  %v4768 = vpop.f32.mrf.mxu0
  %v4769 = vadd.f32 %v4737, %v4768
  %4770 = vdwg.mxu0
  %v4771 = vmul.f32 %v4766, 0.25
  %v4772 = vmul.f32 %v4769, 0.25
  %v4773 = vsel %vm999, %v4771, -inf
  %4774 = vmax.xlane.f32.xlu0 %v4773
  %v4775 = vpop.xlane.xlu0 %4774
  %v4776 = vsel %vm999, %v4772, -inf
  %4777 = vmax.xlane.f32.xlu0 %v4776
  %v4778 = vpop.xlane.xlu0 %4777
  %v4779 = vsub.f32 %v4771, %v4775
  %v4780 = vsub.f32 %v4772, %v4778
  %v4781 = vmul.f32 %v4779, 1.442695
  %v4782 = vpow.pop %v4781
  %v4783 = vmul.f32 %v4780, 1.442695
  %v4784 = vpow.pop %v4783
  %v4785 = vsel %vm999, %v4782, 0.0
  %4786 = vadd.xlane.f32.xlu0 %v4785
  %v4787 = vpop.xlane.xlu0 %4786
  %v4788 = vsel %vm999, %v4784, 0.0
  %4789 = vadd.xlane.f32.xlu0 %v4788
  %v4790 = vpop.xlane.xlu0 %4789
  %v4791 = vrcp.pop %v4787
  %v4792 = vrcp.pop %v4790
  %v4793 = vmul.f32 %v4782, %v4791
  %v4794 = vmul.f32 %v4784, %v4792
  %4797 = vrot.lane.b32.xlu0 %v3197, 112
  %v4798 = vpop.permute.xlu0 %4797
  %4799 = vrot.lane.b32.xlu0 %v3200, 112
  %v4800 = vpop.permute.xlu0 %4799
  %v4804 = vsel %vm999, %v4793, 0
  %v4807 = vsel %vm999, %v4794, 0
  %4809 = vmatpush.msra.mxu0 0.0
  %4810 = vmatpush.msra.mxu0 0.0
  %4811 = vmatpush.msra.mxu0 0.0
  %4812 = vmatpush.msra.mxu0 0.0
  %4813 = vmatpush.msra.mxu0 0.0
  %4814 = vmatpush.msra.mxu0 0.0
  %4815 = vmatpush.msra.mxu0 0.0
  %4816 = vmatpush.msra.mxu0 0.0
  %4817 = vmatpush.msra.mxu0 0.0
  %4818 = vmatpush.msra.mxu0 0.0
  %4819 = vmatpush.msra.mxu0 0.0
  %4820 = vmatpush.msra.mxu0 0.0
  %4821 = vmatpush.msra.mxu0 0.0
  %4822 = vmatpush.msra.mxu0 0.0
  %4823 = vmatpush.msra.mxu0 %v4800
  %4824 = vmatpush.msra.mxu0 %v4798
  %4825 = vmatmul.f32.gmra.mxu0 %v4804
  %v4826 = vpop.f32.mrf.mxu0
  %v4827 = vadd.f32 0.0, %v4826
  %4828 = vmatmul.f32.gmra.mxu0 %v4807
  %v4829 = vpop.f32.mrf.mxu0
  %v4830 = vadd.f32 0.0, %v4829
  %4831 = vdwg.mxu0
  %4834 = vrot.lane.b32.xlu0 %v4827, 16
  %v4835 = vpop.permute.xlu0 %4834
  %4836 = vrot.lane.b32.xlu0 %v4830, 16
  %v4837 = vpop.permute.xlu0 %4836
  %v4840 = vsel %vm999, %v4375, %v4835
  %v4841 = vsel %vm999, %v4378, %v4837
  %v4843 = vsel %vm616, %v4020, 0
  %v4846 = vsel %vm616, %v4021, 0
  %v4849 = vsel %vm616, %v4840, 0
  %v4852 = vsel %vm616, %v4841, 0
  %4854 = vmatpush.msra.mxu0 0.0
  %4855 = vmatpush.msra.mxu0 0.0
  %4856 = vmatpush.msra.mxu0 0.0
  %4857 = vmatpush.msra.mxu0 0.0
  %4858 = vmatpush.msra.mxu0 0.0
  %4859 = vmatpush.msra.mxu0 0.0
  %4860 = vmatpush.msra.mxu0 0.0
  %4861 = vmatpush.msra.mxu0 0.0
  %4862 = vmatpush.msra.mxu0 0.0
  %4863 = vmatpush.msra.mxu0 0.0
  %4864 = vmatpush.msra.mxu0 0.0
  %4865 = vmatpush.msra.mxu0 0.0
  %4866 = vmatpush.msra.mxu0 %v2988
  %4867 = vmatpush.msra.mxu0 %v2987
  %4868 = vmatpush.msra.mxu0 %v2986
  %4869 = vmatpush.msra.mxu0 %v2985
  %4870 = vmatmul.f32.gmra.mxu0 %v4843
  %v4871 = vpop.f32.mrf.mxu0
  %v4872 = vadd.f32 0.0, %v4871
  %4873 = vmatmul.f32.gmra.mxu0 %v4846
  %v4874 = vpop.f32.mrf.mxu0
  %v4875 = vadd.f32 0.0, %v4874
  %4876 = vmatmul.f32.gmra.mxu0 %v4849
  %v4877 = vpop.f32.mrf.mxu0
  %v4878 = vadd.f32 0.0, %v4877
  %4879 = vmatmul.f32.gmra.mxu0 %v4852
  %v4880 = vpop.f32.mrf.mxu0
  %v4881 = vadd.f32 0.0, %v4880
  %4882 = vdwg.mxu0
  %v4883 = vadd.f32 %v2966, %v4872
  %v4884 = vadd.f32 %v2967, %v4875
  %v4885 = vadd.f32 %v2968, %v4878
  %v4886 = vadd.f32 %v2969, %v4881
  %v4888 = vperm.slane %v2989, 0
  %v4890 = vadd.f32 %v4883, %v4888
  %v4891 = vadd.f32 %v4884, %v4888
  %v4892 = vadd.f32 %v4885, %v4888
  %v4893 = vadd.f32 %v4886, %v4888
  %v4894 = vld [vmem:[%s77] sm:$0xff]
  %v4895 = vld [vmem:[%s77 + $0x8] sm:$0xff]
  %v4896 = vld [vmem:[%s77 + $0x10] sm:$0xff]
  %v4897 = vld [vmem:[%s77 + $0x18] sm:$0xff]
  %v4898 = vld [vmem:[%s79] sm:$0x1]
  %v4899 = vld [vmem:[%s81] sm:$0xff]
  %v4900 = vld [vmem:[%s81 + $0x8] sm:$0xff]
  %v4901 = vld [vmem:[%s81 + $0x10] sm:$0xff]
  %v4902 = vld [vmem:[%s81 + $0x18] sm:$0xff]
  %v4903 = vld [vmem:[%s81 + $0x20] sm:$0xff]
  %v4904 = vld [vmem:[%s81 + $0x28] sm:$0xff]
  %v4905 = vld [vmem:[%s81 + $0x30] sm:$0xff]
  %v4906 = vld [vmem:[%s81 + $0x38] sm:$0xff]
  %v4907 = vld [vmem:[%s83] sm:$0x1]
  %v4908 = vld [vmem:[%s85] sm:$0x1]
  %v4909 = vld [vmem:[%s87] sm:$0x1]
  %v4910 = vsel %vm616, %v4890, 0.0
  %4911 = vadd.xlane.f32.xlu0 %v4910
  %v4912 = vpop.xlane.xlu0 %4911
  %v4913 = vsel %vm616, %v4891, 0.0
  %4914 = vadd.xlane.f32.xlu0 %v4913
  %v4915 = vpop.xlane.xlu0 %4914
  %v4916 = vsel %vm616, %v4892, 0.0
  %4917 = vadd.xlane.f32.xlu0 %v4916
  %v4918 = vpop.xlane.xlu0 %4917
  %v4919 = vsel %vm616, %v4893, 0.0
  %4920 = vadd.xlane.f32.xlu0 %v4919
  %v4921 = vpop.xlane.xlu0 %4920
  %v4922 = vmul.f32 %v4912, %v720
  %v4923 = vmul.f32 %v4915, %v720
  %v4924 = vmul.f32 %v4918, %v720
  %v4925 = vmul.f32 %v4921, %v720
  %v4926 = vsub.f32 %v4890, %v4922
  %v4927 = vsub.f32 %v4891, %v4923
  %v4928 = vsub.f32 %v4892, %v4924
  %v4929 = vsub.f32 %v4893, %v4925
  %v4930 = vmul.f32 %v4926, %v4926
  %v4931 = vmul.f32 %v4927, %v4927
  %v4932 = vmul.f32 %v4928, %v4928
  %v4933 = vmul.f32 %v4929, %v4929
  %v4934 = vsel %vm616, %v4930, 0.0
  %4935 = vadd.xlane.f32.xlu0 %v4934
  %v4936 = vpop.xlane.xlu0 %4935
  %v4937 = vsel %vm616, %v4931, 0.0
  %4938 = vadd.xlane.f32.xlu0 %v4937
  %v4939 = vpop.xlane.xlu0 %4938
  %v4940 = vsel %vm616, %v4932, 0.0
  %4941 = vadd.xlane.f32.xlu0 %v4940
  %v4942 = vpop.xlane.xlu0 %4941
  %v4943 = vsel %vm616, %v4933, 0.0
  %4944 = vadd.xlane.f32.xlu0 %v4943
  %v4945 = vpop.xlane.xlu0 %4944
  %v4946 = vmul.f32 %v4936, %v720
  %v4947 = vmul.f32 %v4939, %v720
  %v4948 = vmul.f32 %v4942, %v720
  %v4949 = vmul.f32 %v4945, %v720
  %v4950 = vadd.f32 %v4946, 1e-05
  %v4951 = vadd.f32 %v4947, 1e-05
  %v4952 = vadd.f32 %v4948, 1e-05
  %v4953 = vadd.f32 %v4949, 1e-05
  %v4954 = vrsqrt.pop %v4950
  %v4955 = vmul.f32 %v4954, %v4950
  %v4956 = vmul.f32 %v4955, %v4954
  %v4957 = vmul.f32 0.5, %v4956
  %v4958 = vsub.f32 1.5, %v4957
  %v4959 = vmul.f32 %v4954, %v4958
  %vm4960 = vweird.f32 %v4950
  %vm4961 = vweird.f32 %v4954
  %vm4962 = vmor %vm4960, %vm4961
  %v4963 = vsel %vm4962, %v4954, %v4959
  %v4964 = vrsqrt.pop %v4951
  %v4965 = vmul.f32 %v4964, %v4951
  %v4966 = vmul.f32 %v4965, %v4964
  %v4967 = vmul.f32 0.5, %v4966
  %v4968 = vsub.f32 1.5, %v4967
  %v4969 = vmul.f32 %v4964, %v4968
  %vm4970 = vweird.f32 %v4951
  %vm4971 = vweird.f32 %v4964
  %vm4972 = vmor %vm4970, %vm4971
  %v4973 = vsel %vm4972, %v4964, %v4969
  %v4974 = vrsqrt.pop %v4952
  %v4975 = vmul.f32 %v4974, %v4952
  %v4976 = vmul.f32 %v4975, %v4974
  %v4977 = vmul.f32 0.5, %v4976
  %v4978 = vsub.f32 1.5, %v4977
  %v4979 = vmul.f32 %v4974, %v4978
  %vm4980 = vweird.f32 %v4952
  %vm4981 = vweird.f32 %v4974
  %vm4982 = vmor %vm4980, %vm4981
  %v4983 = vsel %vm4982, %v4974, %v4979
  %v4984 = vrsqrt.pop %v4953
  %v4985 = vmul.f32 %v4984, %v4953
  %v4986 = vmul.f32 %v4985, %v4984
  %v4987 = vmul.f32 0.5, %v4986
  %v4988 = vsub.f32 1.5, %v4987
  %v4989 = vmul.f32 %v4984, %v4988
  %vm4990 = vweird.f32 %v4953
  %vm4991 = vweird.f32 %v4984
  %vm4992 = vmor %vm4990, %vm4991
  %v4993 = vsel %vm4992, %v4984, %v4989
  %v4994 = vmul.f32 %v4926, %v4963
  %v4995 = vmul.f32 %v4927, %v4973
  %v4996 = vmul.f32 %v4928, %v4983
  %v4997 = vmul.f32 %v4929, %v4993
  %v4999 = vperm.slane %v4908, 0
  %v5001 = vmul.f32 %v4994, %v4999
  %v5002 = vmul.f32 %v4995, %v4999
  %v5003 = vmul.f32 %v4996, %v4999
  %v5004 = vmul.f32 %v4997, %v4999
  %v5006 = vperm.slane %v4909, 0
  %v5008 = vadd.f32 %v5001, %v5006
  %v5009 = vadd.f32 %v5002, %v5006
  %v5010 = vadd.f32 %v5003, %v5006
  %v5011 = vadd.f32 %v5004, %v5006
  %v5013 = vperm.slane %v4898, 0
  %v5016 = vsel %vm616, %v5008, 0
  %v5019 = vsel %vm616, %v5009, 0
  %v5022 = vsel %vm616, %v5010, 0
  %v5025 = vsel %vm616, %v5011, 0
  %5027 = vmatpush.msra.mxu0 0.0
  %5028 = vmatpush.msra.mxu0 0.0
  %5029 = vmatpush.msra.mxu0 0.0
  %5030 = vmatpush.msra.mxu0 0.0
  %5031 = vmatpush.msra.mxu0 0.0
  %5032 = vmatpush.msra.mxu0 0.0
  %5033 = vmatpush.msra.mxu0 0.0
  %5034 = vmatpush.msra.mxu0 0.0
  %5035 = vmatpush.msra.mxu0 0.0
  %5036 = vmatpush.msra.mxu0 0.0
  %5037 = vmatpush.msra.mxu0 0.0
  %5038 = vmatpush.msra.mxu0 0.0
  %5039 = vmatpush.msra.mxu0 %v4897
  %5040 = vmatpush.msra.mxu0 %v4896
  %5041 = vmatpush.msra.mxu0 %v4895
  %5042 = vmatpush.msra.mxu0 %v4894
  %5043 = vmatmul.f32.gmra.mxu0 %v5016
  %v5044 = vpop.f32.mrf.mxu0
  %v5045 = vadd.f32 %v5013, %v5044
  %5046 = vmatmul.f32.gmra.mxu0 %v5019
  %v5047 = vpop.f32.mrf.mxu0
  %v5048 = vadd.f32 %v5013, %v5047
  %5049 = vmatmul.f32.gmra.mxu0 %v5022
  %v5050 = vpop.f32.mrf.mxu0
  %v5051 = vadd.f32 %v5013, %v5050
  %5052 = vmatmul.f32.gmra.mxu0 %v5025
  %v5053 = vpop.f32.mrf.mxu0
  %v5054 = vadd.f32 %v5013, %v5053
  %5055 = vdwg.mxu0
  %v5056 = vmax.f32 %v5045, 0.0
  %v5057 = vmax.f32 %v5048, 0.0
  %v5058 = vmax.f32 %v5051, 0.0
  %v5059 = vmax.f32 %v5054, 0.0
  %v5061 = vsel %vm2917, %v5056, 0
  %v5064 = vsel %vm2917, %v5057, 0
  %v5067 = vsel %vm2917, %v5058, 0
  %v5070 = vsel %vm2917, %v5059, 0
  %5072 = vmatpush.msra.mxu0 0.0
  %5073 = vmatpush.msra.mxu0 0.0
  %5074 = vmatpush.msra.mxu0 0.0
  %5075 = vmatpush.msra.mxu0 0.0
  %5076 = vmatpush.msra.mxu0 0.0
  %5077 = vmatpush.msra.mxu0 0.0
  %5078 = vmatpush.msra.mxu0 0.0
  %5079 = vmatpush.msra.mxu0 0.0
  %5080 = vmatpush.msra.mxu0 %v4906
  %5081 = vmatpush.msra.mxu0 %v4905
  %5082 = vmatpush.msra.mxu0 %v4904
  %5083 = vmatpush.msra.mxu0 %v4903
  %5084 = vmatpush.msra.mxu0 %v4902
  %5085 = vmatpush.msra.mxu0 %v4901
  %5086 = vmatpush.msra.mxu0 %v4900
  %5087 = vmatpush.msra.mxu0 %v4899
  %5088 = vmatmul.f32.gmra.mxu0 %v5061
  %v5089 = vpop.f32.mrf.mxu0
  %v5090 = vadd.f32 0.0, %v5089
  %5091 = vmatmul.f32.gmra.mxu0 %v5064
  %v5092 = vpop.f32.mrf.mxu0
  %v5093 = vadd.f32 0.0, %v5092
  %5094 = vmatmul.f32.gmra.mxu0 %v5067
  %v5095 = vpop.f32.mrf.mxu0
  %v5096 = vadd.f32 0.0, %v5095
  %5097 = vmatmul.f32.gmra.mxu0 %v5070
  %v5098 = vpop.f32.mrf.mxu0
  %v5099 = vadd.f32 0.0, %v5098
  %5100 = vdwg.mxu0
  %v5101 = vadd.f32 %v4890, %v5090
  %v5102 = vadd.f32 %v4891, %v5093
  %v5103 = vadd.f32 %v4892, %v5096
  %v5104 = vadd.f32 %v4893, %v5099
  %v5106 = vperm.slane %v4907, 0
  %v5108 = vadd.f32 %v5101, %v5106
  %v5109 = vadd.f32 %v5102, %v5106
  %v5110 = vadd.f32 %v5103, %v5106
  %v5111 = vadd.f32 %v5104, %v5106
  %v5112 = vld [vmem:[%s89] sm:$0x1]
  %v5113 = vld [vmem:[%s91] sm:$0x1]
  %v5114 = vsel %vm616, %v5108, 0.0
  %5115 = vadd.xlane.f32.xlu0 %v5114
  %v5116 = vpop.xlane.xlu0 %5115
  %v5117 = vsel %vm616, %v5109, 0.0
  %5118 = vadd.xlane.f32.xlu0 %v5117
  %v5119 = vpop.xlane.xlu0 %5118
  %v5120 = vsel %vm616, %v5110, 0.0
  %5121 = vadd.xlane.f32.xlu0 %v5120
  %v5122 = vpop.xlane.xlu0 %5121
  %v5123 = vsel %vm616, %v5111, 0.0
  %5124 = vadd.xlane.f32.xlu0 %v5123
  %v5125 = vpop.xlane.xlu0 %5124
  %v5126 = vmul.f32 %v5116, %v720
  %v5127 = vmul.f32 %v5119, %v720
  %v5128 = vmul.f32 %v5122, %v720
  %v5129 = vmul.f32 %v5125, %v720
  %v5130 = vsub.f32 %v5108, %v5126
  %v5131 = vsub.f32 %v5109, %v5127
  %v5132 = vsub.f32 %v5110, %v5128
  %v5133 = vsub.f32 %v5111, %v5129
  %v5134 = vmul.f32 %v5130, %v5130
  %v5135 = vmul.f32 %v5131, %v5131
  %v5136 = vmul.f32 %v5132, %v5132
  %v5137 = vmul.f32 %v5133, %v5133
  %v5138 = vsel %vm616, %v5134, 0.0
  %5139 = vadd.xlane.f32.xlu0 %v5138
  %v5140 = vpop.xlane.xlu0 %5139
  %v5141 = vsel %vm616, %v5135, 0.0
  %5142 = vadd.xlane.f32.xlu0 %v5141
  %v5143 = vpop.xlane.xlu0 %5142
  %v5144 = vsel %vm616, %v5136, 0.0
  %5145 = vadd.xlane.f32.xlu0 %v5144
  %v5146 = vpop.xlane.xlu0 %5145
  %v5147 = vsel %vm616, %v5137, 0.0
  %5148 = vadd.xlane.f32.xlu0 %v5147
  %v5149 = vpop.xlane.xlu0 %5148
  %v5150 = vmul.f32 %v5140, %v720
  %v5151 = vmul.f32 %v5143, %v720
  %v5152 = vmul.f32 %v5146, %v720
  %v5153 = vmul.f32 %v5149, %v720
  %v5154 = vadd.f32 %v5150, 1e-05
  %v5155 = vadd.f32 %v5151, 1e-05
  %v5156 = vadd.f32 %v5152, 1e-05
  %v5157 = vadd.f32 %v5153, 1e-05
  %v5158 = vrsqrt.pop %v5154
  %v5159 = vmul.f32 %v5158, %v5154
  %v5160 = vmul.f32 %v5159, %v5158
  %v5161 = vmul.f32 0.5, %v5160
  %v5162 = vsub.f32 1.5, %v5161
  %v5163 = vmul.f32 %v5158, %v5162
  %vm5164 = vweird.f32 %v5154
  %vm5165 = vweird.f32 %v5158
  %vm5166 = vmor %vm5164, %vm5165
  %v5167 = vsel %vm5166, %v5158, %v5163
  %v5168 = vrsqrt.pop %v5155
  %v5169 = vmul.f32 %v5168, %v5155
  %v5170 = vmul.f32 %v5169, %v5168
  %v5171 = vmul.f32 0.5, %v5170
  %v5172 = vsub.f32 1.5, %v5171
  %v5173 = vmul.f32 %v5168, %v5172
  %vm5174 = vweird.f32 %v5155
  %vm5175 = vweird.f32 %v5168
  %vm5176 = vmor %vm5174, %vm5175
  %v5177 = vsel %vm5176, %v5168, %v5173
  %v5178 = vrsqrt.pop %v5156
  %v5179 = vmul.f32 %v5178, %v5156
  %v5180 = vmul.f32 %v5179, %v5178
  %v5181 = vmul.f32 0.5, %v5180
  %v5182 = vsub.f32 1.5, %v5181
  %v5183 = vmul.f32 %v5178, %v5182
  %vm5184 = vweird.f32 %v5156
  %vm5185 = vweird.f32 %v5178
  %vm5186 = vmor %vm5184, %vm5185
  %v5187 = vsel %vm5186, %v5178, %v5183
  %v5188 = vrsqrt.pop %v5157
  %v5189 = vmul.f32 %v5188, %v5157
  %v5190 = vmul.f32 %v5189, %v5188
  %v5191 = vmul.f32 0.5, %v5190
  %v5192 = vsub.f32 1.5, %v5191
  %v5193 = vmul.f32 %v5188, %v5192
  %vm5194 = vweird.f32 %v5157
  %vm5195 = vweird.f32 %v5188
  %vm5196 = vmor %vm5194, %vm5195
  %v5197 = vsel %vm5196, %v5188, %v5193
  %v5198 = vmul.f32 %v5130, %v5167
  %v5199 = vmul.f32 %v5131, %v5177
  %v5200 = vmul.f32 %v5132, %v5187
  %v5201 = vmul.f32 %v5133, %v5197
  %v5203 = vperm.slane %v5112, 0
  %v5205 = vmul.f32 %v5198, %v5203
  %v5206 = vmul.f32 %v5199, %v5203
  %v5207 = vmul.f32 %v5200, %v5203
  %v5208 = vmul.f32 %v5201, %v5203
  %v5210 = vperm.slane %v5113, 0
  %v5212 = vadd.f32 %v5205, %v5210
  %v5213 = vadd.f32 %v5206, %v5210
  %v5214 = vadd.f32 %v5207, %v5210
  %v5215 = vadd.f32 %v5208, %v5210
  %v5216 = vld [vmem:[%s93] sm:$0xff]
  %v5217 = vld [vmem:[%s93 + $0x8] sm:$0xff]
  %v5218 = vld [vmem:[%s93 + $0x10] sm:$0xff]
  %v5219 = vld [vmem:[%s93 + $0x18] sm:$0xff]
  %v5220 = vld [vmem:[%s95] sm:$0x1]
  %v5221 = vld [vmem:[#allocation4] sm:$0x1]
  %v5222 = vld [vmem:[%s99] sm:$0xff]
  %v5223 = vld [vmem:[%s99 + $0x8] sm:$0xff]
  %v5224 = vld [vmem:[%s99 + $0x10] sm:$0xff]
  %v5225 = vld [vmem:[%s99 + $0x18] sm:$0xff]
  %v5226 = vld [vmem:[%s101] sm:$0x1]
  %v5228 = vperm.slane %v5220, 0
  %v5231 = vsel %vm616, %v5212, 0
  %v5234 = vsel %vm616, %v5213, 0
  %v5237 = vsel %vm616, %v5214, 0
  %v5240 = vsel %vm616, %v5215, 0
  %5242 = vmatpush.msra.mxu0 0.0
  %5243 = vmatpush.msra.mxu0 0.0
  %5244 = vmatpush.msra.mxu0 0.0
  %5245 = vmatpush.msra.mxu0 0.0
  %5246 = vmatpush.msra.mxu0 0.0
  %5247 = vmatpush.msra.mxu0 0.0
  %5248 = vmatpush.msra.mxu0 0.0
  %5249 = vmatpush.msra.mxu0 0.0
  %5250 = vmatpush.msra.mxu0 0.0
  %5251 = vmatpush.msra.mxu0 0.0
  %5252 = vmatpush.msra.mxu0 0.0
  %5253 = vmatpush.msra.mxu0 0.0
  %5254 = vmatpush.msra.mxu0 %v5219
  %5255 = vmatpush.msra.mxu0 %v5218
  %5256 = vmatpush.msra.mxu0 %v5217
  %5257 = vmatpush.msra.mxu0 %v5216
  %5258 = vmatmul.f32.gmra.mxu0 %v5231
  %v5259 = vpop.f32.mrf.mxu0
  %v5260 = vadd.f32 %v5228, %v5259
  %5261 = vmatmul.f32.gmra.mxu0 %v5234
  %v5262 = vpop.f32.mrf.mxu0
  %v5263 = vadd.f32 %v5228, %v5262
  %5264 = vmatmul.f32.gmra.mxu0 %v5237
  %v5265 = vpop.f32.mrf.mxu0
  %v5266 = vadd.f32 %v5228, %v5265
  %5267 = vmatmul.f32.gmra.mxu0 %v5240
  %v5268 = vpop.f32.mrf.mxu0
  %v5269 = vadd.f32 %v5228, %v5268
  %5270 = vdwg.mxu0
  %vm5271 = vcmp.ge.f32.partialorder %v5260, 0.0
  %vm5272 = vcmp.ge.f32.partialorder %v5263, 0.0
  %vm5273 = vcmp.ge.f32.partialorder %v5266, 0.0
  %vm5274 = vcmp.ge.f32.partialorder %v5269, 0.0
  %v5276 = vperm.slane %v5221, 0
  %5277 = vset.pattern.permute.xlu0 0
  %5278 = vperm.xlu0 %5277, %v5276
  %v5279 = vpop.permute.xlu0 %5278
  %v5281 = vmul.f32 %v5279, %v5260
  %v5282 = vmul.f32 %v5279, %v5263
  %v5283 = vmul.f32 %v5279, %v5266
  %v5284 = vmul.f32 %v5279, %v5269
  %v5285 = vsel %vm5271, %v5260, %v5281
  %v5286 = vsel %vm5272, %v5263, %v5282
  %v5287 = vsel %vm5273, %v5266, %v5283
  %v5288 = vsel %vm5274, %v5269, %v5284
  %v5290 = vperm.slane %v5226, 0
  %v5293 = vsel %vm616, %v5285, 0
  %v5296 = vsel %vm616, %v5286, 0
  %v5299 = vsel %vm616, %v5287, 0
  %v5302 = vsel %vm616, %v5288, 0
  %5304 = vmatpush.msra.mxu0 0.0
  %5305 = vmatpush.msra.mxu0 0.0
  %5306 = vmatpush.msra.mxu0 0.0
  %5307 = vmatpush.msra.mxu0 0.0
  %5308 = vmatpush.msra.mxu0 0.0
  %5309 = vmatpush.msra.mxu0 0.0
  %5310 = vmatpush.msra.mxu0 0.0
  %5311 = vmatpush.msra.mxu0 0.0
  %5312 = vmatpush.msra.mxu0 0.0
  %5313 = vmatpush.msra.mxu0 0.0
  %5314 = vmatpush.msra.mxu0 0.0
  %5315 = vmatpush.msra.mxu0 0.0
  %5316 = vmatpush.msra.mxu0 %v5225
  %5317 = vmatpush.msra.mxu0 %v5224
  %5318 = vmatpush.msra.mxu0 %v5223
  %5319 = vmatpush.msra.mxu0 %v5222
  %5320 = vmatmul.f32.gmra.mxu0 %v5293
  %v5321 = vpop.f32.mrf.mxu0
  %v5322 = vadd.f32 %v5290, %v5321
  %5323 = vmatmul.f32.gmra.mxu0 %v5296
  %v5324 = vpop.f32.mrf.mxu0
  %v5325 = vadd.f32 %v5290, %v5324
  %5326 = vmatmul.f32.gmra.mxu0 %v5299
  %v5327 = vpop.f32.mrf.mxu0
  %v5328 = vadd.f32 %v5290, %v5327
  %5329 = vmatmul.f32.gmra.mxu0 %v5302
  %v5330 = vpop.f32.mrf.mxu0
  %v5331 = vadd.f32 %v5290, %v5330
  %5332 = vdwg.mxu0
  %v5333 = vsub.f32 1.0, %v304
  %v5334 = vsub.f32 1.0, %v305
  %v5335 = vsub.f32 1.0, %v306
  %v5336 = vsub.f32 1.0, %v307
  %v5337 = vmul.f32 %v5333, %v5322
  %v5338 = vmul.f32 %v5334, %v5325
  %v5339 = vmul.f32 %v5335, %v5328
  %v5340 = vmul.f32 %v5336, %v5331
  %v5341 = vadd.f32 %v319, %v5337
  %v5342 = vadd.f32 %v320, %v5338
  %v5343 = vadd.f32 %v321, %v5339
  %v5344 = vadd.f32 %v322, %v5340
  %vm5345 = vcmask 48128
  %5346 = vst.msk [vmem:[%s103] sm:$0xff] %vm5345, %v5341
  %5347 = vst.msk [vmem:[%s103 + $0x8] sm:$0xff] %vm5345, %v5342
  %5348 = vst.msk [vmem:[%s103 + $0x10] sm:$0xff] %vm5345, %v5343
  %5349 = vst.msk [vmem:[%s103 + $0x18] sm:$0xff] %vm5345, %v5344
  %v5350 = vsub.f32 0.0, %v5322
  %v5351 = vsub.f32 0.0, %v5325
  %v5352 = vsub.f32 0.0, %v5328
  %v5353 = vsub.f32 0.0, %v5331
  %v5354 = vmul.f32 %v5350, 1.442695
  %v5355 = vpow.pop %v5354
  %v5356 = vmul.f32 %v5351, 1.442695
  %v5357 = vpow.pop %v5356
  %v5358 = vmul.f32 %v5352, 1.442695
  %v5359 = vpow.pop %v5358
  %v5360 = vmul.f32 %v5353, 1.442695
  %v5361 = vpow.pop %v5360
  %v5362 = vadd.f32 %v5355, 1.0
  %v5363 = vadd.f32 %v5357, 1.0
  %v5364 = vadd.f32 %v5359, 1.0
  %v5365 = vadd.f32 %v5361, 1.0
  %v5366 = vrcp.pop %v5362
  %v5367 = vmul.f32 %v5362, %v5366
  %v5368 = vsub.f32 1.0, %v5367
  %v5369 = vmul.f32 %v5366, %v5368
  %v5370 = vadd.f32 %v5366, %v5369
  %vm5371 = vweird.f32 %v5362
  %vm5372 = vweird.f32 %v5366
  %vm5373 = vmor %vm5371, %vm5372
  %v5374 = vsel %vm5373, %v5366, %v5370
  %v5375 = vand.u32 2147483647, %v5362
  %vm5376 = vcmp.eq.f32.partialorder %v5375, 8.507059e+37
  %v5377 = vand.u32 %v5362, 2147483648
  %v5378 = vor.u32 1.1754944e-38, %v5377
  %v5379 = vsel %vm5376, %v5378, %v5374
  %v5380 = vmul.f32 1.0, %v5379
  %v5381 = vrcp.pop %v5363
  %v5382 = vmul.f32 %v5363, %v5381
  %v5383 = vsub.f32 1.0, %v5382
  %v5384 = vmul.f32 %v5381, %v5383
  %v5385 = vadd.f32 %v5381, %v5384
  %vm5386 = vweird.f32 %v5363
  %vm5387 = vweird.f32 %v5381
  %vm5388 = vmor %vm5386, %vm5387
  %v5389 = vsel %vm5388, %v5381, %v5385
  %v5390 = vand.u32 2147483647, %v5363
  %vm5391 = vcmp.eq.f32.partialorder %v5390, 8.507059e+37
  %v5392 = vand.u32 %v5363, 2147483648
  %v5393 = vor.u32 1.1754944e-38, %v5392
  %v5394 = vsel %vm5391, %v5393, %v5389
  %v5395 = vmul.f32 1.0, %v5394
  %v5396 = vrcp.pop %v5364
  %v5397 = vmul.f32 %v5364, %v5396
  %v5398 = vsub.f32 1.0, %v5397
  %v5399 = vmul.f32 %v5396, %v5398
  %v5400 = vadd.f32 %v5396, %v5399
  %vm5401 = vweird.f32 %v5364
  %vm5402 = vweird.f32 %v5396
  %vm5403 = vmor %vm5401, %vm5402
  %v5404 = vsel %vm5403, %v5396, %v5400
  %v5405 = vand.u32 2147483647, %v5364
  %vm5406 = vcmp.eq.f32.partialorder %v5405, 8.507059e+37
  %v5407 = vand.u32 %v5364, 2147483648
  %v5408 = vor.u32 1.1754944e-38, %v5407
  %v5409 = vsel %vm5406, %v5408, %v5404
  %v5410 = vmul.f32 1.0, %v5409
  %v5411 = vrcp.pop %v5365
  %v5412 = vmul.f32 %v5365, %v5411
  %v5413 = vsub.f32 1.0, %v5412
  %v5414 = vmul.f32 %v5411, %v5413
  %v5415 = vadd.f32 %v5411, %v5414
  %vm5416 = vweird.f32 %v5365
  %vm5417 = vweird.f32 %v5411
  %vm5418 = vmor %vm5416, %vm5417
  %v5419 = vsel %vm5418, %v5411, %v5415
  %v5420 = vand.u32 2147483647, %v5365
  %vm5421 = vcmp.eq.f32.partialorder %v5420, 8.507059e+37
  %v5422 = vand.u32 %v5365, 2147483648
  %v5423 = vor.u32 1.1754944e-38, %v5422
  %v5424 = vsel %vm5421, %v5423, %v5419
  %v5425 = vmul.f32 1.0, %v5424
  %5430 = vrot.lane.b32.xlu0 %v5380, 122
  %v5431 = vpop.permute.xlu0 %5430
  %5432 = vrot.lane.b32.xlu0 %v5395, 122
  %v5433 = vpop.permute.xlu0 %5432
  %5434 = vrot.lane.b32.xlu0 %v5410, 122
  %v5435 = vpop.permute.xlu0 %5434
  %5436 = vrot.lane.b32.xlu0 %v5425, 122
  %v5437 = vpop.permute.xlu0 %5436
  %vm5442 = vcmask 7168
  %5443 = vst.msk [vmem:[%s105] sm:$0xff] %vm5442, %v5431
  %5444 = vst.msk [vmem:[%s105 + $0x8] sm:$0xff] %vm5442, %v5433
  %5445 = vst.msk [vmem:[%s105 + $0x10] sm:$0xff] %vm5442, %v5435
  %5446 = vst.msk [vmem:[%s105 + $0x18] sm:$0xff] %vm5442, %v5437
  // Predicated region
  $region206: #{keyframenet_forward.1} parent=0 // pred_check
    _
  $region207: #{keyframenet_forward.1} parent=0 // pred_check_branch
    %5448 = sbr.rel (0) target = $region209
  $region208: #{keyframenet_forward.1} parent=0 // pred_region
    _
  $region209: #{keyframenet_forward.1} parent=0 // pred_fallthru
    _
  // Predicated region
  $region210: #{keyframenet_forward.1} parent=0 // pred_check
    _
  $region211: #{keyframenet_forward.1} parent=0 // pred_check_branch
    %5450 = sbr.rel (0) target = $region213
  $region212: #{keyframenet_forward.1} parent=0 // pred_region
    _
  $region213: #{keyframenet_forward.1} parent=0 // pred_fallthru
    _
  // Predicated region
  $region214: #{keyframenet_forward.1} parent=0 // pred_check
    _
  $region215: #{keyframenet_forward.1} parent=0 // pred_check_branch
    %5452 = sbr.rel (0) target = $region217
  $region216: #{keyframenet_forward.1} parent=0 // pred_region
    _
  $region217: #{keyframenet_forward.1} parent=0 // pred_fallthru
    _
  // Predicated region
  $region218: #{keyframenet_forward.1} parent=0 // pred_check
    _
  $region219: #{keyframenet_forward.1} parent=0 // pred_check_branch
    %5454 = sbr.rel (0) target = $region221
  $region220: #{keyframenet_forward.1} parent=0 // pred_region
    _
  $region221: #{keyframenet_forward.1} parent=0 // pred_fallthru
    _

</llo_original>
